<compile_context>
chip_gen: v6e
topology: v6e:2x2x1
jax: 0.10.0
libtpu: 0.0.40
codegen_flags: <defaults>
</compile_context>

<pallas_src>
import functools

import jax
import jax.numpy as jnp
from jax.experimental import pallas as pl
from jax.experimental.pallas import tpu as pltpu

D_IN, H1, H2 = 784, 128, 64          # logical dims (PyTorch module)
D_OUT_PAD, H2_PAD = 896, 128         # lane-dense padded dims (multiples of 128)


def _round_up(x, m):
    return ((x + m - 1) // m) * m


def _mlp_ae_kernel(x_ref,
                   w1_ref, b1_ref,
                   w2_ref, b2_ref,
                   w3_ref, b3_ref,
                   w4_ref, b4_ref,
                   o_ref):
    # x tile arrives as raw f32 (tb, 784); cast to bf16 in-register for the MXU.
    x = x_ref[...].astype(jnp.bfloat16)

    # dense1 + ReLU   (784 -> 128)
    h = jnp.dot(x, w1_ref[...], preferred_element_type=jnp.float32) + b1_ref[...]
    h = jnp.maximum(h, 0.0).astype(jnp.bfloat16)

    # dense2 + ReLU   (128 -> 128; last 64 output cols are zero padding)
    h = jnp.dot(h, w2_ref[...], preferred_element_type=jnp.float32) + b2_ref[...]
    h = jnp.maximum(h, 0.0).astype(jnp.bfloat16)

    # dense3 + ReLU   (128 -> 128; padded input rows are zero -> exact)
    h = jnp.dot(h, w3_ref[...], preferred_element_type=jnp.float32) + b3_ref[...]
    h = jnp.maximum(h, 0.0).astype(jnp.bfloat16)

    # dense4 + Sigmoid (128 -> 896; last 112 cols are padding, sliced off outside)
    logits = jnp.dot(h, w4_ref[...], preferred_element_type=jnp.float32) + b4_ref[...]
    o_ref[...] = jax.nn.sigmoid(logits).astype(o_ref.dtype)      # bf16 store


def _prepare_params(params):
    """Zero-pad hidden/output dims to lane-dense shapes; matmul weights in bf16.

    Padding is exact: padded h2 columns are relu(0) = 0 and the matching w3
    rows are zero, so they contribute nothing to any dot product.  (In a real
    pipeline this would be done once, not per forward call.)
    """
    w1 = params["w1"]                                                  # (784, 128)
    b1 = params["b1"]                                                  # (1, 128)
    w2 = jnp.pad(params["w2"], ((0, 0), (0, H2_PAD - H2)))             # (128, 128)
    b2 = jnp.pad(params["b2"], ((0, 0), (0, H2_PAD - H2)))             # (1, 128)
    w3 = jnp.pad(params["w3"], ((0, H2_PAD - H2), (0, 0)))             # (128, 128)
    b3 = params["b3"]                                                  # (1, 128)
    w4 = jnp.pad(params["w4"], ((0, 0), (0, D_OUT_PAD - D_IN)))        # (128, 896)
    b4 = jnp.pad(params["b4"], ((0, 0), (0, D_OUT_PAD - D_IN)))        # (1, 896)
    ws = tuple(w.astype(jnp.bfloat16) for w in (w1, w2, w3, w4))
    bs = tuple(b.astype(jnp.float32) for b in (b1, b2, b3, b4))
    return ws, bs


def _min_grid_steps():
    """>=2 grid steps on dual-TensorCore chips (v7x) so 'parallel' can shard."""
    try:
        kind = jax.devices()[0].device_kind.lower()
    except Exception:
        return 1
    return 2 if "v7" in kind else 1


def mlp_autoencoder_padded(x, params, *, tb=512, min_steps=None):
    """x: (B, 784) float32. Returns padded (B_pad, 896) bfloat16 reconstruction.

    Valid data lives in [:B, :784]; padded cols hold sigmoid(0)=0.5 and padded
    rows hold sigmoid(b4) -- consumers must ignore them.
    """
    B, D = x.shape
    assert D == D_IN
    (w1, w2, w3, w4), (b1, b2, b3, b4) = _prepare_params(params)

    if min_steps is None:
        min_steps = _min_grid_steps()

    # Batch tile: fewest steps covering the batch with minimal padding.
    B8 = _round_up(B, 8)
    n_steps = max(min_steps, pl.cdiv(B8, tb))
    if min_steps == 2 and n_steps % 2:
        n_steps += 1                              # even split across 2 TCs on v7x
    tb_eff = _round_up(pl.cdiv(B8, n_steps), 8)
    B_pad = n_steps * tb_eff

    xp = x if B_pad == B else jnp.pad(x, ((0, B_pad - B), (0, 0)))

    # Grid-resident weights/biases (constant index_map -> fetched once).
    # TODO(synk): pipeline_mode=pl.Buffered(1) on these would reclaim the dead
    # second buffer (~0.5 MB VMEM); deliberately deferred -- tiny win here and
    # VMEM has ample headroom at these tile sizes.
    full = lambda a: pl.BlockSpec(a.shape, lambda i: (0, 0))

    weight_bytes = (w1.size + w2.size + w3.size + w4.size) * 2 \
                 + (b1.size + b2.size + b3.size + b4.size) * 4
    cost = pl.CostEstimate(
        flops=2 * B_pad * (D_IN * H1 + H1 * H2 + H2 * H1 + H1 * D_IN),
        transcendentals=B_pad * D_OUT_PAD,
        bytes_accessed=B_pad * D_IN * 4 + B_pad * D_OUT_PAD * 2 + weight_bytes,
    )

    out = pl.pallas_call(
        _mlp_ae_kernel,
        out_shape=jax.ShapeDtypeStruct((B_pad, D_OUT_PAD), jnp.bfloat16),
        grid_spec=pltpu.PrefetchScalarGridSpec(
            num_scalar_prefetch=0,
            grid=(n_steps,),
            in_specs=[
                pl.BlockSpec((tb_eff, D_IN), lambda i: (i, 0)),   # raw f32 x tile
                full(w1), full(b1),
                full(w2), full(b2),
                full(w3), full(b3),
                full(w4), full(b4),
            ],
            out_specs=pl.BlockSpec((tb_eff, D_OUT_PAD), lambda i: (i, 0)),
        ),
        compiler_params=pltpu.CompilerParams(
            dimension_semantics=("parallel",)),
        cost_estimate=cost,
    )(xp, w1, b1, w2, b2, w3, b3, w4, b4)

    return out


def mlp_autoencoder(x, params, *, tb=512, min_steps=None):
    """PyTorch-equivalent forward: (B, 784) in -> (B, 784) out (x.dtype)."""
    out_pad = mlp_autoencoder_padded(x, params, tb=tb, min_steps=min_steps)
    return out_pad[:x.shape[0], :D_IN].astype(x.dtype)


def init_params(key):
    """PyTorch-style uniform(-1/sqrt(fan_in), 1/sqrt(fan_in)) init.
    Weights stored pre-transposed as (in, out); biases as (1, out)."""
    dims = [(D_IN, H1), (H1, H2), (H2, H1), (H1, D_IN)]
    params = {}
    for idx, (fan_in, fan_out) in enumerate(dims, start=1):
        key, kw, kb = jax.random.split(key, 3)
        bound = 1.0 / jnp.sqrt(jnp.float32(fan_in))
        params[f"w{idx}"] = jax.random.uniform(
            kw, (fan_in, fan_out), jnp.float32, -bound, bound)
        params[f"b{idx}"] = jax.random.uniform(
            kb, (1, fan_out), jnp.float32, -bound, bound)
    return params


def _reference(x, p):
    h = jnp.maximum(x @ p["w1"] + p["b1"], 0.0)
    h = jnp.maximum(h @ p["w2"] + p["b2"], 0.0)
    h = jnp.maximum(h @ p["w3"] + p["b3"], 0.0)
    return jax.nn.sigmoid(h @ p["w4"] + p["b4"])


if __name__ == "__main__":
    key = jax.random.PRNGKey(0)
    kx, kp = jax.random.split(key)

    B = 256                                                   # MNIST-like batch
    x = jax.random.uniform(kx, (B, D_IN), jnp.float32)        # pixels in [0, 1)
    params = init_params(kp)

    fwd = jax.jit(functools.partial(mlp_autoencoder, params=params))
    out = jax.block_until_ready(fwd(x))

    ref = _reference(x, params)
    assert out.shape == (B, D_IN)
    # bf16 matmul operands + bf16 output with f32 accumulation: loosened
    # tolerance vs a pure-f32 reference.
    assert jnp.max(jnp.abs(out.astype(jnp.float32) - ref)) < 2.5e-2

    print("KERNEL_OK")
</pallas_src>

<mosaic_0001>
module attributes {stable_mosaic.version = 11 : i64} {
  func.func @_mlp_ae_kernel(%arg0: i32, %arg1: memref<256x784xf32, #tpu.memory_space<vmem>>, %arg2: memref<784x128xbf16, #tpu.memory_space<vmem>>, %arg3: memref<1x128xf32, #tpu.memory_space<vmem>>, %arg4: memref<128x128xbf16, #tpu.memory_space<vmem>>, %arg5: memref<1x128xf32, #tpu.memory_space<vmem>>, %arg6: memref<128x128xbf16, #tpu.memory_space<vmem>>, %arg7: memref<1x128xf32, #tpu.memory_space<vmem>>, %arg8: memref<128x896xbf16, #tpu.memory_space<vmem>>, %arg9: memref<1x896xf32, #tpu.memory_space<vmem>>, %arg10: memref<256x896xbf16, #tpu.memory_space<vmem>>) attributes {dimension_semantics = [#tpu.dimension_semantics<parallel>], iteration_bounds = array<i64: 1>, scalar_prefetch = 0 : i64, scratch_operands = 0 : i64, tpu.core_type = #tpu.core_type<tc>, window_params = [{transform_indices = @transform_0, window_bounds = array<i64: 256, 784>}, {pipeline_mode = #tpu.pipeline_mode<synchronous>, transform_indices = @transform_1, window_bounds = array<i64: 784, 128>}, {pipeline_mode = #tpu.pipeline_mode<synchronous>, transform_indices = @transform_2, window_bounds = array<i64: 1, 128>}, {pipeline_mode = #tpu.pipeline_mode<synchronous>, transform_indices = @transform_3, window_bounds = array<i64: 128, 128>}, {pipeline_mode = #tpu.pipeline_mode<synchronous>, transform_indices = @transform_4, window_bounds = array<i64: 1, 128>}, {pipeline_mode = #tpu.pipeline_mode<synchronous>, transform_indices = @transform_5, window_bounds = array<i64: 128, 128>}, {pipeline_mode = #tpu.pipeline_mode<synchronous>, transform_indices = @transform_6, window_bounds = array<i64: 1, 128>}, {pipeline_mode = #tpu.pipeline_mode<synchronous>, transform_indices = @transform_7, window_bounds = array<i64: 128, 896>}, {pipeline_mode = #tpu.pipeline_mode<synchronous>, transform_indices = @transform_8, window_bounds = array<i64: 1, 896>}, {transform_indices = @transform_9, window_bounds = array<i64: 256, 896>}]} {
    %c0 = arith.constant 0 : index
    %c0_0 = arith.constant 0 : index
    %0 = vector.load %arg1[%c0, %c0_0] : memref<256x784xf32, #tpu.memory_space<vmem>>, vector<256x784xf32>
    %1 = arith.truncf %0 : vector<256x784xf32> to vector<256x784xbf16>
    %c0_1 = arith.constant 0 : index
    %c0_2 = arith.constant 0 : index
    %2 = vector.load %arg2[%c0_1, %c0_2] : memref<784x128xbf16, #tpu.memory_space<vmem>>, vector<784x128xbf16>
    %cst = arith.constant dense<0.000000e+00> : vector<256x128xf32>
    %3 = tpu.matmul %1, %2, %cst {dimension_numbers = #tpu.dot_dimension_numbers<[1], [0], [0], [1], [0, 0, 1, 1], [], []>} : vector<256x784xbf16>, vector<784x128xbf16>, vector<256x128xf32> -> vector<256x128xf32>
    %c0_3 = arith.constant 0 : index
    %c0_4 = arith.constant 0 : index
    %4 = vector.load %arg3[%c0_3, %c0_4] : memref<1x128xf32, #tpu.memory_space<vmem>>, vector<1x128xf32>
    %5 = vector.broadcast %4 : vector<1x128xf32> to vector<256x128xf32>
    %6 = arith.addf %3, %5 : vector<256x128xf32>
    %cst_5 = arith.constant 0.000000e+00 : f32
    %7 = vector.broadcast %cst_5 : f32 to vector<256x128xf32>
    %8 = arith.maximumf %6, %7 : vector<256x128xf32>
    %9 = arith.truncf %8 : vector<256x128xf32> to vector<256x128xbf16>
    %c0_6 = arith.constant 0 : index
    %c0_7 = arith.constant 0 : index
    %10 = vector.load %arg4[%c0_6, %c0_7] : memref<128x128xbf16, #tpu.memory_space<vmem>>, vector<128x128xbf16>
    %cst_8 = arith.constant dense<0.000000e+00> : vector<256x128xf32>
    %11 = tpu.matmul %9, %10, %cst_8 {dimension_numbers = #tpu.dot_dimension_numbers<[1], [0], [0], [1], [0, 0, 1, 1], [], []>} : vector<256x128xbf16>, vector<128x128xbf16>, vector<256x128xf32> -> vector<256x128xf32>
    %c0_9 = arith.constant 0 : index
    %c0_10 = arith.constant 0 : index
    %12 = vector.load %arg5[%c0_9, %c0_10] : memref<1x128xf32, #tpu.memory_space<vmem>>, vector<1x128xf32>
    %13 = vector.broadcast %12 : vector<1x128xf32> to vector<256x128xf32>
    %14 = arith.addf %11, %13 : vector<256x128xf32>
    %cst_11 = arith.constant 0.000000e+00 : f32
    %15 = vector.broadcast %cst_11 : f32 to vector<256x128xf32>
    %16 = arith.maximumf %14, %15 : vector<256x128xf32>
    %17 = arith.truncf %16 : vector<256x128xf32> to vector<256x128xbf16>
    %c0_12 = arith.constant 0 : index
    %c0_13 = arith.constant 0 : index
    %18 = vector.load %arg6[%c0_12, %c0_13] : memref<128x128xbf16, #tpu.memory_space<vmem>>, vector<128x128xbf16>
    %cst_14 = arith.constant dense<0.000000e+00> : vector<256x128xf32>
    %19 = tpu.matmul %17, %18, %cst_14 {dimension_numbers = #tpu.dot_dimension_numbers<[1], [0], [0], [1], [0, 0, 1, 1], [], []>} : vector<256x128xbf16>, vector<128x128xbf16>, vector<256x128xf32> -> vector<256x128xf32>
    %c0_15 = arith.constant 0 : index
    %c0_16 = arith.constant 0 : index
    %20 = vector.load %arg7[%c0_15, %c0_16] : memref<1x128xf32, #tpu.memory_space<vmem>>, vector<1x128xf32>
    %21 = vector.broadcast %20 : vector<1x128xf32> to vector<256x128xf32>
    %22 = arith.addf %19, %21 : vector<256x128xf32>
    %cst_17 = arith.constant 0.000000e+00 : f32
    %23 = vector.broadcast %cst_17 : f32 to vector<256x128xf32>
    %24 = arith.maximumf %22, %23 : vector<256x128xf32>
    %25 = arith.truncf %24 : vector<256x128xf32> to vector<256x128xbf16>
    %c0_18 = arith.constant 0 : index
    %c0_19 = arith.constant 0 : index
    %26 = vector.load %arg8[%c0_18, %c0_19] : memref<128x896xbf16, #tpu.memory_space<vmem>>, vector<128x896xbf16>
    %cst_20 = arith.constant dense<0.000000e+00> : vector<256x896xf32>
    %27 = tpu.matmul %25, %26, %cst_20 {dimension_numbers = #tpu.dot_dimension_numbers<[1], [0], [0], [1], [0, 0, 1, 1], [], []>} : vector<256x128xbf16>, vector<128x896xbf16>, vector<256x896xf32> -> vector<256x896xf32>
    %c0_21 = arith.constant 0 : index
    %c0_22 = arith.constant 0 : index
    %28 = vector.load %arg9[%c0_21, %c0_22] : memref<1x896xf32, #tpu.memory_space<vmem>>, vector<1x896xf32>
    %29 = vector.broadcast %28 : vector<1x896xf32> to vector<256x896xf32>
    %30 = arith.addf %27, %29 : vector<256x896xf32>
    %31 = arith.negf %30 : vector<256x896xf32>
    %32 = math.exp %31 : vector<256x896xf32>
    %cst_23 = arith.constant 1.000000e+00 : f32
    %33 = vector.broadcast %cst_23 : f32 to vector<256x896xf32>
    %34 = arith.addf %33, %32 : vector<256x896xf32>
    %35 = arith.divf %33, %34 : vector<256x896xf32>
    %36 = arith.truncf %35 : vector<256x896xf32> to vector<256x896xbf16>
    %c0_24 = arith.constant 0 : index
    %c0_25 = arith.constant 0 : index
    %37 = vector.load %arg10[%c0_24, %c0_25] : memref<256x896xbf16, #tpu.memory_space<vmem>>, vector<256x896xbf16>
    tpu.vector_store %arg10[%c0_24, %c0_25], %36 {strides = array<i32>} : memref<256x896xbf16, #tpu.memory_space<vmem>>, vector<256x896xbf16>,
    return
  }
  func.func @transform_0(%arg0: i32) -> (i32, i32) {
    %c0_i32 = arith.constant 0 : i32
    %c0_i32_0 = arith.constant 0 : i32
    return %arg0, %c0_i32 : i32, i32
  }
  func.func @transform_1(%arg0: i32) -> (i32, i32) {
    %c0_i32 = arith.constant 0 : i32
    %c0_i32_0 = arith.constant 0 : i32
    %c0_i32_1 = arith.constant 0 : i32
    return %c0_i32, %c0_i32_0 : i32, i32
  }
  func.func @transform_2(%arg0: i32) -> (i32, i32) {
    %c0_i32 = arith.constant 0 : i32
    %c0_i32_0 = arith.constant 0 : i32
    %c0_i32_1 = arith.constant 0 : i32
    return %c0_i32, %c0_i32_0 : i32, i32
  }
  func.func @transform_3(%arg0: i32) -> (i32, i32) {
    %c0_i32 = arith.constant 0 : i32
    %c0_i32_0 = arith.constant 0 : i32
    %c0_i32_1 = arith.constant 0 : i32
    return %c0_i32, %c0_i32_0 : i32, i32
  }
  func.func @transform_4(%arg0: i32) -> (i32, i32) {
    %c0_i32 = arith.constant 0 : i32
    %c0_i32_0 = arith.constant 0 : i32
    %c0_i32_1 = arith.constant 0 : i32
    return %c0_i32, %c0_i32_0 : i32, i32
  }
  func.func @transform_5(%arg0: i32) -> (i32, i32) {
    %c0_i32 = arith.constant 0 : i32
    %c0_i32_0 = arith.constant 0 : i32
    %c0_i32_1 = arith.constant 0 : i32
    return %c0_i32, %c0_i32_0 : i32, i32
  }
  func.func @transform_6(%arg0: i32) -> (i32, i32) {
    %c0_i32 = arith.constant 0 : i32
    %c0_i32_0 = arith.constant 0 : i32
    %c0_i32_1 = arith.constant 0 : i32
    return %c0_i32, %c0_i32_0 : i32, i32
  }
  func.func @transform_7(%arg0: i32) -> (i32, i32) {
    %c0_i32 = arith.constant 0 : i32
    %c0_i32_0 = arith.constant 0 : i32
    %c0_i32_1 = arith.constant 0 : i32
    return %c0_i32, %c0_i32_0 : i32, i32
  }
  func.func @transform_8(%arg0: i32) -> (i32, i32) {
    %c0_i32 = arith.constant 0 : i32
    %c0_i32_0 = arith.constant 0 : i32
    %c0_i32_1 = arith.constant 0 : i32
    return %c0_i32, %c0_i32_0 : i32, i32
  }
  func.func @transform_9(%arg0: i32) -> (i32, i32) {
    %c0_i32 = arith.constant 0 : i32
    %c0_i32_0 = arith.constant 0 : i32
    return %arg0, %c0_i32 : i32, i32
  }
}

</mosaic_0001>

<llo_original>
// kernel: mlp_autoencoder.1
$region0: #{mlp_autoencoder.1}
  #allocation0 [shape = 'u32[]', space=smem, size = 0x4, offset = 0x4, fixed_abs, tag = 'smem constant byte address 0x4 - core index']
  #allocation1 [shape = 'u32[144,128]{1,0:T(1,128)}', space=vmem, size = 0x12000, scoped, tag = 'internal scratch']
  %s0 = inlined_call_operand.vmem [shape: f32[256,784], index: 0, kind: input, shape index: {}]
  %s1 = inlined_call_operand.vmem [shape: bf16[784,128], index: 1, kind: input, shape index: {}]
  %s2 = inlined_call_operand.vmem [shape: f32[1,128], index: 2, kind: input, shape index: {}]
  %s3 = inlined_call_operand.vmem [shape: bf16[128,128], index: 3, kind: input, shape index: {}]
  %s4 = inlined_call_operand.vmem [shape: f32[1,128], index: 4, kind: input, shape index: {}]
  %s5 = inlined_call_operand.vmem [shape: bf16[128,128], index: 5, kind: input, shape index: {}]
  %s6 = inlined_call_operand.vmem [shape: f32[1,128], index: 6, kind: input, shape index: {}]
  %s7 = inlined_call_operand.vmem [shape: bf16[128,896], index: 7, kind: input, shape index: {}]
  %s8 = inlined_call_operand.vmem [shape: f32[1,896], index: 8, kind: input, shape index: {}]
  %s9 = inlined_call_operand.vmem [shape: bf16[256,896], index: 9, kind: output, shape index: {}]
  %s10 = sld [smem:[#allocation0]]
  $region46: #{mlp_autoencoder.1} parent=0
    _
  %s12 = ssub.s32 1, %s10
  %s13 = scalar_select 0, %s12, %s10
  // Predicated region
  $region2: #{mlp_autoencoder.1} parent=0 // pred_check
    _
  $region3: #{mlp_autoencoder.1} parent=0 // pred_check_branch
    %15 = sbr.rel (0) target = $region5
  $region4: #{mlp_autoencoder.1} parent=0 // pred_region
    _
  $region5: #{mlp_autoencoder.1} parent=0 // pred_fallthru
    _
  // Predicated region
  $region6: #{mlp_autoencoder.1} parent=0 // pred_check
    _
  $region7: #{mlp_autoencoder.1} parent=0 // pred_check_branch
    %17 = sbr.rel (0) target = $region9
  $region8: #{mlp_autoencoder.1} parent=0 // pred_region
    _
  $region9: #{mlp_autoencoder.1} parent=0 // pred_fallthru
    _
  // Predicated region
  $region10: #{mlp_autoencoder.1} parent=0 // pred_check
    _
  $region11: #{mlp_autoencoder.1} parent=0 // pred_check_branch
    %19 = sbr.rel (0) target = $region13
  $region12: #{mlp_autoencoder.1} parent=0 // pred_region
    _
  $region13: #{mlp_autoencoder.1} parent=0 // pred_fallthru
    _
  // Predicated region
  $region14: #{mlp_autoencoder.1} parent=0 // pred_check
    _
  $region15: #{mlp_autoencoder.1} parent=0 // pred_check_branch
    %21 = sbr.rel (0) target = $region17
  $region16: #{mlp_autoencoder.1} parent=0 // pred_region
    _
  $region17: #{mlp_autoencoder.1} parent=0 // pred_fallthru
    _
  // Predicated region
  $region18: #{mlp_autoencoder.1} parent=0 // pred_check
    _
  $region19: #{mlp_autoencoder.1} parent=0 // pred_check_branch
    %23 = sbr.rel (0) target = $region21
  $region20: #{mlp_autoencoder.1} parent=0 // pred_region
    _
  $region21: #{mlp_autoencoder.1} parent=0 // pred_fallthru
    _
  // Predicated region
  $region22: #{mlp_autoencoder.1} parent=0 // pred_check
    _
  $region23: #{mlp_autoencoder.1} parent=0 // pred_check_branch
    %25 = sbr.rel (0) target = $region25
  $region24: #{mlp_autoencoder.1} parent=0 // pred_region
    _
  $region25: #{mlp_autoencoder.1} parent=0 // pred_fallthru
    _
  // Predicated region
  $region26: #{mlp_autoencoder.1} parent=0 // pred_check
    _
  $region27: #{mlp_autoencoder.1} parent=0 // pred_check_branch
    %27 = sbr.rel (0) target = $region29
  $region28: #{mlp_autoencoder.1} parent=0 // pred_region
    _
  $region29: #{mlp_autoencoder.1} parent=0 // pred_fallthru
    _
  // Predicated region
  $region30: #{mlp_autoencoder.1} parent=0 // pred_check
    _
  $region31: #{mlp_autoencoder.1} parent=0 // pred_check_branch
    %29 = sbr.rel (0) target = $region33
  $region32: #{mlp_autoencoder.1} parent=0 // pred_region
    _
  $region33: #{mlp_autoencoder.1} parent=0 // pred_fallthru
    _
  // Predicated region
  $region34: #{mlp_autoencoder.1} parent=0 // pred_check
    _
  $region35: #{mlp_autoencoder.1} parent=0 // pred_check_branch
    %31 = sbr.rel (0) target = $region37
  $region36: #{mlp_autoencoder.1} parent=0 // pred_region
    _
  $region37: #{mlp_autoencoder.1} parent=0 // pred_fallthru
    _
  %v33 = vld [vmem:[%s0] sm:$0xff]
  %v34 = vld [vmem:[%s0 + $0x8] sm:$0xff]
  %v35 = vld [vmem:[%s0 + $0x10] sm:$0xff]
  %v36 = vld [vmem:[%s0 + $0x18] sm:$0xff]
  %v37 = vld [vmem:[%s0 + $0x20] sm:$0xff]
  %v38 = vld [vmem:[%s0 + $0x28] sm:$0xff]
  %v39 = vld [vmem:[%s0 + $0x30] sm:$0xff]
  %v40 = vld [vmem:[%s0 + $0x38] sm:$0xff]
  %v41 = vld [vmem:[%s0 + $0x40] sm:$0xff]
  %v42 = vld [vmem:[%s0 + $0x48] sm:$0xff]
  %v43 = vld [vmem:[%s0 + $0x50] sm:$0xff]
  %v44 = vld [vmem:[%s0 + $0x58] sm:$0xff]
  %v45 = vld [vmem:[%s0 + $0x60] sm:$0xff]
  %v46 = vld [vmem:[%s0 + $0x68] sm:$0xff]
  %v47 = vld [vmem:[%s0 + $0x70] sm:$0xff]
  %v48 = vld [vmem:[%s0 + $0x78] sm:$0xff]
  %v49 = vld [vmem:[%s0 + $0x80] sm:$0xff]
  %v50 = vld [vmem:[%s0 + $0x88] sm:$0xff]
  %v51 = vld [vmem:[%s0 + $0x90] sm:$0xff]
  %v52 = vld [vmem:[%s0 + $0x98] sm:$0xff]
  %v53 = vld [vmem:[%s0 + $0xa0] sm:$0xff]
  %v54 = vld [vmem:[%s0 + $0xa8] sm:$0xff]
  %v55 = vld [vmem:[%s0 + $0xb0] sm:$0xff]
  %v56 = vld [vmem:[%s0 + $0xb8] sm:$0xff]
  %v57 = vld [vmem:[%s0 + $0xc0] sm:$0xff]
  %v58 = vld [vmem:[%s0 + $0xc8] sm:$0xff]
  %v59 = vld [vmem:[%s0 + $0xd0] sm:$0xff]
  %v60 = vld [vmem:[%s0 + $0xd8] sm:$0xff]
  %v61 = vld [vmem:[%s0 + $0xe0] sm:$0xff]
  %v62 = vld [vmem:[%s0 + $0xe8] sm:$0xff]
  %v63 = vld [vmem:[%s0 + $0xf0] sm:$0xff]
  %v64 = vld [vmem:[%s0 + $0xf8] sm:$0xff]
  %v65 = vld [vmem:[%s0 + $0x100] sm:$0xff]
  %v66 = vld [vmem:[%s0 + $0x108] sm:$0xff]
  %v67 = vld [vmem:[%s0 + $0x110] sm:$0xff]
  %v68 = vld [vmem:[%s0 + $0x118] sm:$0xff]
  %v69 = vld [vmem:[%s0 + $0x120] sm:$0xff]
  %v70 = vld [vmem:[%s0 + $0x128] sm:$0xff]
  %v71 = vld [vmem:[%s0 + $0x130] sm:$0xff]
  %v72 = vld [vmem:[%s0 + $0x138] sm:$0xff]
  %v73 = vld [vmem:[%s0 + $0x140] sm:$0xff]
  %v74 = vld [vmem:[%s0 + $0x148] sm:$0xff]
  %v75 = vld [vmem:[%s0 + $0x150] sm:$0xff]
  %v76 = vld [vmem:[%s0 + $0x158] sm:$0xff]
  %v77 = vld [vmem:[%s0 + $0x160] sm:$0xff]
  %v78 = vld [vmem:[%s0 + $0x168] sm:$0xff]
  %v79 = vld [vmem:[%s0 + $0x170] sm:$0xff]
  %v80 = vld [vmem:[%s0 + $0x178] sm:$0xff]
  %v81 = vld [vmem:[%s0 + $0x180] sm:$0xff]
  %v82 = vld [vmem:[%s0 + $0x188] sm:$0xff]
  %v83 = vld [vmem:[%s0 + $0x190] sm:$0xff]
  %v84 = vld [vmem:[%s0 + $0x198] sm:$0xff]
  %v85 = vld [vmem:[%s0 + $0x1a0] sm:$0xff]
  %v86 = vld [vmem:[%s0 + $0x1a8] sm:$0xff]
  %v87 = vld [vmem:[%s0 + $0x1b0] sm:$0xff]
  %v88 = vld [vmem:[%s0 + $0x1b8] sm:$0xff]
  %v89 = vld [vmem:[%s0 + $0x1c0] sm:$0xff]
  %v90 = vld [vmem:[%s0 + $0x1c8] sm:$0xff]
  %v91 = vld [vmem:[%s0 + $0x1d0] sm:$0xff]
  %v92 = vld [vmem:[%s0 + $0x1d8] sm:$0xff]
  %v93 = vld [vmem:[%s0 + $0x1e0] sm:$0xff]
  %v94 = vld [vmem:[%s0 + $0x1e8] sm:$0xff]
  %v95 = vld [vmem:[%s0 + $0x1f0] sm:$0xff]
  %v96 = vld [vmem:[%s0 + $0x1f8] sm:$0xff]
  %v97 = vld [vmem:[%s0 + $0x200] sm:$0xff]
  %v98 = vld [vmem:[%s0 + $0x208] sm:$0xff]
  %v99 = vld [vmem:[%s0 + $0x210] sm:$0xff]
  %v100 = vld [vmem:[%s0 + $0x218] sm:$0xff]
  %v101 = vld [vmem:[%s0 + $0x220] sm:$0xff]
  %v102 = vld [vmem:[%s0 + $0x228] sm:$0xff]
  %v103 = vld [vmem:[%s0 + $0x230] sm:$0xff]
  %v104 = vld [vmem:[%s0 + $0x238] sm:$0xff]
  %v105 = vld [vmem:[%s0 + $0x240] sm:$0xff]
  %v106 = vld [vmem:[%s0 + $0x248] sm:$0xff]
  %v107 = vld [vmem:[%s0 + $0x250] sm:$0xff]
  %v108 = vld [vmem:[%s0 + $0x258] sm:$0xff]
  %v109 = vld [vmem:[%s0 + $0x260] sm:$0xff]
  %v110 = vld [vmem:[%s0 + $0x268] sm:$0xff]
  %v111 = vld [vmem:[%s0 + $0x270] sm:$0xff]
  %v112 = vld [vmem:[%s0 + $0x278] sm:$0xff]
  %v113 = vld [vmem:[%s0 + $0x280] sm:$0xff]
  %v114 = vld [vmem:[%s0 + $0x288] sm:$0xff]
  %v115 = vld [vmem:[%s0 + $0x290] sm:$0xff]
  %v116 = vld [vmem:[%s0 + $0x298] sm:$0xff]
  %v117 = vld [vmem:[%s0 + $0x2a0] sm:$0xff]
  %v118 = vld [vmem:[%s0 + $0x2a8] sm:$0xff]
  %v119 = vld [vmem:[%s0 + $0x2b0] sm:$0xff]
  %v120 = vld [vmem:[%s0 + $0x2b8] sm:$0xff]
  %v121 = vld [vmem:[%s0 + $0x2c0] sm:$0xff]
  %v122 = vld [vmem:[%s0 + $0x2c8] sm:$0xff]
  %v123 = vld [vmem:[%s0 + $0x2d0] sm:$0xff]
  %v124 = vld [vmem:[%s0 + $0x2d8] sm:$0xff]
  %v125 = vld [vmem:[%s0 + $0x2e0] sm:$0xff]
  %v126 = vld [vmem:[%s0 + $0x2e8] sm:$0xff]
  %v127 = vld [vmem:[%s0 + $0x2f0] sm:$0xff]
  %v128 = vld [vmem:[%s0 + $0x2f8] sm:$0xff]
  %v129 = vld [vmem:[%s0 + $0x300] sm:$0xff]
  %v130 = vld [vmem:[%s0 + $0x308] sm:$0xff]
  %v131 = vld [vmem:[%s0 + $0x310] sm:$0xff]
  %v132 = vld [vmem:[%s0 + $0x318] sm:$0xff]
  %v133 = vld [vmem:[%s0 + $0x320] sm:$0xff]
  %v134 = vld [vmem:[%s0 + $0x328] sm:$0xff]
  %v135 = vld [vmem:[%s0 + $0x330] sm:$0xff]
  %v136 = vld [vmem:[%s0 + $0x338] sm:$0xff]
  %v137 = vld [vmem:[%s0 + $0x340] sm:$0xff]
  %v138 = vld [vmem:[%s0 + $0x348] sm:$0xff]
  %v139 = vld [vmem:[%s0 + $0x350] sm:$0xff]
  %v140 = vld [vmem:[%s0 + $0x358] sm:$0xff]
  %v141 = vld [vmem:[%s0 + $0x360] sm:$0xff]
  %v142 = vld [vmem:[%s0 + $0x368] sm:$0xff]
  %v143 = vld [vmem:[%s0 + $0x370] sm:$0xff]
  %v144 = vld [vmem:[%s0 + $0x378] sm:$0xff]
  %v145 = vld [vmem:[%s0 + $0x380] sm:$0xff]
  %v146 = vld [vmem:[%s0 + $0x388] sm:$0xff]
  %v147 = vld [vmem:[%s0 + $0x390] sm:$0xff]
  %v148 = vld [vmem:[%s0 + $0x398] sm:$0xff]
  %v149 = vld [vmem:[%s0 + $0x3a0] sm:$0xff]
  %v150 = vld [vmem:[%s0 + $0x3a8] sm:$0xff]
  %v151 = vld [vmem:[%s0 + $0x3b0] sm:$0xff]
  %v152 = vld [vmem:[%s0 + $0x3b8] sm:$0xff]
  %v153 = vld [vmem:[%s0 + $0x3c0] sm:$0xff]
  %v154 = vld [vmem:[%s0 + $0x3c8] sm:$0xff]
  %v155 = vld [vmem:[%s0 + $0x3d0] sm:$0xff]
  %v156 = vld [vmem:[%s0 + $0x3d8] sm:$0xff]
  %v157 = vld [vmem:[%s0 + $0x3e0] sm:$0xff]
  %v158 = vld [vmem:[%s0 + $0x3e8] sm:$0xff]
  %v159 = vld [vmem:[%s0 + $0x3f0] sm:$0xff]
  %v160 = vld [vmem:[%s0 + $0x3f8] sm:$0xff]
  %v161 = vld [vmem:[%s0 + $0x400] sm:$0xff]
  %v162 = vld [vmem:[%s0 + $0x408] sm:$0xff]
  %v163 = vld [vmem:[%s0 + $0x410] sm:$0xff]
  %v164 = vld [vmem:[%s0 + $0x418] sm:$0xff]
  %v165 = vld [vmem:[%s0 + $0x420] sm:$0xff]
  %v166 = vld [vmem:[%s0 + $0x428] sm:$0xff]
  %v167 = vld [vmem:[%s0 + $0x430] sm:$0xff]
  %v168 = vld [vmem:[%s0 + $0x438] sm:$0xff]
  %v169 = vld [vmem:[%s0 + $0x440] sm:$0xff]
  %v170 = vld [vmem:[%s0 + $0x448] sm:$0xff]
  %v171 = vld [vmem:[%s0 + $0x450] sm:$0xff]
  %v172 = vld [vmem:[%s0 + $0x458] sm:$0xff]
  %v173 = vld [vmem:[%s0 + $0x460] sm:$0xff]
  %v174 = vld [vmem:[%s0 + $0x468] sm:$0xff]
  %v175 = vld [vmem:[%s0 + $0x470] sm:$0xff]
  %v176 = vld [vmem:[%s0 + $0x478] sm:$0xff]
  %v177 = vld [vmem:[%s0 + $0x480] sm:$0xff]
  %v178 = vld [vmem:[%s0 + $0x488] sm:$0xff]
  %v179 = vld [vmem:[%s0 + $0x490] sm:$0xff]
  %v180 = vld [vmem:[%s0 + $0x498] sm:$0xff]
  %v181 = vld [vmem:[%s0 + $0x4a0] sm:$0xff]
  %v182 = vld [vmem:[%s0 + $0x4a8] sm:$0xff]
  %v183 = vld [vmem:[%s0 + $0x4b0] sm:$0xff]
  %v184 = vld [vmem:[%s0 + $0x4b8] sm:$0xff]
  %v185 = vld [vmem:[%s0 + $0x4c0] sm:$0xff]
  %v186 = vld [vmem:[%s0 + $0x4c8] sm:$0xff]
  %v187 = vld [vmem:[%s0 + $0x4d0] sm:$0xff]
  %v188 = vld [vmem:[%s0 + $0x4d8] sm:$0xff]
  %v189 = vld [vmem:[%s0 + $0x4e0] sm:$0xff]
  %v190 = vld [vmem:[%s0 + $0x4e8] sm:$0xff]
  %v191 = vld [vmem:[%s0 + $0x4f0] sm:$0xff]
  %v192 = vld [vmem:[%s0 + $0x4f8] sm:$0xff]
  %v193 = vld [vmem:[%s0 + $0x500] sm:$0xff]
  %v194 = vld [vmem:[%s0 + $0x508] sm:$0xff]
  %v195 = vld [vmem:[%s0 + $0x510] sm:$0xff]
  %v196 = vld [vmem:[%s0 + $0x518] sm:$0xff]
  %v197 = vld [vmem:[%s0 + $0x520] sm:$0xff]
  %v198 = vld [vmem:[%s0 + $0x528] sm:$0xff]
  %v199 = vld [vmem:[%s0 + $0x530] sm:$0xff]
  %v200 = vld [vmem:[%s0 + $0x538] sm:$0xff]
  %v201 = vld [vmem:[%s0 + $0x540] sm:$0xff]
  %v202 = vld [vmem:[%s0 + $0x548] sm:$0xff]
  %v203 = vld [vmem:[%s0 + $0x550] sm:$0xff]
  %v204 = vld [vmem:[%s0 + $0x558] sm:$0xff]
  %v205 = vld [vmem:[%s0 + $0x560] sm:$0xff]
  %v206 = vld [vmem:[%s0 + $0x568] sm:$0xff]
  %v207 = vld [vmem:[%s0 + $0x570] sm:$0xff]
  %v208 = vld [vmem:[%s0 + $0x578] sm:$0xff]
  %v209 = vld [vmem:[%s0 + $0x580] sm:$0xff]
  %v210 = vld [vmem:[%s0 + $0x588] sm:$0xff]
  %v211 = vld [vmem:[%s0 + $0x590] sm:$0xff]
  %v212 = vld [vmem:[%s0 + $0x598] sm:$0xff]
  %v213 = vld [vmem:[%s0 + $0x5a0] sm:$0xff]
  %v214 = vld [vmem:[%s0 + $0x5a8] sm:$0xff]
  %v215 = vld [vmem:[%s0 + $0x5b0] sm:$0xff]
  %v216 = vld [vmem:[%s0 + $0x5b8] sm:$0xff]
  %v217 = vld [vmem:[%s0 + $0x5c0] sm:$0xff]
  %v218 = vld [vmem:[%s0 + $0x5c8] sm:$0xff]
  %v219 = vld [vmem:[%s0 + $0x5d0] sm:$0xff]
  %v220 = vld [vmem:[%s0 + $0x5d8] sm:$0xff]
  %v221 = vld [vmem:[%s0 + $0x5e0] sm:$0xff]
  %v222 = vld [vmem:[%s0 + $0x5e8] sm:$0xff]
  %v223 = vld [vmem:[%s0 + $0x5f0] sm:$0xff]
  %v224 = vld [vmem:[%s0 + $0x5f8] sm:$0xff]
  %v225 = vld [vmem:[%s0 + $0x600] sm:$0xff]
  %v226 = vld [vmem:[%s0 + $0x608] sm:$0xff]
  %v227 = vld [vmem:[%s0 + $0x610] sm:$0xff]
  %v228 = vld [vmem:[%s0 + $0x618] sm:$0xff]
  %v229 = vld [vmem:[%s0 + $0x620] sm:$0xff]
  %v230 = vld [vmem:[%s0 + $0x628] sm:$0xff]
  %v231 = vld [vmem:[%s0 + $0x630] sm:$0xff]
  %v232 = vld [vmem:[%s0 + $0x638] sm:$0xff]
  %v233 = vld [vmem:[%s0 + $0x640] sm:$0xff]
  %v234 = vld [vmem:[%s0 + $0x648] sm:$0xff]
  %v235 = vld [vmem:[%s0 + $0x650] sm:$0xff]
  %v236 = vld [vmem:[%s0 + $0x658] sm:$0xff]
  %v237 = vld [vmem:[%s0 + $0x660] sm:$0xff]
  %v238 = vld [vmem:[%s0 + $0x668] sm:$0xff]
  %v239 = vld [vmem:[%s0 + $0x670] sm:$0xff]
  %v240 = vld [vmem:[%s0 + $0x678] sm:$0xff]
  %v241 = vld [vmem:[%s0 + $0x680] sm:$0xff]
  %v242 = vld [vmem:[%s0 + $0x688] sm:$0xff]
  %v243 = vld [vmem:[%s0 + $0x690] sm:$0xff]
  %v244 = vld [vmem:[%s0 + $0x698] sm:$0xff]
  %v245 = vld [vmem:[%s0 + $0x6a0] sm:$0xff]
  %v246 = vld [vmem:[%s0 + $0x6a8] sm:$0xff]
  %v247 = vld [vmem:[%s0 + $0x6b0] sm:$0xff]
  %v248 = vld [vmem:[%s0 + $0x6b8] sm:$0xff]
  %v249 = vld [vmem:[%s0 + $0x6c0] sm:$0xff]
  %v250 = vld [vmem:[%s0 + $0x6c8] sm:$0xff]
  %v251 = vld [vmem:[%s0 + $0x6d0] sm:$0xff]
  %v252 = vld [vmem:[%s0 + $0x6d8] sm:$0xff]
  %v253 = vld [vmem:[%s0 + $0x6e0] sm:$0xff]
  %v254 = vld [vmem:[%s0 + $0x6e8] sm:$0xff]
  %v255 = vld [vmem:[%s0 + $0x6f0] sm:$0xff]
  %v256 = vld [vmem:[%s0 + $0x6f8] sm:$0xff]
  %v257 = vpack.c.bf16 %v40, %v33
  %v258 = vpack.c.bf16 %v41, %v34
  %v259 = vpack.c.bf16 %v42, %v35
  %v260 = vpack.c.bf16 %v43, %v36
  %v261 = vpack.c.bf16 %v44, %v37
  %v262 = vpack.c.bf16 %v45, %v38
  %v263 = vpack.c.bf16 %v46, %v39
  %v264 = vpack.c.bf16 %v54, %v47
  %v265 = vpack.c.bf16 %v55, %v48
  %v266 = vpack.c.bf16 %v56, %v49
  %v267 = vpack.c.bf16 %v57, %v50
  %v268 = vpack.c.bf16 %v58, %v51
  %v269 = vpack.c.bf16 %v59, %v52
  %v270 = vpack.c.bf16 %v60, %v53
  %v271 = vpack.c.bf16 %v68, %v61
  %v272 = vpack.c.bf16 %v69, %v62
  %v273 = vpack.c.bf16 %v70, %v63
  %v274 = vpack.c.bf16 %v71, %v64
  %v275 = vpack.c.bf16 %v72, %v65
  %v276 = vpack.c.bf16 %v73, %v66
  %v277 = vpack.c.bf16 %v74, %v67
  %v278 = vpack.c.bf16 %v82, %v75
  %v279 = vpack.c.bf16 %v83, %v76
  %v280 = vpack.c.bf16 %v84, %v77
  %v281 = vpack.c.bf16 %v85, %v78
  %v282 = vpack.c.bf16 %v86, %v79
  %v283 = vpack.c.bf16 %v87, %v80
  %v284 = vpack.c.bf16 %v88, %v81
  %v285 = vpack.c.bf16 %v96, %v89
  %v286 = vpack.c.bf16 %v97, %v90
  %v287 = vpack.c.bf16 %v98, %v91
  %v288 = vpack.c.bf16 %v99, %v92
  %v289 = vpack.c.bf16 %v100, %v93
  %v290 = vpack.c.bf16 %v101, %v94
  %v291 = vpack.c.bf16 %v102, %v95
  %v292 = vpack.c.bf16 %v110, %v103
  %v293 = vpack.c.bf16 %v111, %v104
  %v294 = vpack.c.bf16 %v112, %v105
  %v295 = vpack.c.bf16 %v113, %v106
  %v296 = vpack.c.bf16 %v114, %v107
  %v297 = vpack.c.bf16 %v115, %v108
  %v298 = vpack.c.bf16 %v116, %v109
  %v299 = vpack.c.bf16 %v124, %v117
  %v300 = vpack.c.bf16 %v125, %v118
  %v301 = vpack.c.bf16 %v126, %v119
  %v302 = vpack.c.bf16 %v127, %v120
  %v303 = vpack.c.bf16 %v128, %v121
  %v304 = vpack.c.bf16 %v129, %v122
  %v305 = vpack.c.bf16 %v130, %v123
  %v306 = vpack.c.bf16 %v138, %v131
  %v307 = vpack.c.bf16 %v139, %v132
  %v308 = vpack.c.bf16 %v140, %v133
  %v309 = vpack.c.bf16 %v141, %v134
  %v310 = vpack.c.bf16 %v142, %v135
  %v311 = vpack.c.bf16 %v143, %v136
  %v312 = vpack.c.bf16 %v144, %v137
  %v313 = vpack.c.bf16 %v152, %v145
  %v314 = vpack.c.bf16 %v153, %v146
  %v315 = vpack.c.bf16 %v154, %v147
  %v316 = vpack.c.bf16 %v155, %v148
  %v317 = vpack.c.bf16 %v156, %v149
  %v318 = vpack.c.bf16 %v157, %v150
  %v319 = vpack.c.bf16 %v158, %v151
  %v320 = vpack.c.bf16 %v166, %v159
  %v321 = vpack.c.bf16 %v167, %v160
  %v322 = vpack.c.bf16 %v168, %v161
  %v323 = vpack.c.bf16 %v169, %v162
  %v324 = vpack.c.bf16 %v170, %v163
  %v325 = vpack.c.bf16 %v171, %v164
  %v326 = vpack.c.bf16 %v172, %v165
  %v327 = vpack.c.bf16 %v180, %v173
  %v328 = vpack.c.bf16 %v181, %v174
  %v329 = vpack.c.bf16 %v182, %v175
  %v330 = vpack.c.bf16 %v183, %v176
  %v331 = vpack.c.bf16 %v184, %v177
  %v332 = vpack.c.bf16 %v185, %v178
  %v333 = vpack.c.bf16 %v186, %v179
  %v334 = vpack.c.bf16 %v194, %v187
  %v335 = vpack.c.bf16 %v195, %v188
  %v336 = vpack.c.bf16 %v196, %v189
  %v337 = vpack.c.bf16 %v197, %v190
  %v338 = vpack.c.bf16 %v198, %v191
  %v339 = vpack.c.bf16 %v199, %v192
  %v340 = vpack.c.bf16 %v200, %v193
  %v341 = vpack.c.bf16 %v208, %v201
  %v342 = vpack.c.bf16 %v209, %v202
  %v343 = vpack.c.bf16 %v210, %v203
  %v344 = vpack.c.bf16 %v211, %v204
  %v345 = vpack.c.bf16 %v212, %v205
  %v346 = vpack.c.bf16 %v213, %v206
  %v347 = vpack.c.bf16 %v214, %v207
  %v348 = vpack.c.bf16 %v222, %v215
  %v349 = vpack.c.bf16 %v223, %v216
  %v350 = vpack.c.bf16 %v224, %v217
  %v351 = vpack.c.bf16 %v225, %v218
  %v352 = vpack.c.bf16 %v226, %v219
  %v353 = vpack.c.bf16 %v227, %v220
  %v354 = vpack.c.bf16 %v228, %v221
  %v355 = vpack.c.bf16 %v236, %v229
  %v356 = vpack.c.bf16 %v237, %v230
  %v357 = vpack.c.bf16 %v238, %v231
  %v358 = vpack.c.bf16 %v239, %v232
  %v359 = vpack.c.bf16 %v240, %v233
  %v360 = vpack.c.bf16 %v241, %v234
  %v361 = vpack.c.bf16 %v242, %v235
  %v362 = vpack.c.bf16 %v250, %v243
  %v363 = vpack.c.bf16 %v251, %v244
  %v364 = vpack.c.bf16 %v252, %v245
  %v365 = vpack.c.bf16 %v253, %v246
  %v366 = vpack.c.bf16 %v254, %v247
  %v367 = vpack.c.bf16 %v255, %v248
  %v368 = vpack.c.bf16 %v256, %v249
  %v369 = vld [vmem:[%s1] sm:$0xf]
  %v370 = vld [vmem:[%s1 + $0x4] sm:$0xf]
  %v371 = vld [vmem:[%s1 + $0x8] sm:$0xf]
  %v372 = vld [vmem:[%s1 + $0xc] sm:$0xf]
  %v373 = vld [vmem:[%s1 + $0x10] sm:$0xf]
  %v374 = vld [vmem:[%s1 + $0x14] sm:$0xf]
  %v375 = vld [vmem:[%s1 + $0x18] sm:$0xf]
  %v376 = vld [vmem:[%s1 + $0x1c] sm:$0xf]
  %v377 = vld [vmem:[%s1 + $0x20] sm:$0xf]
  %v378 = vld [vmem:[%s1 + $0x24] sm:$0xf]
  %v379 = vld [vmem:[%s1 + $0x28] sm:$0xf]
  %v380 = vld [vmem:[%s1 + $0x2c] sm:$0xf]
  %v381 = vld [vmem:[%s1 + $0x30] sm:$0xf]
  %v382 = vld [vmem:[%s1 + $0x34] sm:$0xf]
  %v383 = vld [vmem:[%s1 + $0x38] sm:$0xf]
  %v384 = vld [vmem:[%s1 + $0x3c] sm:$0xf]
  %v385 = vld [vmem:[%s1 + $0x40] sm:$0xf]
  %v386 = vld [vmem:[%s1 + $0x44] sm:$0xf]
  %v387 = vld [vmem:[%s1 + $0x48] sm:$0xf]
  %v388 = vld [vmem:[%s1 + $0x4c] sm:$0xf]
  %v389 = vld [vmem:[%s1 + $0x50] sm:$0xf]
  %v390 = vld [vmem:[%s1 + $0x54] sm:$0xf]
  %v391 = vld [vmem:[%s1 + $0x58] sm:$0xf]
  %v392 = vld [vmem:[%s1 + $0x5c] sm:$0xf]
  %v393 = vld [vmem:[%s1 + $0x60] sm:$0xf]
  %v394 = vld [vmem:[%s1 + $0x64] sm:$0xf]
  %v395 = vld [vmem:[%s1 + $0x68] sm:$0xf]
  %v396 = vld [vmem:[%s1 + $0x6c] sm:$0xf]
  %v397 = vld [vmem:[%s1 + $0x70] sm:$0xf]
  %v398 = vld [vmem:[%s1 + $0x74] sm:$0xf]
  %v399 = vld [vmem:[%s1 + $0x78] sm:$0xf]
  %v400 = vld [vmem:[%s1 + $0x7c] sm:$0xf]
  %v401 = vld [vmem:[%s1 + $0x80] sm:$0xf]
  %v402 = vld [vmem:[%s1 + $0x84] sm:$0xf]
  %v403 = vld [vmem:[%s1 + $0x88] sm:$0xf]
  %v404 = vld [vmem:[%s1 + $0x8c] sm:$0xf]
  %v405 = vld [vmem:[%s1 + $0x90] sm:$0xf]
  %v406 = vld [vmem:[%s1 + $0x94] sm:$0xf]
  %v407 = vld [vmem:[%s1 + $0x98] sm:$0xf]
  %v408 = vld [vmem:[%s1 + $0x9c] sm:$0xf]
  %v409 = vld [vmem:[%s1 + $0xa0] sm:$0xf]
  %v410 = vld [vmem:[%s1 + $0xa4] sm:$0xf]
  %v411 = vld [vmem:[%s1 + $0xa8] sm:$0xf]
  %v412 = vld [vmem:[%s1 + $0xac] sm:$0xf]
  %v413 = vld [vmem:[%s1 + $0xb0] sm:$0xf]
  %v414 = vld [vmem:[%s1 + $0xb4] sm:$0xf]
  %v415 = vld [vmem:[%s1 + $0xb8] sm:$0xf]
  %v416 = vld [vmem:[%s1 + $0xbc] sm:$0xf]
  %v417 = vld [vmem:[%s1 + $0xc0] sm:$0xf]
  %v418 = vld [vmem:[%s1 + $0xc4] sm:$0xf]
  %v419 = vld [vmem:[%s1 + $0xc8] sm:$0xf]
  %v420 = vld [vmem:[%s1 + $0xcc] sm:$0xf]
  %v421 = vld [vmem:[%s1 + $0xd0] sm:$0xf]
  %v422 = vld [vmem:[%s1 + $0xd4] sm:$0xf]
  %v423 = vld [vmem:[%s1 + $0xd8] sm:$0xf]
  %v424 = vld [vmem:[%s1 + $0xdc] sm:$0xf]
  %v425 = vld [vmem:[%s1 + $0xe0] sm:$0xf]
  %v426 = vld [vmem:[%s1 + $0xe4] sm:$0xf]
  %v427 = vld [vmem:[%s1 + $0xe8] sm:$0xf]
  %v428 = vld [vmem:[%s1 + $0xec] sm:$0xf]
  %v429 = vld [vmem:[%s1 + $0xf0] sm:$0xf]
  %v430 = vld [vmem:[%s1 + $0xf4] sm:$0xf]
  %v431 = vld [vmem:[%s1 + $0xf8] sm:$0xf]
  %v432 = vld [vmem:[%s1 + $0xfc] sm:$0xf]
  %v433 = vld [vmem:[%s1 + $0x100] sm:$0xf]
  %v434 = vld [vmem:[%s1 + $0x104] sm:$0xf]
  %v435 = vld [vmem:[%s1 + $0x108] sm:$0xf]
  %v436 = vld [vmem:[%s1 + $0x10c] sm:$0xf]
  %v437 = vld [vmem:[%s1 + $0x110] sm:$0xf]
  %v438 = vld [vmem:[%s1 + $0x114] sm:$0xf]
  %v439 = vld [vmem:[%s1 + $0x118] sm:$0xf]
  %v440 = vld [vmem:[%s1 + $0x11c] sm:$0xf]
  %v441 = vld [vmem:[%s1 + $0x120] sm:$0xf]
  %v442 = vld [vmem:[%s1 + $0x124] sm:$0xf]
  %v443 = vld [vmem:[%s1 + $0x128] sm:$0xf]
  %v444 = vld [vmem:[%s1 + $0x12c] sm:$0xf]
  %v445 = vld [vmem:[%s1 + $0x130] sm:$0xf]
  %v446 = vld [vmem:[%s1 + $0x134] sm:$0xf]
  %v447 = vld [vmem:[%s1 + $0x138] sm:$0xf]
  %v448 = vld [vmem:[%s1 + $0x13c] sm:$0xf]
  %v449 = vld [vmem:[%s1 + $0x140] sm:$0xf]
  %v450 = vld [vmem:[%s1 + $0x144] sm:$0xf]
  %v451 = vld [vmem:[%s1 + $0x148] sm:$0xf]
  %v452 = vld [vmem:[%s1 + $0x14c] sm:$0xf]
  %v453 = vld [vmem:[%s1 + $0x150] sm:$0xf]
  %v454 = vld [vmem:[%s1 + $0x154] sm:$0xf]
  %v455 = vld [vmem:[%s1 + $0x158] sm:$0xf]
  %v456 = vld [vmem:[%s1 + $0x15c] sm:$0xf]
  %v457 = vld [vmem:[%s1 + $0x160] sm:$0xf]
  %v458 = vld [vmem:[%s1 + $0x164] sm:$0xf]
  %v459 = vld [vmem:[%s1 + $0x168] sm:$0xf]
  %v460 = vld [vmem:[%s1 + $0x16c] sm:$0xf]
  %v461 = vld [vmem:[%s1 + $0x170] sm:$0xf]
  %v462 = vld [vmem:[%s1 + $0x174] sm:$0xf]
  %v463 = vld [vmem:[%s1 + $0x178] sm:$0xf]
  %v464 = vld [vmem:[%s1 + $0x17c] sm:$0xf]
  %v465 = vld [vmem:[%s1 + $0x180] sm:$0xf]
  %v466 = vld [vmem:[%s1 + $0x184] sm:$0xf]
  %v467 = vld [vmem:[%s2] sm:$0x1]
  %v469 = vlaneseq
  %v470 = vshrl.u32 %v469, 7
  %v471 = vsub.s32 0, %v470
  %v472 = vrot.slane %v467, %v471
  %v572 = vunpack.c.l.b16 %v369
  %v573 = vunpack.c.l.b16 %v370
  %v574 = vunpack.c.l.b16 %v371
  %v575 = vunpack.c.l.b16 %v372
  %v576 = vunpack.c.l.b16 %v373
  %v577 = vunpack.c.l.b16 %v374
  %v578 = vunpack.c.l.b16 %v375
  %v579 = vunpack.c.l.b16 %v376
  %v580 = vunpack.c.l.b16 %v377
  %v581 = vunpack.c.l.b16 %v378
  %v582 = vunpack.c.l.b16 %v379
  %v583 = vunpack.c.l.b16 %v380
  %v584 = vunpack.c.l.b16 %v381
  %v585 = vunpack.c.l.b16 %v382
  %v586 = vunpack.c.l.b16 %v383
  %v587 = vunpack.c.l.b16 %v384
  %v588 = vunpack.c.l.b16 %v385
  %v589 = vunpack.c.l.b16 %v386
  %v590 = vunpack.c.l.b16 %v387
  %v591 = vunpack.c.l.b16 %v388
  %v592 = vunpack.c.l.b16 %v389
  %v593 = vunpack.c.l.b16 %v390
  %v594 = vunpack.c.l.b16 %v391
  %v595 = vunpack.c.l.b16 %v392
  %v596 = vunpack.c.l.b16 %v393
  %v597 = vunpack.c.l.b16 %v394
  %v598 = vunpack.c.l.b16 %v395
  %v599 = vunpack.c.l.b16 %v396
  %v600 = vunpack.c.l.b16 %v397
  %v601 = vunpack.c.l.b16 %v398
  %v602 = vunpack.c.l.b16 %v399
  %v603 = vunpack.c.l.b16 %v400
  %v604 = vunpack.c.l.b16 %v401
  %v605 = vunpack.c.l.b16 %v402
  %v606 = vunpack.c.l.b16 %v403
  %v607 = vunpack.c.l.b16 %v404
  %v608 = vunpack.c.l.b16 %v405
  %v609 = vunpack.c.l.b16 %v406
  %v610 = vunpack.c.l.b16 %v407
  %v611 = vunpack.c.l.b16 %v408
  %v612 = vunpack.c.l.b16 %v409
  %v613 = vunpack.c.l.b16 %v410
  %v614 = vunpack.c.l.b16 %v411
  %v615 = vunpack.c.l.b16 %v412
  %v616 = vunpack.c.l.b16 %v413
  %v617 = vunpack.c.l.b16 %v414
  %v618 = vunpack.c.l.b16 %v415
  %v619 = vunpack.c.l.b16 %v416
  %v620 = vunpack.c.l.b16 %v417
  %v621 = vunpack.c.l.b16 %v418
  %v622 = vunpack.c.l.b16 %v419
  %v623 = vunpack.c.l.b16 %v420
  %v624 = vunpack.c.l.b16 %v421
  %v625 = vunpack.c.l.b16 %v422
  %v626 = vunpack.c.l.b16 %v423
  %v627 = vunpack.c.l.b16 %v424
  %v628 = vunpack.c.l.b16 %v425
  %v629 = vunpack.c.l.b16 %v426
  %v630 = vunpack.c.l.b16 %v427
  %v631 = vunpack.c.l.b16 %v428
  %v632 = vunpack.c.l.b16 %v429
  %v633 = vunpack.c.l.b16 %v430
  %v634 = vunpack.c.l.b16 %v431
  %v635 = vunpack.c.l.b16 %v432
  %v636 = vunpack.c.l.b16 %v433
  %v637 = vunpack.c.l.b16 %v434
  %v638 = vunpack.c.l.b16 %v435
  %v639 = vunpack.c.l.b16 %v436
  %v640 = vunpack.c.l.b16 %v437
  %v641 = vunpack.c.l.b16 %v438
  %v642 = vunpack.c.l.b16 %v439
  %v643 = vunpack.c.l.b16 %v440
  %v644 = vunpack.c.l.b16 %v441
  %v645 = vunpack.c.l.b16 %v442
  %v646 = vunpack.c.l.b16 %v443
  %v647 = vunpack.c.l.b16 %v444
  %v648 = vunpack.c.l.b16 %v445
  %v649 = vunpack.c.l.b16 %v446
  %v650 = vunpack.c.l.b16 %v447
  %v651 = vunpack.c.l.b16 %v448
  %v652 = vunpack.c.l.b16 %v449
  %v653 = vunpack.c.l.b16 %v450
  %v654 = vunpack.c.l.b16 %v451
  %v655 = vunpack.c.l.b16 %v452
  %v656 = vunpack.c.l.b16 %v453
  %v657 = vunpack.c.l.b16 %v454
  %v658 = vunpack.c.l.b16 %v455
  %v659 = vunpack.c.l.b16 %v456
  %v660 = vunpack.c.l.b16 %v457
  %v661 = vunpack.c.l.b16 %v458
  %v662 = vunpack.c.l.b16 %v459
  %v663 = vunpack.c.l.b16 %v460
  %v664 = vunpack.c.l.b16 %v461
  %v665 = vunpack.c.l.b16 %v462
  %v666 = vunpack.c.l.b16 %v463
  %v667 = vunpack.c.l.b16 %v464
  %v668 = vunpack.c.l.b16 %v465
  %v669 = vunpack.c.l.b16 %v466
  %v670 = vpack.c.b16 %v573, %v572
  %v671 = vpack.c.b16 %v575, %v574
  %v672 = vpack.c.b16 %v577, %v576
  %v673 = vpack.c.b16 %v579, %v578
  %v674 = vpack.c.b16 %v581, %v580
  %v675 = vpack.c.b16 %v583, %v582
  %v676 = vpack.c.b16 %v585, %v584
  %v677 = vpack.c.b16 %v587, %v586
  %v678 = vpack.c.b16 %v589, %v588
  %v679 = vpack.c.b16 %v591, %v590
  %v680 = vpack.c.b16 %v593, %v592
  %v681 = vpack.c.b16 %v595, %v594
  %v682 = vpack.c.b16 %v597, %v596
  %v683 = vpack.c.b16 %v599, %v598
  %v684 = vpack.c.b16 %v601, %v600
  %v685 = vpack.c.b16 %v603, %v602
  %v686 = vpack.c.b16 %v605, %v604
  %v687 = vpack.c.b16 %v607, %v606
  %v688 = vpack.c.b16 %v609, %v608
  %v689 = vpack.c.b16 %v611, %v610
  %v690 = vpack.c.b16 %v613, %v612
  %v691 = vpack.c.b16 %v615, %v614
  %v692 = vpack.c.b16 %v617, %v616
  %v693 = vpack.c.b16 %v619, %v618
  %v694 = vpack.c.b16 %v621, %v620
  %v695 = vpack.c.b16 %v623, %v622
  %v696 = vpack.c.b16 %v625, %v624
  %v697 = vpack.c.b16 %v627, %v626
  %v698 = vpack.c.b16 %v629, %v628
  %v699 = vpack.c.b16 %v631, %v630
  %v700 = vpack.c.b16 %v633, %v632
  %v701 = vpack.c.b16 %v635, %v634
  %v702 = vpack.c.b16 %v637, %v636
  %v703 = vpack.c.b16 %v639, %v638
  %v704 = vpack.c.b16 %v641, %v640
  %v705 = vpack.c.b16 %v643, %v642
  %v706 = vpack.c.b16 %v645, %v644
  %v707 = vpack.c.b16 %v647, %v646
  %v708 = vpack.c.b16 %v649, %v648
  %v709 = vpack.c.b16 %v651, %v650
  %v710 = vpack.c.b16 %v653, %v652
  %v711 = vpack.c.b16 %v655, %v654
  %v712 = vpack.c.b16 %v657, %v656
  %v713 = vpack.c.b16 %v659, %v658
  %v714 = vpack.c.b16 %v661, %v660
  %v715 = vpack.c.b16 %v663, %v662
  %v716 = vpack.c.b16 %v665, %v664
  %v717 = vpack.c.b16 %v667, %v666
  %v718 = vpack.c.b16 %v669, %v668
  %vm768 = vcmask 130048
  %v770 = vsel %vm768, %v263, 0
  %v773 = vsel %vm768, %v270, 0
  %v776 = vsel %vm768, %v277, 0
  %v779 = vsel %vm768, %v284, 0
  %v782 = vsel %vm768, %v291, 0
  %v785 = vsel %vm768, %v298, 0
  %v788 = vsel %vm768, %v305, 0
  %v791 = vsel %vm768, %v312, 0
  %v794 = vsel %vm768, %v319, 0
  %v797 = vsel %vm768, %v326, 0
  %v800 = vsel %vm768, %v333, 0
  %v803 = vsel %vm768, %v340, 0
  %v806 = vsel %vm768, %v347, 0
  %v809 = vsel %vm768, %v354, 0
  %v812 = vsel %vm768, %v361, 0
  %v815 = vsel %vm768, %v368, 0
  %817 = vmatprep.subr.bf16.mxu0 0
  %818 = vmatpush1.bf16.msra.mxu0 %v677
  %819 = vmatprep.subr.bf16.mxu0 0
  %820 = vmatpush1.bf16.msra.mxu0 %v676
  %821 = vmatprep.subr.bf16.mxu0 0
  %822 = vmatpush1.bf16.msra.mxu0 %v675
  %823 = vmatprep.subr.bf16.mxu0 0
  %824 = vmatpush1.bf16.msra.mxu0 %v674
  %825 = vmatprep.subr.bf16.mxu0 0
  %826 = vmatpush1.bf16.msra.mxu0 %v673
  %827 = vmatprep.subr.bf16.mxu0 0
  %828 = vmatpush1.bf16.msra.mxu0 %v672
  %829 = vmatprep.subr.bf16.mxu0 0
  %830 = vmatpush1.bf16.msra.mxu0 %v671
  %831 = vmatprep.subr.bf16.mxu0 0
  %832 = vmatpush1.bf16.msra.mxu0 %v670
  %833 = vmatprep.subr.bf16.mxu0 0
  %834 = vmatpush2.bf16.msra.mxu0 %v685
  %835 = vmatprep.subr.bf16.mxu0 0
  %836 = vmatpush2.bf16.msra.mxu0 %v684
  %837 = vmatprep.subr.bf16.mxu0 0
  %838 = vmatpush2.bf16.msra.mxu0 %v683
  %839 = vmatprep.subr.bf16.mxu0 0
  %840 = vmatpush2.bf16.msra.mxu0 %v682
  %841 = vmatprep.subr.bf16.mxu0 0
  %842 = vmatpush2.bf16.msra.mxu0 %v681
  %843 = vmatprep.subr.bf16.mxu0 0
  %844 = vmatpush2.bf16.msra.mxu0 %v680
  %845 = vmatprep.subr.bf16.mxu0 0
  %846 = vmatpush2.bf16.msra.mxu0 %v679
  %847 = vmatprep.subr.bf16.mxu0 0
  %848 = vmatpush2.bf16.msra.mxu0 %v678
  %849 = vmatprep.mubr.bf16.mxu0 %v258
  %850 = vmatmul.mubr.bf16.gmra.mxu0 %v257
  %v851 = vpop.f32.mrf.mxu0
  %v852 = vadd.f32 %v472, %v851
  %v853 = vpop.f32.mrf.mxu0
  %v854 = vpop.f32.mrf.mxu0
  %v855 = vadd.f32 %v472, %v854
  %v856 = vpop.f32.mrf.mxu0
  %857 = vmatprep.mubr.bf16.mxu0 %v265
  %858 = vmatmul.mubr.bf16.gmra.mxu0 %v264
  %v859 = vpop.f32.mrf.mxu0
  %v860 = vadd.f32 %v472, %v859
  %v861 = vpop.f32.mrf.mxu0
  %v862 = vpop.f32.mrf.mxu0
  %v863 = vadd.f32 %v472, %v862
  %v864 = vpop.f32.mrf.mxu0
  %865 = vmatprep.mubr.bf16.mxu0 %v272
  %866 = vmatmul.mubr.bf16.gmra.mxu0 %v271
  %v867 = vpop.f32.mrf.mxu0
  %v868 = vadd.f32 %v472, %v867
  %v869 = vpop.f32.mrf.mxu0
  %v870 = vpop.f32.mrf.mxu0
  %v871 = vadd.f32 %v472, %v870
  %v872 = vpop.f32.mrf.mxu0
  %873 = vmatprep.mubr.bf16.mxu0 %v279
  %874 = vmatmul.mubr.bf16.gmra.mxu0 %v278
  %v875 = vpop.f32.mrf.mxu0
  %v876 = vadd.f32 %v472, %v875
  %v877 = vpop.f32.mrf.mxu0
  %v878 = vpop.f32.mrf.mxu0
  %v879 = vadd.f32 %v472, %v878
  %v880 = vpop.f32.mrf.mxu0
  %881 = vmatprep.mubr.bf16.mxu0 %v286
  %882 = vmatmul.mubr.bf16.gmra.mxu0 %v285
  %v883 = vpop.f32.mrf.mxu0
  %v884 = vadd.f32 %v472, %v883
  %v885 = vpop.f32.mrf.mxu0
  %v886 = vpop.f32.mrf.mxu0
  %v887 = vadd.f32 %v472, %v886
  %v888 = vpop.f32.mrf.mxu0
  %889 = vmatprep.mubr.bf16.mxu0 %v293
  %890 = vmatmul.mubr.bf16.gmra.mxu0 %v292
  %v891 = vpop.f32.mrf.mxu0
  %v892 = vadd.f32 %v472, %v891
  %v893 = vpop.f32.mrf.mxu0
  %v894 = vpop.f32.mrf.mxu0
  %v895 = vadd.f32 %v472, %v894
  %v896 = vpop.f32.mrf.mxu0
  %897 = vmatprep.mubr.bf16.mxu0 %v300
  %898 = vmatmul.mubr.bf16.gmra.mxu0 %v299
  %v899 = vpop.f32.mrf.mxu0
  %v900 = vadd.f32 %v472, %v899
  %v901 = vpop.f32.mrf.mxu0
  %v902 = vpop.f32.mrf.mxu0
  %v903 = vadd.f32 %v472, %v902
  %v904 = vpop.f32.mrf.mxu0
  %905 = vmatprep.mubr.bf16.mxu0 %v307
  %906 = vmatmul.mubr.bf16.gmra.mxu0 %v306
  %v907 = vpop.f32.mrf.mxu0
  %v908 = vadd.f32 %v472, %v907
  %v909 = vpop.f32.mrf.mxu0
  %v910 = vpop.f32.mrf.mxu0
  %v911 = vadd.f32 %v472, %v910
  %v912 = vpop.f32.mrf.mxu0
  %913 = vmatprep.mubr.bf16.mxu0 %v314
  %914 = vmatmul.mubr.bf16.gmra.mxu0 %v313
  %v915 = vpop.f32.mrf.mxu0
  %v916 = vadd.f32 %v472, %v915
  %v917 = vpop.f32.mrf.mxu0
  %v918 = vpop.f32.mrf.mxu0
  %v919 = vadd.f32 %v472, %v918
  %v920 = vpop.f32.mrf.mxu0
  %921 = vmatprep.mubr.bf16.mxu0 %v321
  %922 = vmatmul.mubr.bf16.gmra.mxu0 %v320
  %v923 = vpop.f32.mrf.mxu0
  %v924 = vadd.f32 %v472, %v923
  %v925 = vpop.f32.mrf.mxu0
  %v926 = vpop.f32.mrf.mxu0
  %v927 = vadd.f32 %v472, %v926
  %v928 = vpop.f32.mrf.mxu0
  %929 = vmatprep.mubr.bf16.mxu0 %v328
  %930 = vmatmul.mubr.bf16.gmra.mxu0 %v327
  %v931 = vpop.f32.mrf.mxu0
  %v932 = vadd.f32 %v472, %v931
  %v933 = vpop.f32.mrf.mxu0
  %v934 = vpop.f32.mrf.mxu0
  %v935 = vadd.f32 %v472, %v934
  %v936 = vpop.f32.mrf.mxu0
  %937 = vmatprep.mubr.bf16.mxu0 %v335
  %938 = vmatmul.mubr.bf16.gmra.mxu0 %v334
  %v939 = vpop.f32.mrf.mxu0
  %v940 = vadd.f32 %v472, %v939
  %v941 = vpop.f32.mrf.mxu0
  %v942 = vpop.f32.mrf.mxu0
  %v943 = vadd.f32 %v472, %v942
  %v944 = vpop.f32.mrf.mxu0
  %945 = vmatprep.mubr.bf16.mxu0 %v342
  %946 = vmatmul.mubr.bf16.gmra.mxu0 %v341
  %v947 = vpop.f32.mrf.mxu0
  %v948 = vadd.f32 %v472, %v947
  %v949 = vpop.f32.mrf.mxu0
  %v950 = vpop.f32.mrf.mxu0
  %v951 = vadd.f32 %v472, %v950
  %v952 = vpop.f32.mrf.mxu0
  %953 = vmatprep.mubr.bf16.mxu0 %v349
  %954 = vmatmul.mubr.bf16.gmra.mxu0 %v348
  %v955 = vpop.f32.mrf.mxu0
  %v956 = vadd.f32 %v472, %v955
  %v957 = vpop.f32.mrf.mxu0
  %v958 = vpop.f32.mrf.mxu0
  %v959 = vadd.f32 %v472, %v958
  %v960 = vpop.f32.mrf.mxu0
  %961 = vmatprep.mubr.bf16.mxu0 %v356
  %962 = vmatmul.mubr.bf16.gmra.mxu0 %v355
  %v963 = vpop.f32.mrf.mxu0
  %v964 = vadd.f32 %v472, %v963
  %v965 = vpop.f32.mrf.mxu0
  %v966 = vpop.f32.mrf.mxu0
  %v967 = vadd.f32 %v472, %v966
  %v968 = vpop.f32.mrf.mxu0
  %969 = vmatprep.mubr.bf16.mxu0 %v363
  %970 = vmatmul.mubr.bf16.gmra.mxu0 %v362
  %v971 = vpop.f32.mrf.mxu0
  %v972 = vadd.f32 %v472, %v971
  %v973 = vpop.f32.mrf.mxu0
  %v974 = vpop.f32.mrf.mxu0
  %v975 = vadd.f32 %v472, %v974
  %v976 = vpop.f32.mrf.mxu0
  %977 = vdwg.mxu0
  %978 = vmatprep.subr.bf16.mxu0 0
  %979 = vmatpush1.bf16.msra.mxu0 %v693
  %980 = vmatprep.subr.bf16.mxu0 0
  %981 = vmatpush1.bf16.msra.mxu0 %v692
  %982 = vmatprep.subr.bf16.mxu0 0
  %983 = vmatpush1.bf16.msra.mxu0 %v691
  %984 = vmatprep.subr.bf16.mxu0 0
  %985 = vmatpush1.bf16.msra.mxu0 %v690
  %986 = vmatprep.subr.bf16.mxu0 0
  %987 = vmatpush1.bf16.msra.mxu0 %v689
  %988 = vmatprep.subr.bf16.mxu0 0
  %989 = vmatpush1.bf16.msra.mxu0 %v688
  %990 = vmatprep.subr.bf16.mxu0 0
  %991 = vmatpush1.bf16.msra.mxu0 %v687
  %992 = vmatprep.subr.bf16.mxu0 0
  %993 = vmatpush1.bf16.msra.mxu0 %v686
  %994 = vmatprep.subr.bf16.mxu0 0
  %995 = vmatpush2.bf16.msra.mxu0 %v701
  %996 = vmatprep.subr.bf16.mxu0 0
  %997 = vmatpush2.bf16.msra.mxu0 %v700
  %998 = vmatprep.subr.bf16.mxu0 0
  %999 = vmatpush2.bf16.msra.mxu0 %v699
  %1000 = vmatprep.subr.bf16.mxu0 0
  %1001 = vmatpush2.bf16.msra.mxu0 %v698
  %1002 = vmatprep.subr.bf16.mxu0 0
  %1003 = vmatpush2.bf16.msra.mxu0 %v697
  %1004 = vmatprep.subr.bf16.mxu0 0
  %1005 = vmatpush2.bf16.msra.mxu0 %v696
  %1006 = vmatprep.subr.bf16.mxu0 0
  %1007 = vmatpush2.bf16.msra.mxu0 %v695
  %1008 = vmatprep.subr.bf16.mxu0 0
  %1009 = vmatpush2.bf16.msra.mxu0 %v694
  %1010 = vmatprep.mubr.bf16.mxu0 %v260
  %1011 = vmatmul.mubr.bf16.gmra.mxu0 %v259
  %v1012 = vpop.f32.mrf.mxu0
  %v1013 = vadd.f32 %v852, %v1012
  %v1014 = vpop.f32.mrf.mxu0
  %v1015 = vpop.f32.mrf.mxu0
  %v1016 = vadd.f32 %v855, %v1015
  %v1017 = vpop.f32.mrf.mxu0
  %1018 = vmatprep.mubr.bf16.mxu0 %v267
  %1019 = vmatmul.mubr.bf16.gmra.mxu0 %v266
  %v1020 = vpop.f32.mrf.mxu0
  %v1021 = vadd.f32 %v860, %v1020
  %v1022 = vpop.f32.mrf.mxu0
  %v1023 = vpop.f32.mrf.mxu0
  %v1024 = vadd.f32 %v863, %v1023
  %v1025 = vpop.f32.mrf.mxu0
  %1026 = vmatprep.mubr.bf16.mxu0 %v274
  %1027 = vmatmul.mubr.bf16.gmra.mxu0 %v273
  %v1028 = vpop.f32.mrf.mxu0
  %v1029 = vadd.f32 %v868, %v1028
  %v1030 = vpop.f32.mrf.mxu0
  %v1031 = vpop.f32.mrf.mxu0
  %v1032 = vadd.f32 %v871, %v1031
  %v1033 = vpop.f32.mrf.mxu0
  %1034 = vmatprep.mubr.bf16.mxu0 %v281
  %1035 = vmatmul.mubr.bf16.gmra.mxu0 %v280
  %v1036 = vpop.f32.mrf.mxu0
  %v1037 = vadd.f32 %v876, %v1036
  %v1038 = vpop.f32.mrf.mxu0
  %v1039 = vpop.f32.mrf.mxu0
  %v1040 = vadd.f32 %v879, %v1039
  %v1041 = vpop.f32.mrf.mxu0
  %1042 = vmatprep.mubr.bf16.mxu0 %v288
  %1043 = vmatmul.mubr.bf16.gmra.mxu0 %v287
  %v1044 = vpop.f32.mrf.mxu0
  %v1045 = vadd.f32 %v884, %v1044
  %v1046 = vpop.f32.mrf.mxu0
  %v1047 = vpop.f32.mrf.mxu0
  %v1048 = vadd.f32 %v887, %v1047
  %v1049 = vpop.f32.mrf.mxu0
  %1050 = vmatprep.mubr.bf16.mxu0 %v295
  %1051 = vmatmul.mubr.bf16.gmra.mxu0 %v294
  %v1052 = vpop.f32.mrf.mxu0
  %v1053 = vadd.f32 %v892, %v1052
  %v1054 = vpop.f32.mrf.mxu0
  %v1055 = vpop.f32.mrf.mxu0
  %v1056 = vadd.f32 %v895, %v1055
  %v1057 = vpop.f32.mrf.mxu0
  %1058 = vmatprep.mubr.bf16.mxu0 %v302
  %1059 = vmatmul.mubr.bf16.gmra.mxu0 %v301
  %v1060 = vpop.f32.mrf.mxu0
  %v1061 = vadd.f32 %v900, %v1060
  %v1062 = vpop.f32.mrf.mxu0
  %v1063 = vpop.f32.mrf.mxu0
  %v1064 = vadd.f32 %v903, %v1063
  %v1065 = vpop.f32.mrf.mxu0
  %1066 = vmatprep.mubr.bf16.mxu0 %v309
  %1067 = vmatmul.mubr.bf16.gmra.mxu0 %v308
  %v1068 = vpop.f32.mrf.mxu0
  %v1069 = vadd.f32 %v908, %v1068
  %v1070 = vpop.f32.mrf.mxu0
  %v1071 = vpop.f32.mrf.mxu0
  %v1072 = vadd.f32 %v911, %v1071
  %v1073 = vpop.f32.mrf.mxu0
  %1074 = vmatprep.mubr.bf16.mxu0 %v316
  %1075 = vmatmul.mubr.bf16.gmra.mxu0 %v315
  %v1076 = vpop.f32.mrf.mxu0
  %v1077 = vadd.f32 %v916, %v1076
  %v1078 = vpop.f32.mrf.mxu0
  %v1079 = vpop.f32.mrf.mxu0
  %v1080 = vadd.f32 %v919, %v1079
  %v1081 = vpop.f32.mrf.mxu0
  %1082 = vmatprep.mubr.bf16.mxu0 %v323
  %1083 = vmatmul.mubr.bf16.gmra.mxu0 %v322
  %v1084 = vpop.f32.mrf.mxu0
  %v1085 = vadd.f32 %v924, %v1084
  %v1086 = vpop.f32.mrf.mxu0
  %v1087 = vpop.f32.mrf.mxu0
  %v1088 = vadd.f32 %v927, %v1087
  %v1089 = vpop.f32.mrf.mxu0
  %1090 = vmatprep.mubr.bf16.mxu0 %v330
  %1091 = vmatmul.mubr.bf16.gmra.mxu0 %v329
  %v1092 = vpop.f32.mrf.mxu0
  %v1093 = vadd.f32 %v932, %v1092
  %v1094 = vpop.f32.mrf.mxu0
  %v1095 = vpop.f32.mrf.mxu0
  %v1096 = vadd.f32 %v935, %v1095
  %v1097 = vpop.f32.mrf.mxu0
  %1098 = vmatprep.mubr.bf16.mxu0 %v337
  %1099 = vmatmul.mubr.bf16.gmra.mxu0 %v336
  %v1100 = vpop.f32.mrf.mxu0
  %v1101 = vadd.f32 %v940, %v1100
  %v1102 = vpop.f32.mrf.mxu0
  %v1103 = vpop.f32.mrf.mxu0
  %v1104 = vadd.f32 %v943, %v1103
  %v1105 = vpop.f32.mrf.mxu0
  %1106 = vmatprep.mubr.bf16.mxu0 %v344
  %1107 = vmatmul.mubr.bf16.gmra.mxu0 %v343
  %v1108 = vpop.f32.mrf.mxu0
  %v1109 = vadd.f32 %v948, %v1108
  %v1110 = vpop.f32.mrf.mxu0
  %v1111 = vpop.f32.mrf.mxu0
  %v1112 = vadd.f32 %v951, %v1111
  %v1113 = vpop.f32.mrf.mxu0
  %1114 = vmatprep.mubr.bf16.mxu0 %v351
  %1115 = vmatmul.mubr.bf16.gmra.mxu0 %v350
  %v1116 = vpop.f32.mrf.mxu0
  %v1117 = vadd.f32 %v956, %v1116
  %v1118 = vpop.f32.mrf.mxu0
  %v1119 = vpop.f32.mrf.mxu0
  %v1120 = vadd.f32 %v959, %v1119
  %v1121 = vpop.f32.mrf.mxu0
  %1122 = vmatprep.mubr.bf16.mxu0 %v358
  %1123 = vmatmul.mubr.bf16.gmra.mxu0 %v357
  %v1124 = vpop.f32.mrf.mxu0
  %v1125 = vadd.f32 %v964, %v1124
  %v1126 = vpop.f32.mrf.mxu0
  %v1127 = vpop.f32.mrf.mxu0
  %v1128 = vadd.f32 %v967, %v1127
  %v1129 = vpop.f32.mrf.mxu0
  %1130 = vmatprep.mubr.bf16.mxu0 %v365
  %1131 = vmatmul.mubr.bf16.gmra.mxu0 %v364
  %v1132 = vpop.f32.mrf.mxu0
  %v1133 = vadd.f32 %v972, %v1132
  %v1134 = vpop.f32.mrf.mxu0
  %v1135 = vpop.f32.mrf.mxu0
  %v1136 = vadd.f32 %v975, %v1135
  %v1137 = vpop.f32.mrf.mxu0
  %1138 = vdwg.mxu0
  %1139 = vmatprep.subr.bf16.mxu0 0
  %1140 = vmatpush1.bf16.msra.mxu0 %v709
  %1141 = vmatprep.subr.bf16.mxu0 0
  %1142 = vmatpush1.bf16.msra.mxu0 %v708
  %1143 = vmatprep.subr.bf16.mxu0 0
  %1144 = vmatpush1.bf16.msra.mxu0 %v707
  %1145 = vmatprep.subr.bf16.mxu0 0
  %1146 = vmatpush1.bf16.msra.mxu0 %v706
  %1147 = vmatprep.subr.bf16.mxu0 0
  %1148 = vmatpush1.bf16.msra.mxu0 %v705
  %1149 = vmatprep.subr.bf16.mxu0 0
  %1150 = vmatpush1.bf16.msra.mxu0 %v704
  %1151 = vmatprep.subr.bf16.mxu0 0
  %1152 = vmatpush1.bf16.msra.mxu0 %v703
  %1153 = vmatprep.subr.bf16.mxu0 0
  %1154 = vmatpush1.bf16.msra.mxu0 %v702
  %1155 = vmatprep.subr.bf16.mxu0 0
  %1156 = vmatpush2.bf16.msra.mxu0 %v717
  %1157 = vmatprep.subr.bf16.mxu0 0
  %1158 = vmatpush2.bf16.msra.mxu0 %v716
  %1159 = vmatprep.subr.bf16.mxu0 0
  %1160 = vmatpush2.bf16.msra.mxu0 %v715
  %1161 = vmatprep.subr.bf16.mxu0 0
  %1162 = vmatpush2.bf16.msra.mxu0 %v714
  %1163 = vmatprep.subr.bf16.mxu0 0
  %1164 = vmatpush2.bf16.msra.mxu0 %v713
  %1165 = vmatprep.subr.bf16.mxu0 0
  %1166 = vmatpush2.bf16.msra.mxu0 %v712
  %1167 = vmatprep.subr.bf16.mxu0 0
  %1168 = vmatpush2.bf16.msra.mxu0 %v711
  %1169 = vmatprep.subr.bf16.mxu0 0
  %1170 = vmatpush2.bf16.msra.mxu0 %v710
  %1171 = vmatprep.mubr.bf16.mxu0 %v262
  %1172 = vmatmul.mubr.bf16.gmra.mxu0 %v261
  %v1173 = vpop.f32.mrf.mxu0
  %v1174 = vadd.f32 %v1013, %v1173
  %v1175 = vpop.f32.mrf.mxu0
  %v1176 = vpop.f32.mrf.mxu0
  %v1177 = vadd.f32 %v1016, %v1176
  %v1178 = vpop.f32.mrf.mxu0
  %1179 = vmatprep.mubr.bf16.mxu0 %v269
  %1180 = vmatmul.mubr.bf16.gmra.mxu0 %v268
  %v1181 = vpop.f32.mrf.mxu0
  %v1182 = vadd.f32 %v1021, %v1181
  %v1183 = vpop.f32.mrf.mxu0
  %v1184 = vpop.f32.mrf.mxu0
  %v1185 = vadd.f32 %v1024, %v1184
  %v1186 = vpop.f32.mrf.mxu0
  %1187 = vmatprep.mubr.bf16.mxu0 %v276
  %1188 = vmatmul.mubr.bf16.gmra.mxu0 %v275
  %v1189 = vpop.f32.mrf.mxu0
  %v1190 = vadd.f32 %v1029, %v1189
  %v1191 = vpop.f32.mrf.mxu0
  %v1192 = vpop.f32.mrf.mxu0
  %v1193 = vadd.f32 %v1032, %v1192
  %v1194 = vpop.f32.mrf.mxu0
  %1195 = vmatprep.mubr.bf16.mxu0 %v283
  %1196 = vmatmul.mubr.bf16.gmra.mxu0 %v282
  %v1197 = vpop.f32.mrf.mxu0
  %v1198 = vadd.f32 %v1037, %v1197
  %v1199 = vpop.f32.mrf.mxu0
  %v1200 = vpop.f32.mrf.mxu0
  %v1201 = vadd.f32 %v1040, %v1200
  %v1202 = vpop.f32.mrf.mxu0
  %1203 = vmatprep.mubr.bf16.mxu0 %v290
  %1204 = vmatmul.mubr.bf16.gmra.mxu0 %v289
  %v1205 = vpop.f32.mrf.mxu0
  %v1206 = vadd.f32 %v1045, %v1205
  %v1207 = vpop.f32.mrf.mxu0
  %v1208 = vpop.f32.mrf.mxu0
  %v1209 = vadd.f32 %v1048, %v1208
  %v1210 = vpop.f32.mrf.mxu0
  %1211 = vmatprep.mubr.bf16.mxu0 %v297
  %1212 = vmatmul.mubr.bf16.gmra.mxu0 %v296
  %v1213 = vpop.f32.mrf.mxu0
  %v1214 = vadd.f32 %v1053, %v1213
  %v1215 = vpop.f32.mrf.mxu0
  %v1216 = vpop.f32.mrf.mxu0
  %v1217 = vadd.f32 %v1056, %v1216
  %v1218 = vpop.f32.mrf.mxu0
  %1219 = vmatprep.mubr.bf16.mxu0 %v304
  %1220 = vmatmul.mubr.bf16.gmra.mxu0 %v303
  %v1221 = vpop.f32.mrf.mxu0
  %v1222 = vadd.f32 %v1061, %v1221
  %v1223 = vpop.f32.mrf.mxu0
  %v1224 = vpop.f32.mrf.mxu0
  %v1225 = vadd.f32 %v1064, %v1224
  %v1226 = vpop.f32.mrf.mxu0
  %1227 = vmatprep.mubr.bf16.mxu0 %v311
  %1228 = vmatmul.mubr.bf16.gmra.mxu0 %v310
  %v1229 = vpop.f32.mrf.mxu0
  %v1230 = vadd.f32 %v1069, %v1229
  %v1231 = vpop.f32.mrf.mxu0
  %v1232 = vpop.f32.mrf.mxu0
  %v1233 = vadd.f32 %v1072, %v1232
  %v1234 = vpop.f32.mrf.mxu0
  %1235 = vmatprep.mubr.bf16.mxu0 %v318
  %1236 = vmatmul.mubr.bf16.gmra.mxu0 %v317
  %v1237 = vpop.f32.mrf.mxu0
  %v1238 = vadd.f32 %v1077, %v1237
  %v1239 = vpop.f32.mrf.mxu0
  %v1240 = vpop.f32.mrf.mxu0
  %v1241 = vadd.f32 %v1080, %v1240
  %v1242 = vpop.f32.mrf.mxu0
  %1243 = vmatprep.mubr.bf16.mxu0 %v325
  %1244 = vmatmul.mubr.bf16.gmra.mxu0 %v324
  %v1245 = vpop.f32.mrf.mxu0
  %v1246 = vadd.f32 %v1085, %v1245
  %v1247 = vpop.f32.mrf.mxu0
  %v1248 = vpop.f32.mrf.mxu0
  %v1249 = vadd.f32 %v1088, %v1248
  %v1250 = vpop.f32.mrf.mxu0
  %1251 = vmatprep.mubr.bf16.mxu0 %v332
  %1252 = vmatmul.mubr.bf16.gmra.mxu0 %v331
  %v1253 = vpop.f32.mrf.mxu0
  %v1254 = vadd.f32 %v1093, %v1253
  %v1255 = vpop.f32.mrf.mxu0
  %v1256 = vpop.f32.mrf.mxu0
  %v1257 = vadd.f32 %v1096, %v1256
  %v1258 = vpop.f32.mrf.mxu0
  %1259 = vmatprep.mubr.bf16.mxu0 %v339
  %1260 = vmatmul.mubr.bf16.gmra.mxu0 %v338
  %v1261 = vpop.f32.mrf.mxu0
  %v1262 = vadd.f32 %v1101, %v1261
  %v1263 = vpop.f32.mrf.mxu0
  %v1264 = vpop.f32.mrf.mxu0
  %v1265 = vadd.f32 %v1104, %v1264
  %v1266 = vpop.f32.mrf.mxu0
  %1267 = vmatprep.mubr.bf16.mxu0 %v346
  %1268 = vmatmul.mubr.bf16.gmra.mxu0 %v345
  %v1269 = vpop.f32.mrf.mxu0
  %v1270 = vadd.f32 %v1109, %v1269
  %v1271 = vpop.f32.mrf.mxu0
  %v1272 = vpop.f32.mrf.mxu0
  %v1273 = vadd.f32 %v1112, %v1272
  %v1274 = vpop.f32.mrf.mxu0
  %1275 = vmatprep.mubr.bf16.mxu0 %v353
  %1276 = vmatmul.mubr.bf16.gmra.mxu0 %v352
  %v1277 = vpop.f32.mrf.mxu0
  %v1278 = vadd.f32 %v1117, %v1277
  %v1279 = vpop.f32.mrf.mxu0
  %v1280 = vpop.f32.mrf.mxu0
  %v1281 = vadd.f32 %v1120, %v1280
  %v1282 = vpop.f32.mrf.mxu0
  %1283 = vmatprep.mubr.bf16.mxu0 %v360
  %1284 = vmatmul.mubr.bf16.gmra.mxu0 %v359
  %v1285 = vpop.f32.mrf.mxu0
  %v1286 = vadd.f32 %v1125, %v1285
  %v1287 = vpop.f32.mrf.mxu0
  %v1288 = vpop.f32.mrf.mxu0
  %v1289 = vadd.f32 %v1128, %v1288
  %v1290 = vpop.f32.mrf.mxu0
  %1291 = vmatprep.mubr.bf16.mxu0 %v367
  %1292 = vmatmul.mubr.bf16.gmra.mxu0 %v366
  %v1293 = vpop.f32.mrf.mxu0
  %v1294 = vadd.f32 %v1133, %v1293
  %v1295 = vpop.f32.mrf.mxu0
  %v1296 = vpop.f32.mrf.mxu0
  %v1297 = vadd.f32 %v1136, %v1296
  %v1298 = vpop.f32.mrf.mxu0
  %1299 = vdwg.mxu0
  %1300 = vmatprep.subr.bf16.mxu0 0
  %1301 = vmatpush1.bf16.msra.mxu0 0
  %1302 = vmatprep.subr.bf16.mxu0 0
  %1303 = vmatpush1.bf16.msra.mxu0 0
  %1304 = vmatprep.subr.bf16.mxu0 0
  %1305 = vmatpush1.bf16.msra.mxu0 0
  %1306 = vmatprep.subr.bf16.mxu0 0
  %1307 = vmatpush1.bf16.msra.mxu0 0
  %1308 = vmatprep.subr.bf16.mxu0 0
  %1309 = vmatpush1.bf16.msra.mxu0 0
  %1310 = vmatprep.subr.bf16.mxu0 0
  %1311 = vmatpush1.bf16.msra.mxu0 0
  %1312 = vmatprep.subr.bf16.mxu0 0
  %1313 = vmatpush1.bf16.msra.mxu0 0
  %1314 = vmatprep.subr.bf16.mxu0 0
  %1315 = vmatpush1.bf16.msra.mxu0 %v718
  %1316 = vmatprep.subr.bf16.mxu0 0
  %1317 = vmatpush2.bf16.msra.mxu0 0
  %1318 = vmatprep.subr.bf16.mxu0 0
  %1319 = vmatpush2.bf16.msra.mxu0 0
  %1320 = vmatprep.subr.bf16.mxu0 0
  %1321 = vmatpush2.bf16.msra.mxu0 0
  %1322 = vmatprep.subr.bf16.mxu0 0
  %1323 = vmatpush2.bf16.msra.mxu0 0
  %1324 = vmatprep.subr.bf16.mxu0 0
  %1325 = vmatpush2.bf16.msra.mxu0 0
  %1326 = vmatprep.subr.bf16.mxu0 0
  %1327 = vmatpush2.bf16.msra.mxu0 0
  %1328 = vmatprep.subr.bf16.mxu0 0
  %1329 = vmatpush2.bf16.msra.mxu0 0
  %1330 = vmatprep.subr.bf16.mxu0 0
  %1331 = vmatpush2.bf16.msra.mxu0 0
  %1332 = vmatprep.mubr.bf16.mxu0 0
  %1333 = vmatmul.mubr.bf16.gmra.mxu0 %v770
  %v1334 = vpop.f32.mrf.mxu0
  %v1335 = vadd.f32 %v1174, %v1334
  %v1336 = vpop.f32.mrf.mxu0
  %v1337 = vpop.f32.mrf.mxu0
  %v1338 = vadd.f32 %v1177, %v1337
  %v1339 = vpop.f32.mrf.mxu0
  %1340 = vmatprep.mubr.bf16.mxu0 0
  %1341 = vmatmul.mubr.bf16.gmra.mxu0 %v773
  %v1342 = vpop.f32.mrf.mxu0
  %v1343 = vadd.f32 %v1182, %v1342
  %v1344 = vpop.f32.mrf.mxu0
  %v1345 = vpop.f32.mrf.mxu0
  %v1346 = vadd.f32 %v1185, %v1345
  %v1347 = vpop.f32.mrf.mxu0
  %1348 = vmatprep.mubr.bf16.mxu0 0
  %1349 = vmatmul.mubr.bf16.gmra.mxu0 %v776
  %v1350 = vpop.f32.mrf.mxu0
  %v1351 = vadd.f32 %v1190, %v1350
  %v1352 = vpop.f32.mrf.mxu0
  %v1353 = vpop.f32.mrf.mxu0
  %v1354 = vadd.f32 %v1193, %v1353
  %v1355 = vpop.f32.mrf.mxu0
  %1356 = vmatprep.mubr.bf16.mxu0 0
  %1357 = vmatmul.mubr.bf16.gmra.mxu0 %v779
  %v1358 = vpop.f32.mrf.mxu0
  %v1359 = vadd.f32 %v1198, %v1358
  %v1360 = vpop.f32.mrf.mxu0
  %v1361 = vpop.f32.mrf.mxu0
  %v1362 = vadd.f32 %v1201, %v1361
  %v1363 = vpop.f32.mrf.mxu0
  %1364 = vmatprep.mubr.bf16.mxu0 0
  %1365 = vmatmul.mubr.bf16.gmra.mxu0 %v782
  %v1366 = vpop.f32.mrf.mxu0
  %v1367 = vadd.f32 %v1206, %v1366
  %v1368 = vpop.f32.mrf.mxu0
  %v1369 = vpop.f32.mrf.mxu0
  %v1370 = vadd.f32 %v1209, %v1369
  %v1371 = vpop.f32.mrf.mxu0
  %1372 = vmatprep.mubr.bf16.mxu0 0
  %1373 = vmatmul.mubr.bf16.gmra.mxu0 %v785
  %v1374 = vpop.f32.mrf.mxu0
  %v1375 = vadd.f32 %v1214, %v1374
  %v1376 = vpop.f32.mrf.mxu0
  %v1377 = vpop.f32.mrf.mxu0
  %v1378 = vadd.f32 %v1217, %v1377
  %v1379 = vpop.f32.mrf.mxu0
  %1380 = vmatprep.mubr.bf16.mxu0 0
  %1381 = vmatmul.mubr.bf16.gmra.mxu0 %v788
  %v1382 = vpop.f32.mrf.mxu0
  %v1383 = vadd.f32 %v1222, %v1382
  %v1384 = vpop.f32.mrf.mxu0
  %v1385 = vpop.f32.mrf.mxu0
  %v1386 = vadd.f32 %v1225, %v1385
  %v1387 = vpop.f32.mrf.mxu0
  %1388 = vmatprep.mubr.bf16.mxu0 0
  %1389 = vmatmul.mubr.bf16.gmra.mxu0 %v791
  %v1390 = vpop.f32.mrf.mxu0
  %v1391 = vadd.f32 %v1230, %v1390
  %v1392 = vpop.f32.mrf.mxu0
  %v1393 = vpop.f32.mrf.mxu0
  %v1394 = vadd.f32 %v1233, %v1393
  %v1395 = vpop.f32.mrf.mxu0
  %1396 = vmatprep.mubr.bf16.mxu0 0
  %1397 = vmatmul.mubr.bf16.gmra.mxu0 %v794
  %v1398 = vpop.f32.mrf.mxu0
  %v1399 = vadd.f32 %v1238, %v1398
  %v1400 = vpop.f32.mrf.mxu0
  %v1401 = vpop.f32.mrf.mxu0
  %v1402 = vadd.f32 %v1241, %v1401
  %v1403 = vpop.f32.mrf.mxu0
  %1404 = vmatprep.mubr.bf16.mxu0 0
  %1405 = vmatmul.mubr.bf16.gmra.mxu0 %v797
  %v1406 = vpop.f32.mrf.mxu0
  %v1407 = vadd.f32 %v1246, %v1406
  %v1408 = vpop.f32.mrf.mxu0
  %v1409 = vpop.f32.mrf.mxu0
  %v1410 = vadd.f32 %v1249, %v1409
  %v1411 = vpop.f32.mrf.mxu0
  %1412 = vmatprep.mubr.bf16.mxu0 0
  %1413 = vmatmul.mubr.bf16.gmra.mxu0 %v800
  %v1414 = vpop.f32.mrf.mxu0
  %v1415 = vadd.f32 %v1254, %v1414
  %v1416 = vpop.f32.mrf.mxu0
  %v1417 = vpop.f32.mrf.mxu0
  %v1418 = vadd.f32 %v1257, %v1417
  %v1419 = vpop.f32.mrf.mxu0
  %1420 = vmatprep.mubr.bf16.mxu0 0
  %1421 = vmatmul.mubr.bf16.gmra.mxu0 %v803
  %v1422 = vpop.f32.mrf.mxu0
  %v1423 = vadd.f32 %v1262, %v1422
  %v1424 = vpop.f32.mrf.mxu0
  %v1425 = vpop.f32.mrf.mxu0
  %v1426 = vadd.f32 %v1265, %v1425
  %v1427 = vpop.f32.mrf.mxu0
  %1428 = vmatprep.mubr.bf16.mxu0 0
  %1429 = vmatmul.mubr.bf16.gmra.mxu0 %v806
  %v1430 = vpop.f32.mrf.mxu0
  %v1431 = vadd.f32 %v1270, %v1430
  %v1432 = vpop.f32.mrf.mxu0
  %v1433 = vpop.f32.mrf.mxu0
  %v1434 = vadd.f32 %v1273, %v1433
  %v1435 = vpop.f32.mrf.mxu0
  %1436 = vmatprep.mubr.bf16.mxu0 0
  %1437 = vmatmul.mubr.bf16.gmra.mxu0 %v809
  %v1438 = vpop.f32.mrf.mxu0
  %v1439 = vadd.f32 %v1278, %v1438
  %v1440 = vpop.f32.mrf.mxu0
  %v1441 = vpop.f32.mrf.mxu0
  %v1442 = vadd.f32 %v1281, %v1441
  %v1443 = vpop.f32.mrf.mxu0
  %1444 = vmatprep.mubr.bf16.mxu0 0
  %1445 = vmatmul.mubr.bf16.gmra.mxu0 %v812
  %v1446 = vpop.f32.mrf.mxu0
  %v1447 = vadd.f32 %v1286, %v1446
  %v1448 = vpop.f32.mrf.mxu0
  %v1449 = vpop.f32.mrf.mxu0
  %v1450 = vadd.f32 %v1289, %v1449
  %v1451 = vpop.f32.mrf.mxu0
  %1452 = vmatprep.mubr.bf16.mxu0 0
  %1453 = vmatmul.mubr.bf16.gmra.mxu0 %v815
  %v1454 = vpop.f32.mrf.mxu0
  %v1455 = vadd.f32 %v1294, %v1454
  %v1456 = vpop.f32.mrf.mxu0
  %v1457 = vpop.f32.mrf.mxu0
  %v1458 = vadd.f32 %v1297, %v1457
  %v1459 = vpop.f32.mrf.mxu0
  %1460 = vdwg.mxu0
  %v1461 = vmax.f32 %v1335, 0.0
  %v1462 = vmax.f32 %v1338, 0.0
  %v1463 = vmax.f32 %v1343, 0.0
  %v1464 = vmax.f32 %v1346, 0.0
  %v1465 = vmax.f32 %v1351, 0.0
  %v1466 = vmax.f32 %v1354, 0.0
  %v1467 = vmax.f32 %v1359, 0.0
  %v1468 = vmax.f32 %v1362, 0.0
  %v1469 = vmax.f32 %v1367, 0.0
  %v1470 = vmax.f32 %v1370, 0.0
  %v1471 = vmax.f32 %v1375, 0.0
  %v1472 = vmax.f32 %v1378, 0.0
  %v1473 = vmax.f32 %v1383, 0.0
  %v1474 = vmax.f32 %v1386, 0.0
  %v1475 = vmax.f32 %v1391, 0.0
  %v1476 = vmax.f32 %v1394, 0.0
  %v1477 = vmax.f32 %v1399, 0.0
  %v1478 = vmax.f32 %v1402, 0.0
  %v1479 = vmax.f32 %v1407, 0.0
  %v1480 = vmax.f32 %v1410, 0.0
  %v1481 = vmax.f32 %v1415, 0.0
  %v1482 = vmax.f32 %v1418, 0.0
  %v1483 = vmax.f32 %v1423, 0.0
  %v1484 = vmax.f32 %v1426, 0.0
  %v1485 = vmax.f32 %v1431, 0.0
  %v1486 = vmax.f32 %v1434, 0.0
  %v1487 = vmax.f32 %v1439, 0.0
  %v1488 = vmax.f32 %v1442, 0.0
  %v1489 = vmax.f32 %v1447, 0.0
  %v1490 = vmax.f32 %v1450, 0.0
  %v1491 = vmax.f32 %v1455, 0.0
  %v1492 = vmax.f32 %v1458, 0.0
  %v1493 = vpack.c.bf16 %v1462, %v1461
  %v1494 = vpack.c.bf16 %v1464, %v1463
  %v1495 = vpack.c.bf16 %v1466, %v1465
  %v1496 = vpack.c.bf16 %v1468, %v1467
  %v1497 = vpack.c.bf16 %v1470, %v1469
  %v1498 = vpack.c.bf16 %v1472, %v1471
  %v1499 = vpack.c.bf16 %v1474, %v1473
  %v1500 = vpack.c.bf16 %v1476, %v1475
  %v1501 = vpack.c.bf16 %v1478, %v1477
  %v1502 = vpack.c.bf16 %v1480, %v1479
  %v1503 = vpack.c.bf16 %v1482, %v1481
  %v1504 = vpack.c.bf16 %v1484, %v1483
  %v1505 = vpack.c.bf16 %v1486, %v1485
  %v1506 = vpack.c.bf16 %v1488, %v1487
  %v1507 = vpack.c.bf16 %v1490, %v1489
  %v1508 = vpack.c.bf16 %v1492, %v1491
  %v1509 = vld [vmem:[%s3] sm:$0xf]
  %v1510 = vld [vmem:[%s3 + $0x4] sm:$0xf]
  %v1511 = vld [vmem:[%s3 + $0x8] sm:$0xf]
  %v1512 = vld [vmem:[%s3 + $0xc] sm:$0xf]
  %v1513 = vld [vmem:[%s3 + $0x10] sm:$0xf]
  %v1514 = vld [vmem:[%s3 + $0x14] sm:$0xf]
  %v1515 = vld [vmem:[%s3 + $0x18] sm:$0xf]
  %v1516 = vld [vmem:[%s3 + $0x1c] sm:$0xf]
  %v1517 = vld [vmem:[%s3 + $0x20] sm:$0xf]
  %v1518 = vld [vmem:[%s3 + $0x24] sm:$0xf]
  %v1519 = vld [vmem:[%s3 + $0x28] sm:$0xf]
  %v1520 = vld [vmem:[%s3 + $0x2c] sm:$0xf]
  %v1521 = vld [vmem:[%s3 + $0x30] sm:$0xf]
  %v1522 = vld [vmem:[%s3 + $0x34] sm:$0xf]
  %v1523 = vld [vmem:[%s3 + $0x38] sm:$0xf]
  %v1524 = vld [vmem:[%s3 + $0x3c] sm:$0xf]
  %v1525 = vld [vmem:[%s4] sm:$0x1]
  %v1527 = vlaneseq
  %v1528 = vshrl.u32 %v1527, 7
  %v1529 = vsub.s32 0, %v1528
  %v1530 = vrot.slane %v1525, %v1529
  %v1548 = vunpack.c.l.b16 %v1509
  %v1549 = vunpack.c.l.b16 %v1510
  %v1550 = vunpack.c.l.b16 %v1511
  %v1551 = vunpack.c.l.b16 %v1512
  %v1552 = vunpack.c.l.b16 %v1513
  %v1553 = vunpack.c.l.b16 %v1514
  %v1554 = vunpack.c.l.b16 %v1515
  %v1555 = vunpack.c.l.b16 %v1516
  %v1556 = vunpack.c.l.b16 %v1517
  %v1557 = vunpack.c.l.b16 %v1518
  %v1558 = vunpack.c.l.b16 %v1519
  %v1559 = vunpack.c.l.b16 %v1520
  %v1560 = vunpack.c.l.b16 %v1521
  %v1561 = vunpack.c.l.b16 %v1522
  %v1562 = vunpack.c.l.b16 %v1523
  %v1563 = vunpack.c.l.b16 %v1524
  %v1564 = vpack.c.b16 %v1549, %v1548
  %v1565 = vpack.c.b16 %v1551, %v1550
  %v1566 = vpack.c.b16 %v1553, %v1552
  %v1567 = vpack.c.b16 %v1555, %v1554
  %v1568 = vpack.c.b16 %v1557, %v1556
  %v1569 = vpack.c.b16 %v1559, %v1558
  %v1570 = vpack.c.b16 %v1561, %v1560
  %v1571 = vpack.c.b16 %v1563, %v1562
  %1580 = vmatprep.subr.bf16.mxu0 0
  %1581 = vmatpush1.bf16.msra.mxu0 %v1571
  %1582 = vmatprep.subr.bf16.mxu0 0
  %1583 = vmatpush1.bf16.msra.mxu0 %v1570
  %1584 = vmatprep.subr.bf16.mxu0 0
  %1585 = vmatpush1.bf16.msra.mxu0 %v1569
  %1586 = vmatprep.subr.bf16.mxu0 0
  %1587 = vmatpush1.bf16.msra.mxu0 %v1568
  %1588 = vmatprep.subr.bf16.mxu0 0
  %1589 = vmatpush1.bf16.msra.mxu0 %v1567
  %1590 = vmatprep.subr.bf16.mxu0 0
  %1591 = vmatpush1.bf16.msra.mxu0 %v1566
  %1592 = vmatprep.subr.bf16.mxu0 0
  %1593 = vmatpush1.bf16.msra.mxu0 %v1565
  %1594 = vmatprep.subr.bf16.mxu0 0
  %1595 = vmatpush1.bf16.msra.mxu0 %v1564
  %1596 = vmatprep.subr.bf16.mxu0 0
  %1597 = vmatpush2.bf16.msra.mxu0 0
  %1598 = vmatprep.subr.bf16.mxu0 0
  %1599 = vmatpush2.bf16.msra.mxu0 0
  %1600 = vmatprep.subr.bf16.mxu0 0
  %1601 = vmatpush2.bf16.msra.mxu0 0
  %1602 = vmatprep.subr.bf16.mxu0 0
  %1603 = vmatpush2.bf16.msra.mxu0 0
  %1604 = vmatprep.subr.bf16.mxu0 0
  %1605 = vmatpush2.bf16.msra.mxu0 0
  %1606 = vmatprep.subr.bf16.mxu0 0
  %1607 = vmatpush2.bf16.msra.mxu0 0
  %1608 = vmatprep.subr.bf16.mxu0 0
  %1609 = vmatpush2.bf16.msra.mxu0 0
  %1610 = vmatprep.subr.bf16.mxu0 0
  %1611 = vmatpush2.bf16.msra.mxu0 0
  %1612 = vmatprep.mubr.bf16.mxu0 0
  %1613 = vmatmul.mubr.bf16.gmra.mxu0 %v1493
  %v1614 = vpop.f32.mrf.mxu0
  %v1615 = vadd.f32 %v1530, %v1614
  %v1616 = vpop.f32.mrf.mxu0
  %v1617 = vpop.f32.mrf.mxu0
  %v1618 = vadd.f32 %v1530, %v1617
  %v1619 = vpop.f32.mrf.mxu0
  %1620 = vmatprep.mubr.bf16.mxu0 0
  %1621 = vmatmul.mubr.bf16.gmra.mxu0 %v1494
  %v1622 = vpop.f32.mrf.mxu0
  %v1623 = vadd.f32 %v1530, %v1622
  %v1624 = vpop.f32.mrf.mxu0
  %v1625 = vpop.f32.mrf.mxu0
  %v1626 = vadd.f32 %v1530, %v1625
  %v1627 = vpop.f32.mrf.mxu0
  %1628 = vmatprep.mubr.bf16.mxu0 0
  %1629 = vmatmul.mubr.bf16.gmra.mxu0 %v1495
  %v1630 = vpop.f32.mrf.mxu0
  %v1631 = vadd.f32 %v1530, %v1630
  %v1632 = vpop.f32.mrf.mxu0
  %v1633 = vpop.f32.mrf.mxu0
  %v1634 = vadd.f32 %v1530, %v1633
  %v1635 = vpop.f32.mrf.mxu0
  %1636 = vmatprep.mubr.bf16.mxu0 0
  %1637 = vmatmul.mubr.bf16.gmra.mxu0 %v1496
  %v1638 = vpop.f32.mrf.mxu0
  %v1639 = vadd.f32 %v1530, %v1638
  %v1640 = vpop.f32.mrf.mxu0
  %v1641 = vpop.f32.mrf.mxu0
  %v1642 = vadd.f32 %v1530, %v1641
  %v1643 = vpop.f32.mrf.mxu0
  %1644 = vmatprep.mubr.bf16.mxu0 0
  %1645 = vmatmul.mubr.bf16.gmra.mxu0 %v1497
  %v1646 = vpop.f32.mrf.mxu0
  %v1647 = vadd.f32 %v1530, %v1646
  %v1648 = vpop.f32.mrf.mxu0
  %v1649 = vpop.f32.mrf.mxu0
  %v1650 = vadd.f32 %v1530, %v1649
  %v1651 = vpop.f32.mrf.mxu0
  %1652 = vmatprep.mubr.bf16.mxu0 0
  %1653 = vmatmul.mubr.bf16.gmra.mxu0 %v1498
  %v1654 = vpop.f32.mrf.mxu0
  %v1655 = vadd.f32 %v1530, %v1654
  %v1656 = vpop.f32.mrf.mxu0
  %v1657 = vpop.f32.mrf.mxu0
  %v1658 = vadd.f32 %v1530, %v1657
  %v1659 = vpop.f32.mrf.mxu0
  %1660 = vmatprep.mubr.bf16.mxu0 0
  %1661 = vmatmul.mubr.bf16.gmra.mxu0 %v1499
  %v1662 = vpop.f32.mrf.mxu0
  %v1663 = vadd.f32 %v1530, %v1662
  %v1664 = vpop.f32.mrf.mxu0
  %v1665 = vpop.f32.mrf.mxu0
  %v1666 = vadd.f32 %v1530, %v1665
  %v1667 = vpop.f32.mrf.mxu0
  %1668 = vmatprep.mubr.bf16.mxu0 0
  %1669 = vmatmul.mubr.bf16.gmra.mxu0 %v1500
  %v1670 = vpop.f32.mrf.mxu0
  %v1671 = vadd.f32 %v1530, %v1670
  %v1672 = vpop.f32.mrf.mxu0
  %v1673 = vpop.f32.mrf.mxu0
  %v1674 = vadd.f32 %v1530, %v1673
  %v1675 = vpop.f32.mrf.mxu0
  %1676 = vmatprep.mubr.bf16.mxu0 0
  %1677 = vmatmul.mubr.bf16.gmra.mxu0 %v1501
  %v1678 = vpop.f32.mrf.mxu0
  %v1679 = vadd.f32 %v1530, %v1678
  %v1680 = vpop.f32.mrf.mxu0
  %v1681 = vpop.f32.mrf.mxu0
  %v1682 = vadd.f32 %v1530, %v1681
  %v1683 = vpop.f32.mrf.mxu0
  %1684 = vmatprep.mubr.bf16.mxu0 0
  %1685 = vmatmul.mubr.bf16.gmra.mxu0 %v1502
  %v1686 = vpop.f32.mrf.mxu0
  %v1687 = vadd.f32 %v1530, %v1686
  %v1688 = vpop.f32.mrf.mxu0
  %v1689 = vpop.f32.mrf.mxu0
  %v1690 = vadd.f32 %v1530, %v1689
  %v1691 = vpop.f32.mrf.mxu0
  %1692 = vmatprep.mubr.bf16.mxu0 0
  %1693 = vmatmul.mubr.bf16.gmra.mxu0 %v1503
  %v1694 = vpop.f32.mrf.mxu0
  %v1695 = vadd.f32 %v1530, %v1694
  %v1696 = vpop.f32.mrf.mxu0
  %v1697 = vpop.f32.mrf.mxu0
  %v1698 = vadd.f32 %v1530, %v1697
  %v1699 = vpop.f32.mrf.mxu0
  %1700 = vmatprep.mubr.bf16.mxu0 0
  %1701 = vmatmul.mubr.bf16.gmra.mxu0 %v1504
  %v1702 = vpop.f32.mrf.mxu0
  %v1703 = vadd.f32 %v1530, %v1702
  %v1704 = vpop.f32.mrf.mxu0
  %v1705 = vpop.f32.mrf.mxu0
  %v1706 = vadd.f32 %v1530, %v1705
  %v1707 = vpop.f32.mrf.mxu0
  %1708 = vmatprep.mubr.bf16.mxu0 0
  %1709 = vmatmul.mubr.bf16.gmra.mxu0 %v1505
  %v1710 = vpop.f32.mrf.mxu0
  %v1711 = vadd.f32 %v1530, %v1710
  %v1712 = vpop.f32.mrf.mxu0
  %v1713 = vpop.f32.mrf.mxu0
  %v1714 = vadd.f32 %v1530, %v1713
  %v1715 = vpop.f32.mrf.mxu0
  %1716 = vmatprep.mubr.bf16.mxu0 0
  %1717 = vmatmul.mubr.bf16.gmra.mxu0 %v1506
  %v1718 = vpop.f32.mrf.mxu0
  %v1719 = vadd.f32 %v1530, %v1718
  %v1720 = vpop.f32.mrf.mxu0
  %v1721 = vpop.f32.mrf.mxu0
  %v1722 = vadd.f32 %v1530, %v1721
  %v1723 = vpop.f32.mrf.mxu0
  %1724 = vmatprep.mubr.bf16.mxu0 0
  %1725 = vmatmul.mubr.bf16.gmra.mxu0 %v1507
  %v1726 = vpop.f32.mrf.mxu0
  %v1727 = vadd.f32 %v1530, %v1726
  %v1728 = vpop.f32.mrf.mxu0
  %v1729 = vpop.f32.mrf.mxu0
  %v1730 = vadd.f32 %v1530, %v1729
  %v1731 = vpop.f32.mrf.mxu0
  %1732 = vmatprep.mubr.bf16.mxu0 0
  %1733 = vmatmul.mubr.bf16.gmra.mxu0 %v1508
  %v1734 = vpop.f32.mrf.mxu0
  %v1735 = vadd.f32 %v1530, %v1734
  %v1736 = vpop.f32.mrf.mxu0
  %v1737 = vpop.f32.mrf.mxu0
  %v1738 = vadd.f32 %v1530, %v1737
  %v1739 = vpop.f32.mrf.mxu0
  %1740 = vdwg.mxu0
  %v1741 = vmax.f32 %v1615, 0.0
  %v1742 = vmax.f32 %v1618, 0.0
  %v1743 = vmax.f32 %v1623, 0.0
  %v1744 = vmax.f32 %v1626, 0.0
  %v1745 = vmax.f32 %v1631, 0.0
  %v1746 = vmax.f32 %v1634, 0.0
  %v1747 = vmax.f32 %v1639, 0.0
  %v1748 = vmax.f32 %v1642, 0.0
  %v1749 = vmax.f32 %v1647, 0.0
  %v1750 = vmax.f32 %v1650, 0.0
  %v1751 = vmax.f32 %v1655, 0.0
  %v1752 = vmax.f32 %v1658, 0.0
  %v1753 = vmax.f32 %v1663, 0.0
  %v1754 = vmax.f32 %v1666, 0.0
  %v1755 = vmax.f32 %v1671, 0.0
  %v1756 = vmax.f32 %v1674, 0.0
  %v1757 = vmax.f32 %v1679, 0.0
  %v1758 = vmax.f32 %v1682, 0.0
  %v1759 = vmax.f32 %v1687, 0.0
  %v1760 = vmax.f32 %v1690, 0.0
  %v1761 = vmax.f32 %v1695, 0.0
  %v1762 = vmax.f32 %v1698, 0.0
  %v1763 = vmax.f32 %v1703, 0.0
  %v1764 = vmax.f32 %v1706, 0.0
  %v1765 = vmax.f32 %v1711, 0.0
  %v1766 = vmax.f32 %v1714, 0.0
  %v1767 = vmax.f32 %v1719, 0.0
  %v1768 = vmax.f32 %v1722, 0.0
  %v1769 = vmax.f32 %v1727, 0.0
  %v1770 = vmax.f32 %v1730, 0.0
  %v1771 = vmax.f32 %v1735, 0.0
  %v1772 = vmax.f32 %v1738, 0.0
  %v1773 = vpack.c.bf16 %v1742, %v1741
  %v1774 = vpack.c.bf16 %v1744, %v1743
  %v1775 = vpack.c.bf16 %v1746, %v1745
  %v1776 = vpack.c.bf16 %v1748, %v1747
  %v1777 = vpack.c.bf16 %v1750, %v1749
  %v1778 = vpack.c.bf16 %v1752, %v1751
  %v1779 = vpack.c.bf16 %v1754, %v1753
  %v1780 = vpack.c.bf16 %v1756, %v1755
  %v1781 = vpack.c.bf16 %v1758, %v1757
  %v1782 = vpack.c.bf16 %v1760, %v1759
  %v1783 = vpack.c.bf16 %v1762, %v1761
  %v1784 = vpack.c.bf16 %v1764, %v1763
  %v1785 = vpack.c.bf16 %v1766, %v1765
  %v1786 = vpack.c.bf16 %v1768, %v1767
  %v1787 = vpack.c.bf16 %v1770, %v1769
  %v1788 = vpack.c.bf16 %v1772, %v1771
  %v1789 = vld [vmem:[%s5] sm:$0xf]
  %v1790 = vld [vmem:[%s5 + $0x4] sm:$0xf]
  %v1791 = vld [vmem:[%s5 + $0x8] sm:$0xf]
  %v1792 = vld [vmem:[%s5 + $0xc] sm:$0xf]
  %v1793 = vld [vmem:[%s5 + $0x10] sm:$0xf]
  %v1794 = vld [vmem:[%s5 + $0x14] sm:$0xf]
  %v1795 = vld [vmem:[%s5 + $0x18] sm:$0xf]
  %v1796 = vld [vmem:[%s5 + $0x1c] sm:$0xf]
  %v1797 = vld [vmem:[%s5 + $0x20] sm:$0xf]
  %v1798 = vld [vmem:[%s5 + $0x24] sm:$0xf]
  %v1799 = vld [vmem:[%s5 + $0x28] sm:$0xf]
  %v1800 = vld [vmem:[%s5 + $0x2c] sm:$0xf]
  %v1801 = vld [vmem:[%s5 + $0x30] sm:$0xf]
  %v1802 = vld [vmem:[%s5 + $0x34] sm:$0xf]
  %v1803 = vld [vmem:[%s5 + $0x38] sm:$0xf]
  %v1804 = vld [vmem:[%s5 + $0x3c] sm:$0xf]
  %v1805 = vld [vmem:[%s6] sm:$0x1]
  %v1807 = vlaneseq
  %v1808 = vshrl.u32 %v1807, 7
  %v1809 = vsub.s32 0, %v1808
  %v1810 = vrot.slane %v1805, %v1809
  %v1828 = vunpack.c.l.b16 %v1789
  %v1829 = vunpack.c.l.b16 %v1790
  %v1830 = vunpack.c.l.b16 %v1791
  %v1831 = vunpack.c.l.b16 %v1792
  %v1832 = vunpack.c.l.b16 %v1793
  %v1833 = vunpack.c.l.b16 %v1794
  %v1834 = vunpack.c.l.b16 %v1795
  %v1835 = vunpack.c.l.b16 %v1796
  %v1836 = vunpack.c.l.b16 %v1797
  %v1837 = vunpack.c.l.b16 %v1798
  %v1838 = vunpack.c.l.b16 %v1799
  %v1839 = vunpack.c.l.b16 %v1800
  %v1840 = vunpack.c.l.b16 %v1801
  %v1841 = vunpack.c.l.b16 %v1802
  %v1842 = vunpack.c.l.b16 %v1803
  %v1843 = vunpack.c.l.b16 %v1804
  %v1844 = vpack.c.b16 %v1829, %v1828
  %v1845 = vpack.c.b16 %v1831, %v1830
  %v1846 = vpack.c.b16 %v1833, %v1832
  %v1847 = vpack.c.b16 %v1835, %v1834
  %v1848 = vpack.c.b16 %v1837, %v1836
  %v1849 = vpack.c.b16 %v1839, %v1838
  %v1850 = vpack.c.b16 %v1841, %v1840
  %v1851 = vpack.c.b16 %v1843, %v1842
  %1860 = vmatprep.subr.bf16.mxu0 0
  %1861 = vmatpush1.bf16.msra.mxu0 %v1851
  %1862 = vmatprep.subr.bf16.mxu0 0
  %1863 = vmatpush1.bf16.msra.mxu0 %v1850
  %1864 = vmatprep.subr.bf16.mxu0 0
  %1865 = vmatpush1.bf16.msra.mxu0 %v1849
  %1866 = vmatprep.subr.bf16.mxu0 0
  %1867 = vmatpush1.bf16.msra.mxu0 %v1848
  %1868 = vmatprep.subr.bf16.mxu0 0
  %1869 = vmatpush1.bf16.msra.mxu0 %v1847
  %1870 = vmatprep.subr.bf16.mxu0 0
  %1871 = vmatpush1.bf16.msra.mxu0 %v1846
  %1872 = vmatprep.subr.bf16.mxu0 0
  %1873 = vmatpush1.bf16.msra.mxu0 %v1845
  %1874 = vmatprep.subr.bf16.mxu0 0
  %1875 = vmatpush1.bf16.msra.mxu0 %v1844
  %1876 = vmatprep.subr.bf16.mxu0 0
  %1877 = vmatpush2.bf16.msra.mxu0 0
  %1878 = vmatprep.subr.bf16.mxu0 0
  %1879 = vmatpush2.bf16.msra.mxu0 0
  %1880 = vmatprep.subr.bf16.mxu0 0
  %1881 = vmatpush2.bf16.msra.mxu0 0
  %1882 = vmatprep.subr.bf16.mxu0 0
  %1883 = vmatpush2.bf16.msra.mxu0 0
  %1884 = vmatprep.subr.bf16.mxu0 0
  %1885 = vmatpush2.bf16.msra.mxu0 0
  %1886 = vmatprep.subr.bf16.mxu0 0
  %1887 = vmatpush2.bf16.msra.mxu0 0
  %1888 = vmatprep.subr.bf16.mxu0 0
  %1889 = vmatpush2.bf16.msra.mxu0 0
  %1890 = vmatprep.subr.bf16.mxu0 0
  %1891 = vmatpush2.bf16.msra.mxu0 0
  %1892 = vmatprep.mubr.bf16.mxu0 0
  %1893 = vmatmul.mubr.bf16.gmra.mxu0 %v1773
  %v1894 = vpop.f32.mrf.mxu0
  %v1895 = vadd.f32 %v1810, %v1894
  %v1896 = vpop.f32.mrf.mxu0
  %v1897 = vpop.f32.mrf.mxu0
  %v1898 = vadd.f32 %v1810, %v1897
  %v1899 = vpop.f32.mrf.mxu0
  %1900 = vmatprep.mubr.bf16.mxu0 0
  %1901 = vmatmul.mubr.bf16.gmra.mxu0 %v1774
  %v1902 = vpop.f32.mrf.mxu0
  %v1903 = vadd.f32 %v1810, %v1902
  %v1904 = vpop.f32.mrf.mxu0
  %v1905 = vpop.f32.mrf.mxu0
  %v1906 = vadd.f32 %v1810, %v1905
  %v1907 = vpop.f32.mrf.mxu0
  %1908 = vmatprep.mubr.bf16.mxu0 0
  %1909 = vmatmul.mubr.bf16.gmra.mxu0 %v1775
  %v1910 = vpop.f32.mrf.mxu0
  %v1911 = vadd.f32 %v1810, %v1910
  %v1912 = vpop.f32.mrf.mxu0
  %v1913 = vpop.f32.mrf.mxu0
  %v1914 = vadd.f32 %v1810, %v1913
  %v1915 = vpop.f32.mrf.mxu0
  %1916 = vmatprep.mubr.bf16.mxu0 0
  %1917 = vmatmul.mubr.bf16.gmra.mxu0 %v1776
  %v1918 = vpop.f32.mrf.mxu0
  %v1919 = vadd.f32 %v1810, %v1918
  %v1920 = vpop.f32.mrf.mxu0
  %v1921 = vpop.f32.mrf.mxu0
  %v1922 = vadd.f32 %v1810, %v1921
  %v1923 = vpop.f32.mrf.mxu0
  %1924 = vmatprep.mubr.bf16.mxu0 0
  %1925 = vmatmul.mubr.bf16.gmra.mxu0 %v1777
  %v1926 = vpop.f32.mrf.mxu0
  %v1927 = vadd.f32 %v1810, %v1926
  %v1928 = vpop.f32.mrf.mxu0
  %v1929 = vpop.f32.mrf.mxu0
  %v1930 = vadd.f32 %v1810, %v1929
  %v1931 = vpop.f32.mrf.mxu0
  %1932 = vmatprep.mubr.bf16.mxu0 0
  %1933 = vmatmul.mubr.bf16.gmra.mxu0 %v1778
  %v1934 = vpop.f32.mrf.mxu0
  %v1935 = vadd.f32 %v1810, %v1934
  %v1936 = vpop.f32.mrf.mxu0
  %v1937 = vpop.f32.mrf.mxu0
  %v1938 = vadd.f32 %v1810, %v1937
  %v1939 = vpop.f32.mrf.mxu0
  %1940 = vmatprep.mubr.bf16.mxu0 0
  %1941 = vmatmul.mubr.bf16.gmra.mxu0 %v1779
  %v1942 = vpop.f32.mrf.mxu0
  %v1943 = vadd.f32 %v1810, %v1942
  %v1944 = vpop.f32.mrf.mxu0
  %v1945 = vpop.f32.mrf.mxu0
  %v1946 = vadd.f32 %v1810, %v1945
  %v1947 = vpop.f32.mrf.mxu0
  %1948 = vmatprep.mubr.bf16.mxu0 0
  %1949 = vmatmul.mubr.bf16.gmra.mxu0 %v1780
  %v1950 = vpop.f32.mrf.mxu0
  %v1951 = vadd.f32 %v1810, %v1950
  %v1952 = vpop.f32.mrf.mxu0
  %v1953 = vpop.f32.mrf.mxu0
  %v1954 = vadd.f32 %v1810, %v1953
  %v1955 = vpop.f32.mrf.mxu0
  %1956 = vmatprep.mubr.bf16.mxu0 0
  %1957 = vmatmul.mubr.bf16.gmra.mxu0 %v1781
  %v1958 = vpop.f32.mrf.mxu0
  %v1959 = vadd.f32 %v1810, %v1958
  %v1960 = vpop.f32.mrf.mxu0
  %v1961 = vpop.f32.mrf.mxu0
  %v1962 = vadd.f32 %v1810, %v1961
  %v1963 = vpop.f32.mrf.mxu0
  %1964 = vmatprep.mubr.bf16.mxu0 0
  %1965 = vmatmul.mubr.bf16.gmra.mxu0 %v1782
  %v1966 = vpop.f32.mrf.mxu0
  %v1967 = vadd.f32 %v1810, %v1966
  %v1968 = vpop.f32.mrf.mxu0
  %v1969 = vpop.f32.mrf.mxu0
  %v1970 = vadd.f32 %v1810, %v1969
  %v1971 = vpop.f32.mrf.mxu0
  %1972 = vmatprep.mubr.bf16.mxu0 0
  %1973 = vmatmul.mubr.bf16.gmra.mxu0 %v1783
  %v1974 = vpop.f32.mrf.mxu0
  %v1975 = vadd.f32 %v1810, %v1974
  %v1976 = vpop.f32.mrf.mxu0
  %v1977 = vpop.f32.mrf.mxu0
  %v1978 = vadd.f32 %v1810, %v1977
  %v1979 = vpop.f32.mrf.mxu0
  %1980 = vmatprep.mubr.bf16.mxu0 0
  %1981 = vmatmul.mubr.bf16.gmra.mxu0 %v1784
  %v1982 = vpop.f32.mrf.mxu0
  %v1983 = vadd.f32 %v1810, %v1982
  %v1984 = vpop.f32.mrf.mxu0
  %v1985 = vpop.f32.mrf.mxu0
  %v1986 = vadd.f32 %v1810, %v1985
  %v1987 = vpop.f32.mrf.mxu0
  %1988 = vmatprep.mubr.bf16.mxu0 0
  %1989 = vmatmul.mubr.bf16.gmra.mxu0 %v1785
  %v1990 = vpop.f32.mrf.mxu0
  %v1991 = vadd.f32 %v1810, %v1990
  %v1992 = vpop.f32.mrf.mxu0
  %v1993 = vpop.f32.mrf.mxu0
  %v1994 = vadd.f32 %v1810, %v1993
  %v1995 = vpop.f32.mrf.mxu0
  %1996 = vmatprep.mubr.bf16.mxu0 0
  %1997 = vmatmul.mubr.bf16.gmra.mxu0 %v1786
  %v1998 = vpop.f32.mrf.mxu0
  %v1999 = vadd.f32 %v1810, %v1998
  %v2000 = vpop.f32.mrf.mxu0
  %v2001 = vpop.f32.mrf.mxu0
  %v2002 = vadd.f32 %v1810, %v2001
  %v2003 = vpop.f32.mrf.mxu0
  %2004 = vmatprep.mubr.bf16.mxu0 0
  %2005 = vmatmul.mubr.bf16.gmra.mxu0 %v1787
  %v2006 = vpop.f32.mrf.mxu0
  %v2007 = vadd.f32 %v1810, %v2006
  %v2008 = vpop.f32.mrf.mxu0
  %v2009 = vpop.f32.mrf.mxu0
  %v2010 = vadd.f32 %v1810, %v2009
  %v2011 = vpop.f32.mrf.mxu0
  %2012 = vmatprep.mubr.bf16.mxu0 0
  %2013 = vmatmul.mubr.bf16.gmra.mxu0 %v1788
  %v2014 = vpop.f32.mrf.mxu0
  %v2015 = vadd.f32 %v1810, %v2014
  %v2016 = vpop.f32.mrf.mxu0
  %v2017 = vpop.f32.mrf.mxu0
  %v2018 = vadd.f32 %v1810, %v2017
  %v2019 = vpop.f32.mrf.mxu0
  %2020 = vdwg.mxu0
  %v2021 = vmax.f32 %v1895, 0.0
  %v2022 = vmax.f32 %v1898, 0.0
  %v2023 = vmax.f32 %v1903, 0.0
  %v2024 = vmax.f32 %v1906, 0.0
  %v2025 = vmax.f32 %v1911, 0.0
  %v2026 = vmax.f32 %v1914, 0.0
  %v2027 = vmax.f32 %v1919, 0.0
  %v2028 = vmax.f32 %v1922, 0.0
  %v2029 = vmax.f32 %v1927, 0.0
  %v2030 = vmax.f32 %v1930, 0.0
  %v2031 = vmax.f32 %v1935, 0.0
  %v2032 = vmax.f32 %v1938, 0.0
  %v2033 = vmax.f32 %v1943, 0.0
  %v2034 = vmax.f32 %v1946, 0.0
  %v2035 = vmax.f32 %v1951, 0.0
  %v2036 = vmax.f32 %v1954, 0.0
  %v2037 = vmax.f32 %v1959, 0.0
  %v2038 = vmax.f32 %v1962, 0.0
  %v2039 = vmax.f32 %v1967, 0.0
  %v2040 = vmax.f32 %v1970, 0.0
  %v2041 = vmax.f32 %v1975, 0.0
  %v2042 = vmax.f32 %v1978, 0.0
  %v2043 = vmax.f32 %v1983, 0.0
  %v2044 = vmax.f32 %v1986, 0.0
  %v2045 = vmax.f32 %v1991, 0.0
  %v2046 = vmax.f32 %v1994, 0.0
  %v2047 = vmax.f32 %v1999, 0.0
  %v2048 = vmax.f32 %v2002, 0.0
  %v2049 = vmax.f32 %v2007, 0.0
  %v2050 = vmax.f32 %v2010, 0.0
  %v2051 = vmax.f32 %v2015, 0.0
  %v2052 = vmax.f32 %v2018, 0.0
  %v2053 = vpack.c.bf16 %v2022, %v2021
  %v2054 = vpack.c.bf16 %v2024, %v2023
  %v2055 = vpack.c.bf16 %v2026, %v2025
  %v2056 = vpack.c.bf16 %v2028, %v2027
  %v2057 = vpack.c.bf16 %v2030, %v2029
  %v2058 = vpack.c.bf16 %v2032, %v2031
  %v2059 = vpack.c.bf16 %v2034, %v2033
  %v2060 = vpack.c.bf16 %v2036, %v2035
  %v2061 = vpack.c.bf16 %v2038, %v2037
  %v2062 = vpack.c.bf16 %v2040, %v2039
  %v2063 = vpack.c.bf16 %v2042, %v2041
  %v2064 = vpack.c.bf16 %v2044, %v2043
  %v2065 = vpack.c.bf16 %v2046, %v2045
  %v2066 = vpack.c.bf16 %v2048, %v2047
  %v2067 = vpack.c.bf16 %v2050, %v2049
  %v2068 = vpack.c.bf16 %v2052, %v2051
  %v2069 = vld [vmem:[%s7] sm:$0xff]
  %v2070 = vld [vmem:[%s7 + $0x8] sm:$0xff]
  %v2071 = vld [vmem:[%s7 + $0x10] sm:$0xff]
  %v2072 = vld [vmem:[%s7 + $0x18] sm:$0xf]
  %v2073 = vld [vmem:[%s7 + $0x1c] sm:$0xff]
  %v2074 = vld [vmem:[%s7 + $0x24] sm:$0xff]
  %v2075 = vld [vmem:[%s7 + $0x2c] sm:$0xff]
  %v2076 = vld [vmem:[%s7 + $0x34] sm:$0xf]
  %v2077 = vld [vmem:[%s7 + $0x38] sm:$0xff]
  %v2078 = vld [vmem:[%s7 + $0x40] sm:$0xff]
  %v2079 = vld [vmem:[%s7 + $0x48] sm:$0xff]
  %v2080 = vld [vmem:[%s7 + $0x50] sm:$0xf]
  %v2081 = vld [vmem:[%s7 + $0x54] sm:$0xff]
  %v2082 = vld [vmem:[%s7 + $0x5c] sm:$0xff]
  %v2083 = vld [vmem:[%s7 + $0x64] sm:$0xff]
  %v2084 = vld [vmem:[%s7 + $0x6c] sm:$0xf]
  %v2085 = vld [vmem:[%s7 + $0x70] sm:$0xff]
  %v2086 = vld [vmem:[%s7 + $0x78] sm:$0xff]
  %v2087 = vld [vmem:[%s7 + $0x80] sm:$0xff]
  %v2088 = vld [vmem:[%s7 + $0x88] sm:$0xf]
  %v2089 = vld [vmem:[%s7 + $0x8c] sm:$0xff]
  %v2090 = vld [vmem:[%s7 + $0x94] sm:$0xff]
  %v2091 = vld [vmem:[%s7 + $0x9c] sm:$0xff]
  %v2092 = vld [vmem:[%s7 + $0xa4] sm:$0xf]
  %v2093 = vld [vmem:[%s7 + $0xa8] sm:$0xff]
  %v2094 = vld [vmem:[%s7 + $0xb0] sm:$0xff]
  %v2095 = vld [vmem:[%s7 + $0xb8] sm:$0xff]
  %v2096 = vld [vmem:[%s7 + $0xc0] sm:$0xf]
  %v2097 = vld [vmem:[%s7 + $0xc4] sm:$0xff]
  %v2098 = vld [vmem:[%s7 + $0xcc] sm:$0xff]
  %v2099 = vld [vmem:[%s7 + $0xd4] sm:$0xff]
  %v2100 = vld [vmem:[%s7 + $0xdc] sm:$0xf]
  %v2101 = vld [vmem:[%s7 + $0xe0] sm:$0xff]
  %v2102 = vld [vmem:[%s7 + $0xe8] sm:$0xff]
  %v2103 = vld [vmem:[%s7 + $0xf0] sm:$0xff]
  %v2104 = vld [vmem:[%s7 + $0xf8] sm:$0xf]
  %v2105 = vld [vmem:[%s7 + $0xfc] sm:$0xff]
  %v2106 = vld [vmem:[%s7 + $0x104] sm:$0xff]
  %v2107 = vld [vmem:[%s7 + $0x10c] sm:$0xff]
  %v2108 = vld [vmem:[%s7 + $0x114] sm:$0xf]
  %v2109 = vld [vmem:[%s7 + $0x118] sm:$0xff]
  %v2110 = vld [vmem:[%s7 + $0x120] sm:$0xff]
  %v2111 = vld [vmem:[%s7 + $0x128] sm:$0xff]
  %v2112 = vld [vmem:[%s7 + $0x130] sm:$0xf]
  %v2113 = vld [vmem:[%s7 + $0x134] sm:$0xff]
  %v2114 = vld [vmem:[%s7 + $0x13c] sm:$0xff]
  %v2115 = vld [vmem:[%s7 + $0x144] sm:$0xff]
  %v2116 = vld [vmem:[%s7 + $0x14c] sm:$0xf]
  %v2117 = vld [vmem:[%s7 + $0x150] sm:$0xff]
  %v2118 = vld [vmem:[%s7 + $0x158] sm:$0xff]
  %v2119 = vld [vmem:[%s7 + $0x160] sm:$0xff]
  %v2120 = vld [vmem:[%s7 + $0x168] sm:$0xf]
  %v2121 = vld [vmem:[%s7 + $0x16c] sm:$0xff]
  %v2122 = vld [vmem:[%s7 + $0x174] sm:$0xff]
  %v2123 = vld [vmem:[%s7 + $0x17c] sm:$0xff]
  %v2124 = vld [vmem:[%s7 + $0x184] sm:$0xf]
  %v2125 = vld [vmem:[%s7 + $0x188] sm:$0xff]
  %v2126 = vld [vmem:[%s7 + $0x190] sm:$0xff]
  %v2127 = vld [vmem:[%s7 + $0x198] sm:$0xff]
  %v2128 = vld [vmem:[%s7 + $0x1a0] sm:$0xf]
  %v2129 = vld [vmem:[%s7 + $0x1a4] sm:$0xff]
  %v2130 = vld [vmem:[%s7 + $0x1ac] sm:$0xff]
  %v2131 = vld [vmem:[%s7 + $0x1b4] sm:$0xff]
  %v2132 = vld [vmem:[%s7 + $0x1bc] sm:$0xf]
  %v2133 = vld [vmem:[%s8] sm:$0xff]
  %v2135 = vlaneseq
  %v2136 = vshrl.u32 %v2135, 7
  %v2137 = vsub.s32 0, %v2136
  %v2138 = vrot.slane %v2133, %v2137
  %v2139 = vlaneseq
  %v2140 = vshrl.u32 %v2139, 7
  %v2141 = vsub.s32 1, %v2140
  %v2142 = vrot.slane %v2133, %v2141
  %v2143 = vlaneseq
  %v2144 = vshrl.u32 %v2143, 7
  %v2145 = vsub.s32 2, %v2144
  %v2146 = vrot.slane %v2133, %v2145
  %v2147 = vlaneseq
  %v2148 = vshrl.u32 %v2147, 7
  %v2149 = vsub.s32 3, %v2148
  %v2150 = vrot.slane %v2133, %v2149
  %v2151 = vlaneseq
  %v2152 = vshrl.u32 %v2151, 7
  %v2153 = vsub.s32 4, %v2152
  %v2154 = vrot.slane %v2133, %v2153
  %v2155 = vlaneseq
  %v2156 = vshrl.u32 %v2155, 7
  %v2157 = vsub.s32 5, %v2156
  %v2158 = vrot.slane %v2133, %v2157
  %v2159 = vlaneseq
  %v2160 = vshrl.u32 %v2159, 7
  %v2161 = vsub.s32 6, %v2160
  %v2162 = vrot.slane %v2133, %v2161
  %v2234 = vunpack.c.l.b16 %v2069
  %v2235 = vunpack.c.h.b16 %v2069
  %v2236 = vunpack.c.l.b16 %v2070
  %v2237 = vunpack.c.h.b16 %v2070
  %v2238 = vunpack.c.l.b16 %v2071
  %v2239 = vunpack.c.h.b16 %v2071
  %v2240 = vunpack.c.l.b16 %v2072
  %v2241 = vunpack.c.l.b16 %v2073
  %v2242 = vunpack.c.h.b16 %v2073
  %v2243 = vunpack.c.l.b16 %v2074
  %v2244 = vunpack.c.h.b16 %v2074
  %v2245 = vunpack.c.l.b16 %v2075
  %v2246 = vunpack.c.h.b16 %v2075
  %v2247 = vunpack.c.l.b16 %v2076
  %v2248 = vunpack.c.l.b16 %v2077
  %v2249 = vunpack.c.h.b16 %v2077
  %v2250 = vunpack.c.l.b16 %v2078
  %v2251 = vunpack.c.h.b16 %v2078
  %v2252 = vunpack.c.l.b16 %v2079
  %v2253 = vunpack.c.h.b16 %v2079
  %v2254 = vunpack.c.l.b16 %v2080
  %v2255 = vunpack.c.l.b16 %v2081
  %v2256 = vunpack.c.h.b16 %v2081
  %v2257 = vunpack.c.l.b16 %v2082
  %v2258 = vunpack.c.h.b16 %v2082
  %v2259 = vunpack.c.l.b16 %v2083
  %v2260 = vunpack.c.h.b16 %v2083
  %v2261 = vunpack.c.l.b16 %v2084
  %v2262 = vunpack.c.l.b16 %v2085
  %v2263 = vunpack.c.h.b16 %v2085
  %v2264 = vunpack.c.l.b16 %v2086
  %v2265 = vunpack.c.h.b16 %v2086
  %v2266 = vunpack.c.l.b16 %v2087
  %v2267 = vunpack.c.h.b16 %v2087
  %v2268 = vunpack.c.l.b16 %v2088
  %v2269 = vunpack.c.l.b16 %v2089
  %v2270 = vunpack.c.h.b16 %v2089
  %v2271 = vunpack.c.l.b16 %v2090
  %v2272 = vunpack.c.h.b16 %v2090
  %v2273 = vunpack.c.l.b16 %v2091
  %v2274 = vunpack.c.h.b16 %v2091
  %v2275 = vunpack.c.l.b16 %v2092
  %v2276 = vunpack.c.l.b16 %v2093
  %v2277 = vunpack.c.h.b16 %v2093
  %v2278 = vunpack.c.l.b16 %v2094
  %v2279 = vunpack.c.h.b16 %v2094
  %v2280 = vunpack.c.l.b16 %v2095
  %v2281 = vunpack.c.h.b16 %v2095
  %v2282 = vunpack.c.l.b16 %v2096
  %v2283 = vunpack.c.l.b16 %v2097
  %v2284 = vunpack.c.h.b16 %v2097
  %v2285 = vunpack.c.l.b16 %v2098
  %v2286 = vunpack.c.h.b16 %v2098
  %v2287 = vunpack.c.l.b16 %v2099
  %v2288 = vunpack.c.h.b16 %v2099
  %v2289 = vunpack.c.l.b16 %v2100
  %v2290 = vunpack.c.l.b16 %v2101
  %v2291 = vunpack.c.h.b16 %v2101
  %v2292 = vunpack.c.l.b16 %v2102
  %v2293 = vunpack.c.h.b16 %v2102
  %v2294 = vunpack.c.l.b16 %v2103
  %v2295 = vunpack.c.h.b16 %v2103
  %v2296 = vunpack.c.l.b16 %v2104
  %v2297 = vunpack.c.l.b16 %v2105
  %v2298 = vunpack.c.h.b16 %v2105
  %v2299 = vunpack.c.l.b16 %v2106
  %v2300 = vunpack.c.h.b16 %v2106
  %v2301 = vunpack.c.l.b16 %v2107
  %v2302 = vunpack.c.h.b16 %v2107
  %v2303 = vunpack.c.l.b16 %v2108
  %v2304 = vunpack.c.l.b16 %v2109
  %v2305 = vunpack.c.h.b16 %v2109
  %v2306 = vunpack.c.l.b16 %v2110
  %v2307 = vunpack.c.h.b16 %v2110
  %v2308 = vunpack.c.l.b16 %v2111
  %v2309 = vunpack.c.h.b16 %v2111
  %v2310 = vunpack.c.l.b16 %v2112
  %v2311 = vunpack.c.l.b16 %v2113
  %v2312 = vunpack.c.h.b16 %v2113
  %v2313 = vunpack.c.l.b16 %v2114
  %v2314 = vunpack.c.h.b16 %v2114
  %v2315 = vunpack.c.l.b16 %v2115
  %v2316 = vunpack.c.h.b16 %v2115
  %v2317 = vunpack.c.l.b16 %v2116
  %v2318 = vunpack.c.l.b16 %v2117
  %v2319 = vunpack.c.h.b16 %v2117
  %v2320 = vunpack.c.l.b16 %v2118
  %v2321 = vunpack.c.h.b16 %v2118
  %v2322 = vunpack.c.l.b16 %v2119
  %v2323 = vunpack.c.h.b16 %v2119
  %v2324 = vunpack.c.l.b16 %v2120
  %v2325 = vunpack.c.l.b16 %v2121
  %v2326 = vunpack.c.h.b16 %v2121
  %v2327 = vunpack.c.l.b16 %v2122
  %v2328 = vunpack.c.h.b16 %v2122
  %v2329 = vunpack.c.l.b16 %v2123
  %v2330 = vunpack.c.h.b16 %v2123
  %v2331 = vunpack.c.l.b16 %v2124
  %v2332 = vunpack.c.l.b16 %v2125
  %v2333 = vunpack.c.h.b16 %v2125
  %v2334 = vunpack.c.l.b16 %v2126
  %v2335 = vunpack.c.h.b16 %v2126
  %v2336 = vunpack.c.l.b16 %v2127
  %v2337 = vunpack.c.h.b16 %v2127
  %v2338 = vunpack.c.l.b16 %v2128
  %v2339 = vunpack.c.l.b16 %v2129
  %v2340 = vunpack.c.h.b16 %v2129
  %v2341 = vunpack.c.l.b16 %v2130
  %v2342 = vunpack.c.h.b16 %v2130
  %v2343 = vunpack.c.l.b16 %v2131
  %v2344 = vunpack.c.h.b16 %v2131
  %v2345 = vunpack.c.l.b16 %v2132
  %v2346 = vpack.c.b16 %v2241, %v2234
  %v2347 = vpack.c.b16 %v2242, %v2235
  %v2348 = vpack.c.b16 %v2243, %v2236
  %v2349 = vpack.c.b16 %v2244, %v2237
  %v2350 = vpack.c.b16 %v2245, %v2238
  %v2351 = vpack.c.b16 %v2246, %v2239
  %v2352 = vpack.c.b16 %v2247, %v2240
  %v2353 = vpack.c.b16 %v2255, %v2248
  %v2354 = vpack.c.b16 %v2256, %v2249
  %v2355 = vpack.c.b16 %v2257, %v2250
  %v2356 = vpack.c.b16 %v2258, %v2251
  %v2357 = vpack.c.b16 %v2259, %v2252
  %v2358 = vpack.c.b16 %v2260, %v2253
  %v2359 = vpack.c.b16 %v2261, %v2254
  %v2360 = vpack.c.b16 %v2269, %v2262
  %v2361 = vpack.c.b16 %v2270, %v2263
  %v2362 = vpack.c.b16 %v2271, %v2264
  %v2363 = vpack.c.b16 %v2272, %v2265
  %v2364 = vpack.c.b16 %v2273, %v2266
  %v2365 = vpack.c.b16 %v2274, %v2267
  %v2366 = vpack.c.b16 %v2275, %v2268
  %v2367 = vpack.c.b16 %v2283, %v2276
  %v2368 = vpack.c.b16 %v2284, %v2277
  %v2369 = vpack.c.b16 %v2285, %v2278
  %v2370 = vpack.c.b16 %v2286, %v2279
  %v2371 = vpack.c.b16 %v2287, %v2280
  %v2372 = vpack.c.b16 %v2288, %v2281
  %v2373 = vpack.c.b16 %v2289, %v2282
  %v2374 = vpack.c.b16 %v2297, %v2290
  %v2375 = vpack.c.b16 %v2298, %v2291
  %v2376 = vpack.c.b16 %v2299, %v2292
  %v2377 = vpack.c.b16 %v2300, %v2293
  %v2378 = vpack.c.b16 %v2301, %v2294
  %v2379 = vpack.c.b16 %v2302, %v2295
  %v2380 = vpack.c.b16 %v2303, %v2296
  %v2381 = vpack.c.b16 %v2311, %v2304
  %v2382 = vpack.c.b16 %v2312, %v2305
  %v2383 = vpack.c.b16 %v2313, %v2306
  %v2384 = vpack.c.b16 %v2314, %v2307
  %v2385 = vpack.c.b16 %v2315, %v2308
  %v2386 = vpack.c.b16 %v2316, %v2309
  %v2387 = vpack.c.b16 %v2317, %v2310
  %v2388 = vpack.c.b16 %v2325, %v2318
  %v2389 = vpack.c.b16 %v2326, %v2319
  %v2390 = vpack.c.b16 %v2327, %v2320
  %v2391 = vpack.c.b16 %v2328, %v2321
  %v2392 = vpack.c.b16 %v2329, %v2322
  %v2393 = vpack.c.b16 %v2330, %v2323
  %v2394 = vpack.c.b16 %v2331, %v2324
  %v2395 = vpack.c.b16 %v2339, %v2332
  %v2396 = vpack.c.b16 %v2340, %v2333
  %v2397 = vpack.c.b16 %v2341, %v2334
  %v2398 = vpack.c.b16 %v2342, %v2335
  %v2399 = vpack.c.b16 %v2343, %v2336
  %v2400 = vpack.c.b16 %v2344, %v2337
  %v2401 = vpack.c.b16 %v2345, %v2338
  %2458 = vmatprep.subr.bf16.mxu0 %v2396
  %2459 = vmatpush1.bf16.msra.mxu0 %v2395
  %2460 = vmatprep.subr.bf16.mxu0 %v2389
  %2461 = vmatpush1.bf16.msra.mxu0 %v2388
  %2462 = vmatprep.subr.bf16.mxu0 %v2382
  %2463 = vmatpush1.bf16.msra.mxu0 %v2381
  %2464 = vmatprep.subr.bf16.mxu0 %v2375
  %2465 = vmatpush1.bf16.msra.mxu0 %v2374
  %2466 = vmatprep.subr.bf16.mxu0 %v2368
  %2467 = vmatpush1.bf16.msra.mxu0 %v2367
  %2468 = vmatprep.subr.bf16.mxu0 %v2361
  %2469 = vmatpush1.bf16.msra.mxu0 %v2360
  %2470 = vmatprep.subr.bf16.mxu0 %v2354
  %2471 = vmatpush1.bf16.msra.mxu0 %v2353
  %2472 = vmatprep.subr.bf16.mxu0 %v2347
  %2473 = vmatpush1.bf16.msra.mxu0 %v2346
  %2474 = vmatprep.subr.bf16.mxu0 0
  %2475 = vmatpush2.bf16.msra.mxu0 0
  %2476 = vmatprep.subr.bf16.mxu0 0
  %2477 = vmatpush2.bf16.msra.mxu0 0
  %2478 = vmatprep.subr.bf16.mxu0 0
  %2479 = vmatpush2.bf16.msra.mxu0 0
  %2480 = vmatprep.subr.bf16.mxu0 0
  %2481 = vmatpush2.bf16.msra.mxu0 0
  %2482 = vmatprep.subr.bf16.mxu0 0
  %2483 = vmatpush2.bf16.msra.mxu0 0
  %2484 = vmatprep.subr.bf16.mxu0 0
  %2485 = vmatpush2.bf16.msra.mxu0 0
  %2486 = vmatprep.subr.bf16.mxu0 0
  %2487 = vmatpush2.bf16.msra.mxu0 0
  %2488 = vmatprep.subr.bf16.mxu0 0
  %2489 = vmatpush2.bf16.msra.mxu0 0
  %2490 = vmatprep.mubr.bf16.mxu0 0
  %2491 = vmatmul.mubr.bf16.gmra.mxu0 %v2053
  %v2492 = vpop.f32.mrf.mxu0
  %v2493 = vadd.f32 %v2138, %v2492
  %v2494 = vpop.f32.mrf.mxu0
  %v2495 = vadd.f32 %v2142, %v2494
  %v2496 = vpop.f32.mrf.mxu0
  %v2497 = vadd.f32 %v2138, %v2496
  %v2498 = vpop.f32.mrf.mxu0
  %v2499 = vadd.f32 %v2142, %v2498
  %2500 = vmatprep.mubr.bf16.mxu0 0
  %2501 = vmatmul.mubr.bf16.gmra.mxu0 %v2054
  %v2502 = vpop.f32.mrf.mxu0
  %v2503 = vadd.f32 %v2138, %v2502
  %v2504 = vpop.f32.mrf.mxu0
  %v2505 = vadd.f32 %v2142, %v2504
  %v2506 = vpop.f32.mrf.mxu0
  %v2507 = vadd.f32 %v2138, %v2506
  %v2508 = vpop.f32.mrf.mxu0
  %v2509 = vadd.f32 %v2142, %v2508
  %2510 = vmatprep.mubr.bf16.mxu0 0
  %2511 = vmatmul.mubr.bf16.gmra.mxu0 %v2055
  %v2512 = vpop.f32.mrf.mxu0
  %v2513 = vadd.f32 %v2138, %v2512
  %v2514 = vpop.f32.mrf.mxu0
  %v2515 = vadd.f32 %v2142, %v2514
  %v2516 = vpop.f32.mrf.mxu0
  %v2517 = vadd.f32 %v2138, %v2516
  %v2518 = vpop.f32.mrf.mxu0
  %v2519 = vadd.f32 %v2142, %v2518
  %2520 = vmatprep.mubr.bf16.mxu0 0
  %2521 = vmatmul.mubr.bf16.gmra.mxu0 %v2056
  %v2522 = vpop.f32.mrf.mxu0
  %v2523 = vadd.f32 %v2138, %v2522
  %v2524 = vpop.f32.mrf.mxu0
  %v2525 = vadd.f32 %v2142, %v2524
  %v2526 = vpop.f32.mrf.mxu0
  %v2527 = vadd.f32 %v2138, %v2526
  %v2528 = vpop.f32.mrf.mxu0
  %v2529 = vadd.f32 %v2142, %v2528
  %2530 = vmatprep.mubr.bf16.mxu0 0
  %2531 = vmatmul.mubr.bf16.gmra.mxu0 %v2057
  %v2532 = vpop.f32.mrf.mxu0
  %v2533 = vadd.f32 %v2138, %v2532
  %v2534 = vpop.f32.mrf.mxu0
  %v2535 = vadd.f32 %v2142, %v2534
  %v2536 = vpop.f32.mrf.mxu0
  %v2537 = vadd.f32 %v2138, %v2536
  %v2538 = vpop.f32.mrf.mxu0
  %v2539 = vadd.f32 %v2142, %v2538
  %2540 = vmatprep.mubr.bf16.mxu0 0
  %2541 = vmatmul.mubr.bf16.gmra.mxu0 %v2058
  %v2542 = vpop.f32.mrf.mxu0
  %v2543 = vadd.f32 %v2138, %v2542
  %v2544 = vpop.f32.mrf.mxu0
  %v2545 = vadd.f32 %v2142, %v2544
  %v2546 = vpop.f32.mrf.mxu0
  %v2547 = vadd.f32 %v2138, %v2546
  %v2548 = vpop.f32.mrf.mxu0
  %v2549 = vadd.f32 %v2142, %v2548
  %2550 = vmatprep.mubr.bf16.mxu0 0
  %2551 = vmatmul.mubr.bf16.gmra.mxu0 %v2059
  %v2552 = vpop.f32.mrf.mxu0
  %v2553 = vadd.f32 %v2138, %v2552
  %v2554 = vpop.f32.mrf.mxu0
  %v2555 = vadd.f32 %v2142, %v2554
  %v2556 = vpop.f32.mrf.mxu0
  %v2557 = vadd.f32 %v2138, %v2556
  %v2558 = vpop.f32.mrf.mxu0
  %v2559 = vadd.f32 %v2142, %v2558
  %2560 = vmatprep.mubr.bf16.mxu0 0
  %2561 = vmatmul.mubr.bf16.gmra.mxu0 %v2060
  %v2562 = vpop.f32.mrf.mxu0
  %v2563 = vadd.f32 %v2138, %v2562
  %v2564 = vpop.f32.mrf.mxu0
  %v2565 = vadd.f32 %v2142, %v2564
  %v2566 = vpop.f32.mrf.mxu0
  %v2567 = vadd.f32 %v2138, %v2566
  %v2568 = vpop.f32.mrf.mxu0
  %v2569 = vadd.f32 %v2142, %v2568
  %2570 = vmatprep.mubr.bf16.mxu0 0
  %2571 = vmatmul.mubr.bf16.gmra.mxu0 %v2061
  %v2572 = vpop.f32.mrf.mxu0
  %v2573 = vadd.f32 %v2138, %v2572
  %v2574 = vpop.f32.mrf.mxu0
  %v2575 = vadd.f32 %v2142, %v2574
  %v2576 = vpop.f32.mrf.mxu0
  %v2577 = vadd.f32 %v2138, %v2576
  %v2578 = vpop.f32.mrf.mxu0
  %v2579 = vadd.f32 %v2142, %v2578
  %2580 = vmatprep.mubr.bf16.mxu0 0
  %2581 = vmatmul.mubr.bf16.gmra.mxu0 %v2062
  %v2582 = vpop.f32.mrf.mxu0
  %v2583 = vadd.f32 %v2138, %v2582
  %v2584 = vpop.f32.mrf.mxu0
  %v2585 = vadd.f32 %v2142, %v2584
  %v2586 = vpop.f32.mrf.mxu0
  %v2587 = vadd.f32 %v2138, %v2586
  %v2588 = vpop.f32.mrf.mxu0
  %v2589 = vadd.f32 %v2142, %v2588
  %2590 = vmatprep.mubr.bf16.mxu0 0
  %2591 = vmatmul.mubr.bf16.gmra.mxu0 %v2063
  %v2592 = vpop.f32.mrf.mxu0
  %v2593 = vadd.f32 %v2138, %v2592
  %v2594 = vpop.f32.mrf.mxu0
  %v2595 = vadd.f32 %v2142, %v2594
  %v2596 = vpop.f32.mrf.mxu0
  %v2597 = vadd.f32 %v2138, %v2596
  %v2598 = vpop.f32.mrf.mxu0
  %v2599 = vadd.f32 %v2142, %v2598
  %2600 = vmatprep.mubr.bf16.mxu0 0
  %2601 = vmatmul.mubr.bf16.gmra.mxu0 %v2064
  %v2602 = vpop.f32.mrf.mxu0
  %v2603 = vadd.f32 %v2138, %v2602
  %v2604 = vpop.f32.mrf.mxu0
  %v2605 = vadd.f32 %v2142, %v2604
  %v2606 = vpop.f32.mrf.mxu0
  %v2607 = vadd.f32 %v2138, %v2606
  %v2608 = vpop.f32.mrf.mxu0
  %v2609 = vadd.f32 %v2142, %v2608
  %2610 = vmatprep.mubr.bf16.mxu0 0
  %2611 = vmatmul.mubr.bf16.gmra.mxu0 %v2065
  %v2612 = vpop.f32.mrf.mxu0
  %v2613 = vadd.f32 %v2138, %v2612
  %v2614 = vpop.f32.mrf.mxu0
  %v2615 = vadd.f32 %v2142, %v2614
  %v2616 = vpop.f32.mrf.mxu0
  %v2617 = vadd.f32 %v2138, %v2616
  %v2618 = vpop.f32.mrf.mxu0
  %v2619 = vadd.f32 %v2142, %v2618
  %2620 = vmatprep.mubr.bf16.mxu0 0
  %2621 = vmatmul.mubr.bf16.gmra.mxu0 %v2066
  %v2622 = vpop.f32.mrf.mxu0
  %v2623 = vadd.f32 %v2138, %v2622
  %v2624 = vpop.f32.mrf.mxu0
  %v2625 = vadd.f32 %v2142, %v2624
  %v2626 = vpop.f32.mrf.mxu0
  %v2627 = vadd.f32 %v2138, %v2626
  %v2628 = vpop.f32.mrf.mxu0
  %v2629 = vadd.f32 %v2142, %v2628
  %2630 = vmatprep.mubr.bf16.mxu0 0
  %2631 = vmatmul.mubr.bf16.gmra.mxu0 %v2067
  %v2632 = vpop.f32.mrf.mxu0
  %v2633 = vadd.f32 %v2138, %v2632
  %v2634 = vpop.f32.mrf.mxu0
  %v2635 = vadd.f32 %v2142, %v2634
  %v2636 = vpop.f32.mrf.mxu0
  %v2637 = vadd.f32 %v2138, %v2636
  %v2638 = vpop.f32.mrf.mxu0
  %v2639 = vadd.f32 %v2142, %v2638
  %2640 = vmatprep.mubr.bf16.mxu0 0
  %2641 = vmatmul.mubr.bf16.gmra.mxu0 %v2068
  %v2642 = vpop.f32.mrf.mxu0
  %v2643 = vadd.f32 %v2138, %v2642
  %v2644 = vpop.f32.mrf.mxu0
  %v2645 = vadd.f32 %v2142, %v2644
  %v2646 = vpop.f32.mrf.mxu0
  %v2647 = vadd.f32 %v2138, %v2646
  %v2648 = vpop.f32.mrf.mxu0
  %v2649 = vadd.f32 %v2142, %v2648
  %2650 = vdwg.mxu0
  %2651 = vmatprep.subr.bf16.mxu0 %v2398
  %2652 = vmatpush1.bf16.msra.mxu0 %v2397
  %2653 = vmatprep.subr.bf16.mxu0 %v2391
  %2654 = vmatpush1.bf16.msra.mxu0 %v2390
  %2655 = vmatprep.subr.bf16.mxu0 %v2384
  %2656 = vmatpush1.bf16.msra.mxu0 %v2383
  %2657 = vmatprep.subr.bf16.mxu0 %v2377
  %2658 = vmatpush1.bf16.msra.mxu0 %v2376
  %2659 = vmatprep.subr.bf16.mxu0 %v2370
  %2660 = vmatpush1.bf16.msra.mxu0 %v2369
  %2661 = vmatprep.subr.bf16.mxu0 %v2363
  %2662 = vmatpush1.bf16.msra.mxu0 %v2362
  %2663 = vmatprep.subr.bf16.mxu0 %v2356
  %2664 = vmatpush1.bf16.msra.mxu0 %v2355
  %2665 = vmatprep.subr.bf16.mxu0 %v2349
  %2666 = vmatpush1.bf16.msra.mxu0 %v2348
  %2667 = vmatprep.subr.bf16.mxu0 0
  %2668 = vmatpush2.bf16.msra.mxu0 0
  %2669 = vmatprep.subr.bf16.mxu0 0
  %2670 = vmatpush2.bf16.msra.mxu0 0
  %2671 = vmatprep.subr.bf16.mxu0 0
  %2672 = vmatpush2.bf16.msra.mxu0 0
  %2673 = vmatprep.subr.bf16.mxu0 0
  %2674 = vmatpush2.bf16.msra.mxu0 0
  %2675 = vmatprep.subr.bf16.mxu0 0
  %2676 = vmatpush2.bf16.msra.mxu0 0
  %2677 = vmatprep.subr.bf16.mxu0 0
  %2678 = vmatpush2.bf16.msra.mxu0 0
  %2679 = vmatprep.subr.bf16.mxu0 0
  %2680 = vmatpush2.bf16.msra.mxu0 0
  %2681 = vmatprep.subr.bf16.mxu0 0
  %2682 = vmatpush2.bf16.msra.mxu0 0
  %2683 = vmatprep.mubr.bf16.mxu0 0
  %2684 = vmatmul.mubr.bf16.gmra.mxu0 %v2053
  %v2685 = vpop.f32.mrf.mxu0
  %v2686 = vadd.f32 %v2146, %v2685
  %v2687 = vpop.f32.mrf.mxu0
  %v2688 = vadd.f32 %v2150, %v2687
  %v2689 = vpop.f32.mrf.mxu0
  %v2690 = vadd.f32 %v2146, %v2689
  %v2691 = vpop.f32.mrf.mxu0
  %v2692 = vadd.f32 %v2150, %v2691
  %2693 = vmatprep.mubr.bf16.mxu0 0
  %2694 = vmatmul.mubr.bf16.gmra.mxu0 %v2054
  %v2695 = vpop.f32.mrf.mxu0
  %v2696 = vadd.f32 %v2146, %v2695
  %v2697 = vpop.f32.mrf.mxu0
  %v2698 = vadd.f32 %v2150, %v2697
  %v2699 = vpop.f32.mrf.mxu0
  %v2700 = vadd.f32 %v2146, %v2699
  %v2701 = vpop.f32.mrf.mxu0
  %v2702 = vadd.f32 %v2150, %v2701
  %2703 = vmatprep.mubr.bf16.mxu0 0
  %2704 = vmatmul.mubr.bf16.gmra.mxu0 %v2055
  %v2705 = vpop.f32.mrf.mxu0
  %v2706 = vadd.f32 %v2146, %v2705
  %v2707 = vpop.f32.mrf.mxu0
  %v2708 = vadd.f32 %v2150, %v2707
  %v2709 = vpop.f32.mrf.mxu0
  %v2710 = vadd.f32 %v2146, %v2709
  %v2711 = vpop.f32.mrf.mxu0
  %v2712 = vadd.f32 %v2150, %v2711
  %2713 = vmatprep.mubr.bf16.mxu0 0
  %2714 = vmatmul.mubr.bf16.gmra.mxu0 %v2056
  %v2715 = vpop.f32.mrf.mxu0
  %v2716 = vadd.f32 %v2146, %v2715
  %v2717 = vpop.f32.mrf.mxu0
  %v2718 = vadd.f32 %v2150, %v2717
  %v2719 = vpop.f32.mrf.mxu0
  %v2720 = vadd.f32 %v2146, %v2719
  %v2721 = vpop.f32.mrf.mxu0
  %v2722 = vadd.f32 %v2150, %v2721
  %2723 = vmatprep.mubr.bf16.mxu0 0
  %2724 = vmatmul.mubr.bf16.gmra.mxu0 %v2057
  %v2725 = vpop.f32.mrf.mxu0
  %v2726 = vadd.f32 %v2146, %v2725
  %v2727 = vpop.f32.mrf.mxu0
  %v2728 = vadd.f32 %v2150, %v2727
  %v2729 = vpop.f32.mrf.mxu0
  %v2730 = vadd.f32 %v2146, %v2729
  %v2731 = vpop.f32.mrf.mxu0
  %v2732 = vadd.f32 %v2150, %v2731
  %2733 = vmatprep.mubr.bf16.mxu0 0
  %2734 = vmatmul.mubr.bf16.gmra.mxu0 %v2058
  %v2735 = vpop.f32.mrf.mxu0
  %v2736 = vadd.f32 %v2146, %v2735
  %v2737 = vpop.f32.mrf.mxu0
  %v2738 = vadd.f32 %v2150, %v2737
  %v2739 = vpop.f32.mrf.mxu0
  %v2740 = vadd.f32 %v2146, %v2739
  %v2741 = vpop.f32.mrf.mxu0
  %v2742 = vadd.f32 %v2150, %v2741
  %2743 = vmatprep.mubr.bf16.mxu0 0
  %2744 = vmatmul.mubr.bf16.gmra.mxu0 %v2059
  %v2745 = vpop.f32.mrf.mxu0
  %v2746 = vadd.f32 %v2146, %v2745
  %v2747 = vpop.f32.mrf.mxu0
  %v2748 = vadd.f32 %v2150, %v2747
  %v2749 = vpop.f32.mrf.mxu0
  %v2750 = vadd.f32 %v2146, %v2749
  %v2751 = vpop.f32.mrf.mxu0
  %v2752 = vadd.f32 %v2150, %v2751
  %2753 = vmatprep.mubr.bf16.mxu0 0
  %2754 = vmatmul.mubr.bf16.gmra.mxu0 %v2060
  %v2755 = vpop.f32.mrf.mxu0
  %v2756 = vadd.f32 %v2146, %v2755
  %v2757 = vpop.f32.mrf.mxu0
  %v2758 = vadd.f32 %v2150, %v2757
  %v2759 = vpop.f32.mrf.mxu0
  %v2760 = vadd.f32 %v2146, %v2759
  %v2761 = vpop.f32.mrf.mxu0
  %v2762 = vadd.f32 %v2150, %v2761
  %2763 = vmatprep.mubr.bf16.mxu0 0
  %2764 = vmatmul.mubr.bf16.gmra.mxu0 %v2061
  %v2765 = vpop.f32.mrf.mxu0
  %v2766 = vadd.f32 %v2146, %v2765
  %v2767 = vpop.f32.mrf.mxu0
  %v2768 = vadd.f32 %v2150, %v2767
  %v2769 = vpop.f32.mrf.mxu0
  %v2770 = vadd.f32 %v2146, %v2769
  %v2771 = vpop.f32.mrf.mxu0
  %v2772 = vadd.f32 %v2150, %v2771
  %2773 = vmatprep.mubr.bf16.mxu0 0
  %2774 = vmatmul.mubr.bf16.gmra.mxu0 %v2062
  %v2775 = vpop.f32.mrf.mxu0
  %v2776 = vadd.f32 %v2146, %v2775
  %v2777 = vpop.f32.mrf.mxu0
  %v2778 = vadd.f32 %v2150, %v2777
  %v2779 = vpop.f32.mrf.mxu0
  %v2780 = vadd.f32 %v2146, %v2779
  %v2781 = vpop.f32.mrf.mxu0
  %v2782 = vadd.f32 %v2150, %v2781
  %2783 = vmatprep.mubr.bf16.mxu0 0
  %2784 = vmatmul.mubr.bf16.gmra.mxu0 %v2063
  %v2785 = vpop.f32.mrf.mxu0
  %v2786 = vadd.f32 %v2146, %v2785
  %v2787 = vpop.f32.mrf.mxu0
  %v2788 = vadd.f32 %v2150, %v2787
  %v2789 = vpop.f32.mrf.mxu0
  %v2790 = vadd.f32 %v2146, %v2789
  %v2791 = vpop.f32.mrf.mxu0
  %v2792 = vadd.f32 %v2150, %v2791
  %2793 = vmatprep.mubr.bf16.mxu0 0
  %2794 = vmatmul.mubr.bf16.gmra.mxu0 %v2064
  %v2795 = vpop.f32.mrf.mxu0
  %v2796 = vadd.f32 %v2146, %v2795
  %v2797 = vpop.f32.mrf.mxu0
  %v2798 = vadd.f32 %v2150, %v2797
  %v2799 = vpop.f32.mrf.mxu0
  %v2800 = vadd.f32 %v2146, %v2799
  %v2801 = vpop.f32.mrf.mxu0
  %v2802 = vadd.f32 %v2150, %v2801
  %2803 = vmatprep.mubr.bf16.mxu0 0
  %2804 = vmatmul.mubr.bf16.gmra.mxu0 %v2065
  %v2805 = vpop.f32.mrf.mxu0
  %v2806 = vadd.f32 %v2146, %v2805
  %v2807 = vpop.f32.mrf.mxu0
  %v2808 = vadd.f32 %v2150, %v2807
  %v2809 = vpop.f32.mrf.mxu0
  %v2810 = vadd.f32 %v2146, %v2809
  %v2811 = vpop.f32.mrf.mxu0
  %v2812 = vadd.f32 %v2150, %v2811
  %2813 = vmatprep.mubr.bf16.mxu0 0
  %2814 = vmatmul.mubr.bf16.gmra.mxu0 %v2066
  %v2815 = vpop.f32.mrf.mxu0
  %v2816 = vadd.f32 %v2146, %v2815
  %v2817 = vpop.f32.mrf.mxu0
  %v2818 = vadd.f32 %v2150, %v2817
  %v2819 = vpop.f32.mrf.mxu0
  %v2820 = vadd.f32 %v2146, %v2819
  %v2821 = vpop.f32.mrf.mxu0
  %v2822 = vadd.f32 %v2150, %v2821
  %2823 = vmatprep.mubr.bf16.mxu0 0
  %2824 = vmatmul.mubr.bf16.gmra.mxu0 %v2067
  %v2825 = vpop.f32.mrf.mxu0
  %v2826 = vadd.f32 %v2146, %v2825
  %v2827 = vpop.f32.mrf.mxu0
  %v2828 = vadd.f32 %v2150, %v2827
  %v2829 = vpop.f32.mrf.mxu0
  %v2830 = vadd.f32 %v2146, %v2829
  %v2831 = vpop.f32.mrf.mxu0
  %v2832 = vadd.f32 %v2150, %v2831
  %2833 = vmatprep.mubr.bf16.mxu0 0
  %2834 = vmatmul.mubr.bf16.gmra.mxu0 %v2068
  %v2835 = vpop.f32.mrf.mxu0
  %v2836 = vadd.f32 %v2146, %v2835
  %v2837 = vpop.f32.mrf.mxu0
  %v2838 = vadd.f32 %v2150, %v2837
  %v2839 = vpop.f32.mrf.mxu0
  %v2840 = vadd.f32 %v2146, %v2839
  %v2841 = vpop.f32.mrf.mxu0
  %v2842 = vadd.f32 %v2150, %v2841
  %2843 = vdwg.mxu0
  %2844 = vmatprep.subr.bf16.mxu0 %v2400
  %2845 = vmatpush1.bf16.msra.mxu0 %v2399
  %2846 = vmatprep.subr.bf16.mxu0 %v2393
  %2847 = vmatpush1.bf16.msra.mxu0 %v2392
  %2848 = vmatprep.subr.bf16.mxu0 %v2386
  %2849 = vmatpush1.bf16.msra.mxu0 %v2385
  %2850 = vmatprep.subr.bf16.mxu0 %v2379
  %2851 = vmatpush1.bf16.msra.mxu0 %v2378
  %2852 = vmatprep.subr.bf16.mxu0 %v2372
  %2853 = vmatpush1.bf16.msra.mxu0 %v2371
  %2854 = vmatprep.subr.bf16.mxu0 %v2365
  %2855 = vmatpush1.bf16.msra.mxu0 %v2364
  %2856 = vmatprep.subr.bf16.mxu0 %v2358
  %2857 = vmatpush1.bf16.msra.mxu0 %v2357
  %2858 = vmatprep.subr.bf16.mxu0 %v2351
  %2859 = vmatpush1.bf16.msra.mxu0 %v2350
  %2860 = vmatprep.subr.bf16.mxu0 0
  %2861 = vmatpush2.bf16.msra.mxu0 0
  %2862 = vmatprep.subr.bf16.mxu0 0
  %2863 = vmatpush2.bf16.msra.mxu0 0
  %2864 = vmatprep.subr.bf16.mxu0 0
  %2865 = vmatpush2.bf16.msra.mxu0 0
  %2866 = vmatprep.subr.bf16.mxu0 0
  %2867 = vmatpush2.bf16.msra.mxu0 0
  %2868 = vmatprep.subr.bf16.mxu0 0
  %2869 = vmatpush2.bf16.msra.mxu0 0
  %2870 = vmatprep.subr.bf16.mxu0 0
  %2871 = vmatpush2.bf16.msra.mxu0 0
  %2872 = vmatprep.subr.bf16.mxu0 0
  %2873 = vmatpush2.bf16.msra.mxu0 0
  %2874 = vmatprep.subr.bf16.mxu0 0
  %2875 = vmatpush2.bf16.msra.mxu0 0
  %2876 = vmatprep.mubr.bf16.mxu0 0
  %2877 = vmatmul.mubr.bf16.gmra.mxu0 %v2053
  %v2878 = vpop.f32.mrf.mxu0
  %v2879 = vadd.f32 %v2154, %v2878
  %v2880 = vpop.f32.mrf.mxu0
  %v2881 = vadd.f32 %v2158, %v2880
  %v2882 = vpop.f32.mrf.mxu0
  %v2883 = vadd.f32 %v2154, %v2882
  %v2884 = vpop.f32.mrf.mxu0
  %v2885 = vadd.f32 %v2158, %v2884
  %2886 = vmatprep.mubr.bf16.mxu0 0
  %2887 = vmatmul.mubr.bf16.gmra.mxu0 %v2054
  %v2888 = vpop.f32.mrf.mxu0
  %v2889 = vadd.f32 %v2154, %v2888
  %v2890 = vpop.f32.mrf.mxu0
  %v2891 = vadd.f32 %v2158, %v2890
  %v2892 = vpop.f32.mrf.mxu0
  %v2893 = vadd.f32 %v2154, %v2892
  %v2894 = vpop.f32.mrf.mxu0
  %v2895 = vadd.f32 %v2158, %v2894
  %2896 = vmatprep.mubr.bf16.mxu0 0
  %2897 = vmatmul.mubr.bf16.gmra.mxu0 %v2055
  %v2898 = vpop.f32.mrf.mxu0
  %v2899 = vadd.f32 %v2154, %v2898
  %v2900 = vpop.f32.mrf.mxu0
  %v2901 = vadd.f32 %v2158, %v2900
  %v2902 = vpop.f32.mrf.mxu0
  %v2903 = vadd.f32 %v2154, %v2902
  %v2904 = vpop.f32.mrf.mxu0
  %v2905 = vadd.f32 %v2158, %v2904
  %2906 = vmatprep.mubr.bf16.mxu0 0
  %2907 = vmatmul.mubr.bf16.gmra.mxu0 %v2056
  %v2908 = vpop.f32.mrf.mxu0
  %v2909 = vadd.f32 %v2154, %v2908
  %v2910 = vpop.f32.mrf.mxu0
  %v2911 = vadd.f32 %v2158, %v2910
  %v2912 = vpop.f32.mrf.mxu0
  %v2913 = vadd.f32 %v2154, %v2912
  %v2914 = vpop.f32.mrf.mxu0
  %v2915 = vadd.f32 %v2158, %v2914
  %2916 = vmatprep.mubr.bf16.mxu0 0
  %2917 = vmatmul.mubr.bf16.gmra.mxu0 %v2057
  %v2918 = vpop.f32.mrf.mxu0
  %v2919 = vadd.f32 %v2154, %v2918
  %v2920 = vpop.f32.mrf.mxu0
  %v2921 = vadd.f32 %v2158, %v2920
  %v2922 = vpop.f32.mrf.mxu0
  %v2923 = vadd.f32 %v2154, %v2922
  %v2924 = vpop.f32.mrf.mxu0
  %v2925 = vadd.f32 %v2158, %v2924
  %2926 = vmatprep.mubr.bf16.mxu0 0
  %2927 = vmatmul.mubr.bf16.gmra.mxu0 %v2058
  %v2928 = vpop.f32.mrf.mxu0
  %v2929 = vadd.f32 %v2154, %v2928
  %v2930 = vpop.f32.mrf.mxu0
  %v2931 = vadd.f32 %v2158, %v2930
  %v2932 = vpop.f32.mrf.mxu0
  %v2933 = vadd.f32 %v2154, %v2932
  %v2934 = vpop.f32.mrf.mxu0
  %v2935 = vadd.f32 %v2158, %v2934
  %2936 = vmatprep.mubr.bf16.mxu0 0
  %2937 = vmatmul.mubr.bf16.gmra.mxu0 %v2059
  %v2938 = vpop.f32.mrf.mxu0
  %v2939 = vadd.f32 %v2154, %v2938
  %v2940 = vpop.f32.mrf.mxu0
  %v2941 = vadd.f32 %v2158, %v2940
  %v2942 = vpop.f32.mrf.mxu0
  %v2943 = vadd.f32 %v2154, %v2942
  %v2944 = vpop.f32.mrf.mxu0
  %v2945 = vadd.f32 %v2158, %v2944
  %2946 = vmatprep.mubr.bf16.mxu0 0
  %2947 = vmatmul.mubr.bf16.gmra.mxu0 %v2060
  %v2948 = vpop.f32.mrf.mxu0
  %v2949 = vadd.f32 %v2154, %v2948
  %v2950 = vpop.f32.mrf.mxu0
  %v2951 = vadd.f32 %v2158, %v2950
  %v2952 = vpop.f32.mrf.mxu0
  %v2953 = vadd.f32 %v2154, %v2952
  %v2954 = vpop.f32.mrf.mxu0
  %v2955 = vadd.f32 %v2158, %v2954
  %2956 = vmatprep.mubr.bf16.mxu0 0
  %2957 = vmatmul.mubr.bf16.gmra.mxu0 %v2061
  %v2958 = vpop.f32.mrf.mxu0
  %v2959 = vadd.f32 %v2154, %v2958
  %v2960 = vpop.f32.mrf.mxu0
  %v2961 = vadd.f32 %v2158, %v2960
  %v2962 = vpop.f32.mrf.mxu0
  %v2963 = vadd.f32 %v2154, %v2962
  %v2964 = vpop.f32.mrf.mxu0
  %v2965 = vadd.f32 %v2158, %v2964
  %2966 = vmatprep.mubr.bf16.mxu0 0
  %2967 = vmatmul.mubr.bf16.gmra.mxu0 %v2062
  %v2968 = vpop.f32.mrf.mxu0
  %v2969 = vadd.f32 %v2154, %v2968
  %v2970 = vpop.f32.mrf.mxu0
  %v2971 = vadd.f32 %v2158, %v2970
  %v2972 = vpop.f32.mrf.mxu0
  %v2973 = vadd.f32 %v2154, %v2972
  %v2974 = vpop.f32.mrf.mxu0
  %v2975 = vadd.f32 %v2158, %v2974
  %2976 = vmatprep.mubr.bf16.mxu0 0
  %2977 = vmatmul.mubr.bf16.gmra.mxu0 %v2063
  %v2978 = vpop.f32.mrf.mxu0
  %v2979 = vadd.f32 %v2154, %v2978
  %v2980 = vpop.f32.mrf.mxu0
  %v2981 = vadd.f32 %v2158, %v2980
  %v2982 = vpop.f32.mrf.mxu0
  %v2983 = vadd.f32 %v2154, %v2982
  %v2984 = vpop.f32.mrf.mxu0
  %v2985 = vadd.f32 %v2158, %v2984
  %2986 = vmatprep.mubr.bf16.mxu0 0
  %2987 = vmatmul.mubr.bf16.gmra.mxu0 %v2064
  %v2988 = vpop.f32.mrf.mxu0
  %v2989 = vadd.f32 %v2154, %v2988
  %v2990 = vpop.f32.mrf.mxu0
  %v2991 = vadd.f32 %v2158, %v2990
  %v2992 = vpop.f32.mrf.mxu0
  %v2993 = vadd.f32 %v2154, %v2992
  %v2994 = vpop.f32.mrf.mxu0
  %v2995 = vadd.f32 %v2158, %v2994
  %2996 = vmatprep.mubr.bf16.mxu0 0
  %2997 = vmatmul.mubr.bf16.gmra.mxu0 %v2065
  %v2998 = vpop.f32.mrf.mxu0
  %v2999 = vadd.f32 %v2154, %v2998
  %v3000 = vpop.f32.mrf.mxu0
  %v3001 = vadd.f32 %v2158, %v3000
  %v3002 = vpop.f32.mrf.mxu0
  %v3003 = vadd.f32 %v2154, %v3002
  %v3004 = vpop.f32.mrf.mxu0
  %v3005 = vadd.f32 %v2158, %v3004
  %3006 = vmatprep.mubr.bf16.mxu0 0
  %3007 = vmatmul.mubr.bf16.gmra.mxu0 %v2066
  %v3008 = vpop.f32.mrf.mxu0
  %v3009 = vadd.f32 %v2154, %v3008
  %v3010 = vpop.f32.mrf.mxu0
  %v3011 = vadd.f32 %v2158, %v3010
  %v3012 = vpop.f32.mrf.mxu0
  %v3013 = vadd.f32 %v2154, %v3012
  %v3014 = vpop.f32.mrf.mxu0
  %v3015 = vadd.f32 %v2158, %v3014
  %3016 = vmatprep.mubr.bf16.mxu0 0
  %3017 = vmatmul.mubr.bf16.gmra.mxu0 %v2067
  %v3018 = vpop.f32.mrf.mxu0
  %v3019 = vadd.f32 %v2154, %v3018
  %v3020 = vpop.f32.mrf.mxu0
  %v3021 = vadd.f32 %v2158, %v3020
  %v3022 = vpop.f32.mrf.mxu0
  %v3023 = vadd.f32 %v2154, %v3022
  %v3024 = vpop.f32.mrf.mxu0
  %v3025 = vadd.f32 %v2158, %v3024
  %3026 = vmatprep.mubr.bf16.mxu0 0
  %3027 = vmatmul.mubr.bf16.gmra.mxu0 %v2068
  %v3028 = vpop.f32.mrf.mxu0
  %v3029 = vadd.f32 %v2154, %v3028
  %v3030 = vpop.f32.mrf.mxu0
  %v3031 = vadd.f32 %v2158, %v3030
  %v3032 = vpop.f32.mrf.mxu0
  %v3033 = vadd.f32 %v2154, %v3032
  %v3034 = vpop.f32.mrf.mxu0
  %v3035 = vadd.f32 %v2158, %v3034
  %3036 = vdwg.mxu0
  %3037 = vmatprep.subr.bf16.mxu0 0
  %3038 = vmatpush1.bf16.msra.mxu0 %v2401
  %3039 = vmatprep.subr.bf16.mxu0 0
  %3040 = vmatpush1.bf16.msra.mxu0 %v2394
  %3041 = vmatprep.subr.bf16.mxu0 0
  %3042 = vmatpush1.bf16.msra.mxu0 %v2387
  %3043 = vmatprep.subr.bf16.mxu0 0
  %3044 = vmatpush1.bf16.msra.mxu0 %v2380
  %3045 = vmatprep.subr.bf16.mxu0 0
  %3046 = vmatpush1.bf16.msra.mxu0 %v2373
  %3047 = vmatprep.subr.bf16.mxu0 0
  %3048 = vmatpush1.bf16.msra.mxu0 %v2366
  %3049 = vmatprep.subr.bf16.mxu0 0
  %3050 = vmatpush1.bf16.msra.mxu0 %v2359
  %3051 = vmatprep.subr.bf16.mxu0 0
  %3052 = vmatpush1.bf16.msra.mxu0 %v2352
  %3053 = vmatprep.subr.bf16.mxu0 0
  %3054 = vmatpush2.bf16.msra.mxu0 0
  %3055 = vmatprep.subr.bf16.mxu0 0
  %3056 = vmatpush2.bf16.msra.mxu0 0
  %3057 = vmatprep.subr.bf16.mxu0 0
  %3058 = vmatpush2.bf16.msra.mxu0 0
  %3059 = vmatprep.subr.bf16.mxu0 0
  %3060 = vmatpush2.bf16.msra.mxu0 0
  %3061 = vmatprep.subr.bf16.mxu0 0
  %3062 = vmatpush2.bf16.msra.mxu0 0
  %3063 = vmatprep.subr.bf16.mxu0 0
  %3064 = vmatpush2.bf16.msra.mxu0 0
  %3065 = vmatprep.subr.bf16.mxu0 0
  %3066 = vmatpush2.bf16.msra.mxu0 0
  %3067 = vmatprep.subr.bf16.mxu0 0
  %3068 = vmatpush2.bf16.msra.mxu0 0
  %3069 = vmatprep.mubr.bf16.mxu0 0
  %3070 = vmatmul.mubr.bf16.gmra.mxu0 %v2053
  %v3071 = vpop.f32.mrf.mxu0
  %v3072 = vadd.f32 %v2162, %v3071
  %v3073 = vpop.f32.mrf.mxu0
  %v3074 = vpop.f32.mrf.mxu0
  %v3075 = vadd.f32 %v2162, %v3074
  %v3076 = vpop.f32.mrf.mxu0
  %3077 = vmatprep.mubr.bf16.mxu0 0
  %3078 = vmatmul.mubr.bf16.gmra.mxu0 %v2054
  %v3079 = vpop.f32.mrf.mxu0
  %v3080 = vadd.f32 %v2162, %v3079
  %v3081 = vpop.f32.mrf.mxu0
  %v3082 = vpop.f32.mrf.mxu0
  %v3083 = vadd.f32 %v2162, %v3082
  %v3084 = vpop.f32.mrf.mxu0
  %3085 = vmatprep.mubr.bf16.mxu0 0
  %3086 = vmatmul.mubr.bf16.gmra.mxu0 %v2055
  %v3087 = vpop.f32.mrf.mxu0
  %v3088 = vadd.f32 %v2162, %v3087
  %v3089 = vpop.f32.mrf.mxu0
  %v3090 = vpop.f32.mrf.mxu0
  %v3091 = vadd.f32 %v2162, %v3090
  %v3092 = vpop.f32.mrf.mxu0
  %3093 = vmatprep.mubr.bf16.mxu0 0
  %3094 = vmatmul.mubr.bf16.gmra.mxu0 %v2056
  %v3095 = vpop.f32.mrf.mxu0
  %v3096 = vadd.f32 %v2162, %v3095
  %v3097 = vpop.f32.mrf.mxu0
  %v3098 = vpop.f32.mrf.mxu0
  %v3099 = vadd.f32 %v2162, %v3098
  %v3100 = vpop.f32.mrf.mxu0
  %3101 = vmatprep.mubr.bf16.mxu0 0
  %3102 = vmatmul.mubr.bf16.gmra.mxu0 %v2057
  %v3103 = vpop.f32.mrf.mxu0
  %v3104 = vadd.f32 %v2162, %v3103
  %v3105 = vpop.f32.mrf.mxu0
  %v3106 = vpop.f32.mrf.mxu0
  %v3107 = vadd.f32 %v2162, %v3106
  %v3108 = vpop.f32.mrf.mxu0
  %3109 = vmatprep.mubr.bf16.mxu0 0
  %3110 = vmatmul.mubr.bf16.gmra.mxu0 %v2058
  %v3111 = vpop.f32.mrf.mxu0
  %v3112 = vadd.f32 %v2162, %v3111
  %v3113 = vpop.f32.mrf.mxu0
  %v3114 = vpop.f32.mrf.mxu0
  %v3115 = vadd.f32 %v2162, %v3114
  %v3116 = vpop.f32.mrf.mxu0
  %3117 = vmatprep.mubr.bf16.mxu0 0
  %3118 = vmatmul.mubr.bf16.gmra.mxu0 %v2059
  %v3119 = vpop.f32.mrf.mxu0
  %v3120 = vadd.f32 %v2162, %v3119
  %v3121 = vpop.f32.mrf.mxu0
  %v3122 = vpop.f32.mrf.mxu0
  %v3123 = vadd.f32 %v2162, %v3122
  %v3124 = vpop.f32.mrf.mxu0
  %3125 = vmatprep.mubr.bf16.mxu0 0
  %3126 = vmatmul.mubr.bf16.gmra.mxu0 %v2060
  %v3127 = vpop.f32.mrf.mxu0
  %v3128 = vadd.f32 %v2162, %v3127
  %v3129 = vpop.f32.mrf.mxu0
  %v3130 = vpop.f32.mrf.mxu0
  %v3131 = vadd.f32 %v2162, %v3130
  %v3132 = vpop.f32.mrf.mxu0
  %3133 = vmatprep.mubr.bf16.mxu0 0
  %3134 = vmatmul.mubr.bf16.gmra.mxu0 %v2061
  %v3135 = vpop.f32.mrf.mxu0
  %v3136 = vadd.f32 %v2162, %v3135
  %v3137 = vpop.f32.mrf.mxu0
  %v3138 = vpop.f32.mrf.mxu0
  %v3139 = vadd.f32 %v2162, %v3138
  %v3140 = vpop.f32.mrf.mxu0
  %3141 = vmatprep.mubr.bf16.mxu0 0
  %3142 = vmatmul.mubr.bf16.gmra.mxu0 %v2062
  %v3143 = vpop.f32.mrf.mxu0
  %v3144 = vadd.f32 %v2162, %v3143
  %v3145 = vpop.f32.mrf.mxu0
  %v3146 = vpop.f32.mrf.mxu0
  %v3147 = vadd.f32 %v2162, %v3146
  %v3148 = vpop.f32.mrf.mxu0
  %3149 = vmatprep.mubr.bf16.mxu0 0
  %3150 = vmatmul.mubr.bf16.gmra.mxu0 %v2063
  %v3151 = vpop.f32.mrf.mxu0
  %v3152 = vadd.f32 %v2162, %v3151
  %v3153 = vpop.f32.mrf.mxu0
  %v3154 = vpop.f32.mrf.mxu0
  %v3155 = vadd.f32 %v2162, %v3154
  %v3156 = vpop.f32.mrf.mxu0
  %3157 = vmatprep.mubr.bf16.mxu0 0
  %3158 = vmatmul.mubr.bf16.gmra.mxu0 %v2064
  %v3159 = vpop.f32.mrf.mxu0
  %v3160 = vadd.f32 %v2162, %v3159
  %v3161 = vpop.f32.mrf.mxu0
  %v3162 = vpop.f32.mrf.mxu0
  %v3163 = vadd.f32 %v2162, %v3162
  %v3164 = vpop.f32.mrf.mxu0
  %3165 = vmatprep.mubr.bf16.mxu0 0
  %3166 = vmatmul.mubr.bf16.gmra.mxu0 %v2065
  %v3167 = vpop.f32.mrf.mxu0
  %v3168 = vadd.f32 %v2162, %v3167
  %v3169 = vpop.f32.mrf.mxu0
  %v3170 = vpop.f32.mrf.mxu0
  %v3171 = vadd.f32 %v2162, %v3170
  %v3172 = vpop.f32.mrf.mxu0
  %3173 = vmatprep.mubr.bf16.mxu0 0
  %3174 = vmatmul.mubr.bf16.gmra.mxu0 %v2066
  %v3175 = vpop.f32.mrf.mxu0
  %v3176 = vadd.f32 %v2162, %v3175
  %v3177 = vpop.f32.mrf.mxu0
  %v3178 = vpop.f32.mrf.mxu0
  %v3179 = vadd.f32 %v2162, %v3178
  %v3180 = vpop.f32.mrf.mxu0
  %3181 = vmatprep.mubr.bf16.mxu0 0
  %3182 = vmatmul.mubr.bf16.gmra.mxu0 %v2067
  %v3183 = vpop.f32.mrf.mxu0
  %v3184 = vadd.f32 %v2162, %v3183
  %v3185 = vpop.f32.mrf.mxu0
  %v3186 = vpop.f32.mrf.mxu0
  %v3187 = vadd.f32 %v2162, %v3186
  %v3188 = vpop.f32.mrf.mxu0
  %3189 = vmatprep.mubr.bf16.mxu0 0
  %3190 = vmatmul.mubr.bf16.gmra.mxu0 %v2068
  %v3191 = vpop.f32.mrf.mxu0
  %v3192 = vadd.f32 %v2162, %v3191
  %v3193 = vpop.f32.mrf.mxu0
  %v3194 = vpop.f32.mrf.mxu0
  %v3195 = vadd.f32 %v2162, %v3194
  %v3196 = vpop.f32.mrf.mxu0
  %3197 = vdwg.mxu0
  %v3198 = vxor.u32 %v2493, 2147483648
  %v3199 = vxor.u32 %v2495, 2147483648
  %v3200 = vxor.u32 %v2686, 2147483648
  %v3201 = vxor.u32 %v2688, 2147483648
  %v3202 = vxor.u32 %v2879, 2147483648
  %v3203 = vxor.u32 %v2881, 2147483648
  %v3204 = vxor.u32 %v3072, 2147483648
  %v3205 = vxor.u32 %v2497, 2147483648
  %v3206 = vxor.u32 %v2499, 2147483648
  %v3207 = vxor.u32 %v2690, 2147483648
  %v3208 = vxor.u32 %v2692, 2147483648
  %v3209 = vxor.u32 %v2883, 2147483648
  %v3210 = vxor.u32 %v2885, 2147483648
  %v3211 = vxor.u32 %v3075, 2147483648
  %v3212 = vxor.u32 %v2503, 2147483648
  %v3213 = vxor.u32 %v2505, 2147483648
  %v3214 = vxor.u32 %v2696, 2147483648
  %v3215 = vxor.u32 %v2698, 2147483648
  %v3216 = vxor.u32 %v2889, 2147483648
  %v3217 = vxor.u32 %v2891, 2147483648
  %v3218 = vxor.u32 %v3080, 2147483648
  %v3219 = vxor.u32 %v2507, 2147483648
  %v3220 = vxor.u32 %v2509, 2147483648
  %v3221 = vxor.u32 %v2700, 2147483648
  %v3222 = vxor.u32 %v2702, 2147483648
  %v3223 = vxor.u32 %v2893, 2147483648
  %v3224 = vxor.u32 %v2895, 2147483648
  %v3225 = vxor.u32 %v3083, 2147483648
  %v3226 = vxor.u32 %v2513, 2147483648
  %v3227 = vxor.u32 %v2515, 2147483648
  %v3228 = vxor.u32 %v2706, 2147483648
  %v3229 = vxor.u32 %v2708, 2147483648
  %v3230 = vxor.u32 %v2899, 2147483648
  %v3231 = vxor.u32 %v2901, 2147483648
  %v3232 = vxor.u32 %v3088, 2147483648
  %v3233 = vxor.u32 %v2517, 2147483648
  %v3234 = vxor.u32 %v2519, 2147483648
  %v3235 = vxor.u32 %v2710, 2147483648
  %v3236 = vxor.u32 %v2712, 2147483648
  %v3237 = vxor.u32 %v2903, 2147483648
  %v3238 = vxor.u32 %v2905, 2147483648
  %v3239 = vxor.u32 %v3091, 2147483648
  %v3240 = vxor.u32 %v2523, 2147483648
  %v3241 = vxor.u32 %v2525, 2147483648
  %v3242 = vxor.u32 %v2716, 2147483648
  %v3243 = vxor.u32 %v2718, 2147483648
  %v3244 = vxor.u32 %v2909, 2147483648
  %v3245 = vxor.u32 %v2911, 2147483648
  %v3246 = vxor.u32 %v3096, 2147483648
  %v3247 = vxor.u32 %v2527, 2147483648
  %v3248 = vxor.u32 %v2529, 2147483648
  %v3249 = vxor.u32 %v2720, 2147483648
  %v3250 = vxor.u32 %v2722, 2147483648
  %v3251 = vxor.u32 %v2913, 2147483648
  %v3252 = vxor.u32 %v2915, 2147483648
  %v3253 = vxor.u32 %v3099, 2147483648
  %v3254 = vxor.u32 %v2533, 2147483648
  %v3255 = vxor.u32 %v2535, 2147483648
  %v3256 = vxor.u32 %v2726, 2147483648
  %v3257 = vxor.u32 %v2728, 2147483648
  %v3258 = vxor.u32 %v2919, 2147483648
  %v3259 = vxor.u32 %v2921, 2147483648
  %v3260 = vxor.u32 %v3104, 2147483648
  %v3261 = vxor.u32 %v2537, 2147483648
  %v3262 = vxor.u32 %v2539, 2147483648
  %v3263 = vxor.u32 %v2730, 2147483648
  %v3264 = vxor.u32 %v2732, 2147483648
  %v3265 = vxor.u32 %v2923, 2147483648
  %v3266 = vxor.u32 %v2925, 2147483648
  %v3267 = vxor.u32 %v3107, 2147483648
  %v3268 = vxor.u32 %v2543, 2147483648
  %v3269 = vxor.u32 %v2545, 2147483648
  %v3270 = vxor.u32 %v2736, 2147483648
  %v3271 = vxor.u32 %v2738, 2147483648
  %v3272 = vxor.u32 %v2929, 2147483648
  %v3273 = vxor.u32 %v2931, 2147483648
  %v3274 = vxor.u32 %v3112, 2147483648
  %v3275 = vxor.u32 %v2547, 2147483648
  %v3276 = vxor.u32 %v2549, 2147483648
  %v3277 = vxor.u32 %v2740, 2147483648
  %v3278 = vxor.u32 %v2742, 2147483648
  %v3279 = vxor.u32 %v2933, 2147483648
  %v3280 = vxor.u32 %v2935, 2147483648
  %v3281 = vxor.u32 %v3115, 2147483648
  %v3282 = vxor.u32 %v2553, 2147483648
  %v3283 = vxor.u32 %v2555, 2147483648
  %v3284 = vxor.u32 %v2746, 2147483648
  %v3285 = vxor.u32 %v2748, 2147483648
  %v3286 = vxor.u32 %v2939, 2147483648
  %v3287 = vxor.u32 %v2941, 2147483648
  %v3288 = vxor.u32 %v3120, 2147483648
  %v3289 = vxor.u32 %v2557, 2147483648
  %v3290 = vxor.u32 %v2559, 2147483648
  %v3291 = vxor.u32 %v2750, 2147483648
  %v3292 = vxor.u32 %v2752, 2147483648
  %v3293 = vxor.u32 %v2943, 2147483648
  %v3294 = vxor.u32 %v2945, 2147483648
  %v3295 = vxor.u32 %v3123, 2147483648
  %v3296 = vxor.u32 %v2563, 2147483648
  %v3297 = vxor.u32 %v2565, 2147483648
  %v3298 = vxor.u32 %v2756, 2147483648
  %v3299 = vxor.u32 %v2758, 2147483648
  %v3300 = vxor.u32 %v2949, 2147483648
  %v3301 = vxor.u32 %v2951, 2147483648
  %v3302 = vxor.u32 %v3128, 2147483648
  %v3303 = vxor.u32 %v2567, 2147483648
  %v3304 = vxor.u32 %v2569, 2147483648
  %v3305 = vxor.u32 %v2760, 2147483648
  %v3306 = vxor.u32 %v2762, 2147483648
  %v3307 = vxor.u32 %v2953, 2147483648
  %v3308 = vxor.u32 %v2955, 2147483648
  %v3309 = vxor.u32 %v3131, 2147483648
  %v3310 = vxor.u32 %v2573, 2147483648
  %v3311 = vxor.u32 %v2575, 2147483648
  %v3312 = vxor.u32 %v2766, 2147483648
  %v3313 = vxor.u32 %v2768, 2147483648
  %v3314 = vxor.u32 %v2959, 2147483648
  %v3315 = vxor.u32 %v2961, 2147483648
  %v3316 = vxor.u32 %v3136, 2147483648
  %v3317 = vxor.u32 %v2577, 2147483648
  %v3318 = vxor.u32 %v2579, 2147483648
  %v3319 = vxor.u32 %v2770, 2147483648
  %v3320 = vxor.u32 %v2772, 2147483648
  %v3321 = vxor.u32 %v2963, 2147483648
  %v3322 = vxor.u32 %v2965, 2147483648
  %v3323 = vxor.u32 %v3139, 2147483648
  %v3324 = vxor.u32 %v2583, 2147483648
  %v3325 = vxor.u32 %v2585, 2147483648
  %v3326 = vxor.u32 %v2776, 2147483648
  %v3327 = vxor.u32 %v2778, 2147483648
  %v3328 = vxor.u32 %v2969, 2147483648
  %v3329 = vxor.u32 %v2971, 2147483648
  %v3330 = vxor.u32 %v3144, 2147483648
  %v3331 = vxor.u32 %v2587, 2147483648
  %v3332 = vxor.u32 %v2589, 2147483648
  %v3333 = vxor.u32 %v2780, 2147483648
  %v3334 = vxor.u32 %v2782, 2147483648
  %v3335 = vxor.u32 %v2973, 2147483648
  %v3336 = vxor.u32 %v2975, 2147483648
  %v3337 = vxor.u32 %v3147, 2147483648
  %v3338 = vxor.u32 %v2593, 2147483648
  %v3339 = vxor.u32 %v2595, 2147483648
  %v3340 = vxor.u32 %v2786, 2147483648
  %v3341 = vxor.u32 %v2788, 2147483648
  %v3342 = vxor.u32 %v2979, 2147483648
  %v3343 = vxor.u32 %v2981, 2147483648
  %v3344 = vxor.u32 %v3152, 2147483648
  %v3345 = vxor.u32 %v2597, 2147483648
  %v3346 = vxor.u32 %v2599, 2147483648
  %v3347 = vxor.u32 %v2790, 2147483648
  %v3348 = vxor.u32 %v2792, 2147483648
  %v3349 = vxor.u32 %v2983, 2147483648
  %v3350 = vxor.u32 %v2985, 2147483648
  %v3351 = vxor.u32 %v3155, 2147483648
  %v3352 = vxor.u32 %v2603, 2147483648
  %v3353 = vxor.u32 %v2605, 2147483648
  %v3354 = vxor.u32 %v2796, 2147483648
  %v3355 = vxor.u32 %v2798, 2147483648
  %v3356 = vxor.u32 %v2989, 2147483648
  %v3357 = vxor.u32 %v2991, 2147483648
  %v3358 = vxor.u32 %v3160, 2147483648
  %v3359 = vxor.u32 %v2607, 2147483648
  %v3360 = vxor.u32 %v2609, 2147483648
  %v3361 = vxor.u32 %v2800, 2147483648
  %v3362 = vxor.u32 %v2802, 2147483648
  %v3363 = vxor.u32 %v2993, 2147483648
  %v3364 = vxor.u32 %v2995, 2147483648
  %v3365 = vxor.u32 %v3163, 2147483648
  %v3366 = vxor.u32 %v2613, 2147483648
  %v3367 = vxor.u32 %v2615, 2147483648
  %v3368 = vxor.u32 %v2806, 2147483648
  %v3369 = vxor.u32 %v2808, 2147483648
  %v3370 = vxor.u32 %v2999, 2147483648
  %v3371 = vxor.u32 %v3001, 2147483648
  %v3372 = vxor.u32 %v3168, 2147483648
  %v3373 = vxor.u32 %v2617, 2147483648
  %v3374 = vxor.u32 %v2619, 2147483648
  %v3375 = vxor.u32 %v2810, 2147483648
  %v3376 = vxor.u32 %v2812, 2147483648
  %v3377 = vxor.u32 %v3003, 2147483648
  %v3378 = vxor.u32 %v3005, 2147483648
  %v3379 = vxor.u32 %v3171, 2147483648
  %v3380 = vxor.u32 %v2623, 2147483648
  %v3381 = vxor.u32 %v2625, 2147483648
  %v3382 = vxor.u32 %v2816, 2147483648
  %v3383 = vxor.u32 %v2818, 2147483648
  %v3384 = vxor.u32 %v3009, 2147483648
  %v3385 = vxor.u32 %v3011, 2147483648
  %v3386 = vxor.u32 %v3176, 2147483648
  %v3387 = vxor.u32 %v2627, 2147483648
  %v3388 = vxor.u32 %v2629, 2147483648
  %v3389 = vxor.u32 %v2820, 2147483648
  %v3390 = vxor.u32 %v2822, 2147483648
  %v3391 = vxor.u32 %v3013, 2147483648
  %v3392 = vxor.u32 %v3015, 2147483648
  %v3393 = vxor.u32 %v3179, 2147483648
  %v3394 = vxor.u32 %v2633, 2147483648
  %v3395 = vxor.u32 %v2635, 2147483648
  %v3396 = vxor.u32 %v2826, 2147483648
  %v3397 = vxor.u32 %v2828, 2147483648
  %v3398 = vxor.u32 %v3019, 2147483648
  %v3399 = vxor.u32 %v3021, 2147483648
  %v3400 = vxor.u32 %v3184, 2147483648
  %v3401 = vxor.u32 %v2637, 2147483648
  %v3402 = vxor.u32 %v2639, 2147483648
  %v3403 = vxor.u32 %v2830, 2147483648
  %v3404 = vxor.u32 %v2832, 2147483648
  %v3405 = vxor.u32 %v3023, 2147483648
  %v3406 = vxor.u32 %v3025, 2147483648
  %v3407 = vxor.u32 %v3187, 2147483648
  %v3408 = vxor.u32 %v2643, 2147483648
  %v3409 = vxor.u32 %v2645, 2147483648
  %v3410 = vxor.u32 %v2836, 2147483648
  %v3411 = vxor.u32 %v2838, 2147483648
  %v3412 = vxor.u32 %v3029, 2147483648
  %v3413 = vxor.u32 %v3031, 2147483648
  %v3414 = vxor.u32 %v3192, 2147483648
  %v3415 = vxor.u32 %v2647, 2147483648
  %v3416 = vxor.u32 %v2649, 2147483648
  %v3417 = vxor.u32 %v2840, 2147483648
  %v3418 = vxor.u32 %v2842, 2147483648
  %v3419 = vxor.u32 %v3033, 2147483648
  %v3420 = vxor.u32 %v3035, 2147483648
  %v3421 = vxor.u32 %v3195, 2147483648
  %v3422 = vmul.f32 %v3198, 1.442695
  %v3423 = vpow.pop %v3422
  %v3424 = vmul.f32 %v3199, 1.442695
  %v3425 = vpow.pop %v3424
  %v3426 = vmul.f32 %v3200, 1.442695
  %v3427 = vpow.pop %v3426
  %v3428 = vmul.f32 %v3201, 1.442695
  %v3429 = vpow.pop %v3428
  %v3430 = vmul.f32 %v3202, 1.442695
  %v3431 = vpow.pop %v3430
  %v3432 = vmul.f32 %v3203, 1.442695
  %v3433 = vpow.pop %v3432
  %v3434 = vmul.f32 %v3204, 1.442695
  %v3435 = vpow.pop %v3434
  %v3436 = vmul.f32 %v3205, 1.442695
  %v3437 = vpow.pop %v3436
  %v3438 = vmul.f32 %v3206, 1.442695
  %v3439 = vpow.pop %v3438
  %v3440 = vmul.f32 %v3207, 1.442695
  %v3441 = vpow.pop %v3440
  %v3442 = vmul.f32 %v3208, 1.442695
  %v3443 = vpow.pop %v3442
  %v3444 = vmul.f32 %v3209, 1.442695
  %v3445 = vpow.pop %v3444
  %v3446 = vmul.f32 %v3210, 1.442695
  %v3447 = vpow.pop %v3446
  %v3448 = vmul.f32 %v3211, 1.442695
  %v3449 = vpow.pop %v3448
  %v3450 = vmul.f32 %v3212, 1.442695
  %v3451 = vpow.pop %v3450
  %v3452 = vmul.f32 %v3213, 1.442695
  %v3453 = vpow.pop %v3452
  %v3454 = vmul.f32 %v3214, 1.442695
  %v3455 = vpow.pop %v3454
  %v3456 = vmul.f32 %v3215, 1.442695
  %v3457 = vpow.pop %v3456
  %v3458 = vmul.f32 %v3216, 1.442695
  %v3459 = vpow.pop %v3458
  %v3460 = vmul.f32 %v3217, 1.442695
  %v3461 = vpow.pop %v3460
  %v3462 = vmul.f32 %v3218, 1.442695
  %v3463 = vpow.pop %v3462
  %v3464 = vmul.f32 %v3219, 1.442695
  %v3465 = vpow.pop %v3464
  %v3466 = vmul.f32 %v3220, 1.442695
  %v3467 = vpow.pop %v3466
  %v3468 = vmul.f32 %v3221, 1.442695
  %v3469 = vpow.pop %v3468
  %v3470 = vmul.f32 %v3222, 1.442695
  %v3471 = vpow.pop %v3470
  %v3472 = vmul.f32 %v3223, 1.442695
  %v3473 = vpow.pop %v3472
  %v3474 = vmul.f32 %v3224, 1.442695
  %v3475 = vpow.pop %v3474
  %v3476 = vmul.f32 %v3225, 1.442695
  %v3477 = vpow.pop %v3476
  %v3478 = vmul.f32 %v3226, 1.442695
  %v3479 = vpow.pop %v3478
  %v3480 = vmul.f32 %v3227, 1.442695
  %v3481 = vpow.pop %v3480
  %v3482 = vmul.f32 %v3228, 1.442695
  %v3483 = vpow.pop %v3482
  %v3484 = vmul.f32 %v3229, 1.442695
  %v3485 = vpow.pop %v3484
  %v3486 = vmul.f32 %v3230, 1.442695
  %v3487 = vpow.pop %v3486
  %v3488 = vmul.f32 %v3231, 1.442695
  %v3489 = vpow.pop %v3488
  %v3490 = vmul.f32 %v3232, 1.442695
  %v3491 = vpow.pop %v3490
  %v3492 = vmul.f32 %v3233, 1.442695
  %v3493 = vpow.pop %v3492
  %v3494 = vmul.f32 %v3234, 1.442695
  %v3495 = vpow.pop %v3494
  %v3496 = vmul.f32 %v3235, 1.442695
  %v3497 = vpow.pop %v3496
  %v3498 = vmul.f32 %v3236, 1.442695
  %v3499 = vpow.pop %v3498
  %v3500 = vmul.f32 %v3237, 1.442695
  %v3501 = vpow.pop %v3500
  %v3502 = vmul.f32 %v3238, 1.442695
  %v3503 = vpow.pop %v3502
  %v3504 = vmul.f32 %v3239, 1.442695
  %v3505 = vpow.pop %v3504
  %v3506 = vmul.f32 %v3240, 1.442695
  %v3507 = vpow.pop %v3506
  %v3508 = vmul.f32 %v3241, 1.442695
  %v3509 = vpow.pop %v3508
  %v3510 = vmul.f32 %v3242, 1.442695
  %v3511 = vpow.pop %v3510
  %v3512 = vmul.f32 %v3243, 1.442695
  %v3513 = vpow.pop %v3512
  %v3514 = vmul.f32 %v3244, 1.442695
  %v3515 = vpow.pop %v3514
  %v3516 = vmul.f32 %v3245, 1.442695
  %v3517 = vpow.pop %v3516
  %v3518 = vmul.f32 %v3246, 1.442695
  %v3519 = vpow.pop %v3518
  %v3520 = vmul.f32 %v3247, 1.442695
  %v3521 = vpow.pop %v3520
  %v3522 = vmul.f32 %v3248, 1.442695
  %v3523 = vpow.pop %v3522
  %v3524 = vmul.f32 %v3249, 1.442695
  %v3525 = vpow.pop %v3524
  %v3526 = vmul.f32 %v3250, 1.442695
  %v3527 = vpow.pop %v3526
  %v3528 = vmul.f32 %v3251, 1.442695
  %v3529 = vpow.pop %v3528
  %v3530 = vmul.f32 %v3252, 1.442695
  %v3531 = vpow.pop %v3530
  %v3532 = vmul.f32 %v3253, 1.442695
  %v3533 = vpow.pop %v3532
  %v3534 = vmul.f32 %v3254, 1.442695
  %v3535 = vpow.pop %v3534
  %v3536 = vmul.f32 %v3255, 1.442695
  %v3537 = vpow.pop %v3536
  %v3538 = vmul.f32 %v3256, 1.442695
  %v3539 = vpow.pop %v3538
  %v3540 = vmul.f32 %v3257, 1.442695
  %v3541 = vpow.pop %v3540
  %v3542 = vmul.f32 %v3258, 1.442695
  %v3543 = vpow.pop %v3542
  %v3544 = vmul.f32 %v3259, 1.442695
  %v3545 = vpow.pop %v3544
  %v3546 = vmul.f32 %v3260, 1.442695
  %v3547 = vpow.pop %v3546
  %v3548 = vmul.f32 %v3261, 1.442695
  %v3549 = vpow.pop %v3548
  %v3550 = vmul.f32 %v3262, 1.442695
  %v3551 = vpow.pop %v3550
  %v3552 = vmul.f32 %v3263, 1.442695
  %v3553 = vpow.pop %v3552
  %v3554 = vmul.f32 %v3264, 1.442695
  %v3555 = vpow.pop %v3554
  %v3556 = vmul.f32 %v3265, 1.442695
  %v3557 = vpow.pop %v3556
  %v3558 = vmul.f32 %v3266, 1.442695
  %v3559 = vpow.pop %v3558
  %v3560 = vmul.f32 %v3267, 1.442695
  %v3561 = vpow.pop %v3560
  %v3562 = vmul.f32 %v3268, 1.442695
  %v3563 = vpow.pop %v3562
  %v3564 = vmul.f32 %v3269, 1.442695
  %v3565 = vpow.pop %v3564
  %v3566 = vmul.f32 %v3270, 1.442695
  %v3567 = vpow.pop %v3566
  %v3568 = vmul.f32 %v3271, 1.442695
  %v3569 = vpow.pop %v3568
  %v3570 = vmul.f32 %v3272, 1.442695
  %v3571 = vpow.pop %v3570
  %v3572 = vmul.f32 %v3273, 1.442695
  %v3573 = vpow.pop %v3572
  %v3574 = vmul.f32 %v3274, 1.442695
  %v3575 = vpow.pop %v3574
  %v3576 = vmul.f32 %v3275, 1.442695
  %v3577 = vpow.pop %v3576
  %v3578 = vmul.f32 %v3276, 1.442695
  %v3579 = vpow.pop %v3578
  %v3580 = vmul.f32 %v3277, 1.442695
  %v3581 = vpow.pop %v3580
  %v3582 = vmul.f32 %v3278, 1.442695
  %v3583 = vpow.pop %v3582
  %v3584 = vmul.f32 %v3279, 1.442695
  %v3585 = vpow.pop %v3584
  %v3586 = vmul.f32 %v3280, 1.442695
  %v3587 = vpow.pop %v3586
  %v3588 = vmul.f32 %v3281, 1.442695
  %v3589 = vpow.pop %v3588
  %v3590 = vmul.f32 %v3282, 1.442695
  %v3591 = vpow.pop %v3590
  %v3592 = vmul.f32 %v3283, 1.442695
  %v3593 = vpow.pop %v3592
  %v3594 = vmul.f32 %v3284, 1.442695
  %v3595 = vpow.pop %v3594
  %v3596 = vmul.f32 %v3285, 1.442695
  %v3597 = vpow.pop %v3596
  %v3598 = vmul.f32 %v3286, 1.442695
  %v3599 = vpow.pop %v3598
  %v3600 = vmul.f32 %v3287, 1.442695
  %v3601 = vpow.pop %v3600
  %v3602 = vmul.f32 %v3288, 1.442695
  %v3603 = vpow.pop %v3602
  %v3604 = vmul.f32 %v3289, 1.442695
  %v3605 = vpow.pop %v3604
  %v3606 = vmul.f32 %v3290, 1.442695
  %v3607 = vpow.pop %v3606
  %v3608 = vmul.f32 %v3291, 1.442695
  %v3609 = vpow.pop %v3608
  %v3610 = vmul.f32 %v3292, 1.442695
  %v3611 = vpow.pop %v3610
  %v3612 = vmul.f32 %v3293, 1.442695
  %v3613 = vpow.pop %v3612
  %v3614 = vmul.f32 %v3294, 1.442695
  %v3615 = vpow.pop %v3614
  %v3616 = vmul.f32 %v3295, 1.442695
  %v3617 = vpow.pop %v3616
  %v3618 = vmul.f32 %v3296, 1.442695
  %v3619 = vpow.pop %v3618
  %v3620 = vmul.f32 %v3297, 1.442695
  %v3621 = vpow.pop %v3620
  %v3622 = vmul.f32 %v3298, 1.442695
  %v3623 = vpow.pop %v3622
  %v3624 = vmul.f32 %v3299, 1.442695
  %v3625 = vpow.pop %v3624
  %v3626 = vmul.f32 %v3300, 1.442695
  %v3627 = vpow.pop %v3626
  %v3628 = vmul.f32 %v3301, 1.442695
  %v3629 = vpow.pop %v3628
  %v3630 = vmul.f32 %v3302, 1.442695
  %v3631 = vpow.pop %v3630
  %v3632 = vmul.f32 %v3303, 1.442695
  %v3633 = vpow.pop %v3632
  %v3634 = vmul.f32 %v3304, 1.442695
  %v3635 = vpow.pop %v3634
  %v3636 = vmul.f32 %v3305, 1.442695
  %v3637 = vpow.pop %v3636
  %v3638 = vmul.f32 %v3306, 1.442695
  %v3639 = vpow.pop %v3638
  %v3640 = vmul.f32 %v3307, 1.442695
  %v3641 = vpow.pop %v3640
  %v3642 = vmul.f32 %v3308, 1.442695
  %v3643 = vpow.pop %v3642
  %v3644 = vmul.f32 %v3309, 1.442695
  %v3645 = vpow.pop %v3644
  %v3646 = vmul.f32 %v3310, 1.442695
  %v3647 = vpow.pop %v3646
  %v3648 = vmul.f32 %v3311, 1.442695
  %v3649 = vpow.pop %v3648
  %v3650 = vmul.f32 %v3312, 1.442695
  %v3651 = vpow.pop %v3650
  %v3652 = vmul.f32 %v3313, 1.442695
  %v3653 = vpow.pop %v3652
  %v3654 = vmul.f32 %v3314, 1.442695
  %v3655 = vpow.pop %v3654
  %v3656 = vmul.f32 %v3315, 1.442695
  %v3657 = vpow.pop %v3656
  %v3658 = vmul.f32 %v3316, 1.442695
  %v3659 = vpow.pop %v3658
  %v3660 = vmul.f32 %v3317, 1.442695
  %v3661 = vpow.pop %v3660
  %v3662 = vmul.f32 %v3318, 1.442695
  %v3663 = vpow.pop %v3662
  %v3664 = vmul.f32 %v3319, 1.442695
  %v3665 = vpow.pop %v3664
  %v3666 = vmul.f32 %v3320, 1.442695
  %v3667 = vpow.pop %v3666
  %v3668 = vmul.f32 %v3321, 1.442695
  %v3669 = vpow.pop %v3668
  %v3670 = vmul.f32 %v3322, 1.442695
  %v3671 = vpow.pop %v3670
  %v3672 = vmul.f32 %v3323, 1.442695
  %v3673 = vpow.pop %v3672
  %v3674 = vmul.f32 %v3324, 1.442695
  %v3675 = vpow.pop %v3674
  %v3676 = vmul.f32 %v3325, 1.442695
  %v3677 = vpow.pop %v3676
  %v3678 = vmul.f32 %v3326, 1.442695
  %v3679 = vpow.pop %v3678
  %v3680 = vmul.f32 %v3327, 1.442695
  %v3681 = vpow.pop %v3680
  %v3682 = vmul.f32 %v3328, 1.442695
  %v3683 = vpow.pop %v3682
  %v3684 = vmul.f32 %v3329, 1.442695
  %v3685 = vpow.pop %v3684
  %v3686 = vmul.f32 %v3330, 1.442695
  %v3687 = vpow.pop %v3686
  %v3688 = vmul.f32 %v3331, 1.442695
  %v3689 = vpow.pop %v3688
  %v3690 = vmul.f32 %v3332, 1.442695
  %v3691 = vpow.pop %v3690
  %v3692 = vmul.f32 %v3333, 1.442695
  %v3693 = vpow.pop %v3692
  %v3694 = vmul.f32 %v3334, 1.442695
  %v3695 = vpow.pop %v3694
  %v3696 = vmul.f32 %v3335, 1.442695
  %v3697 = vpow.pop %v3696
  %v3698 = vmul.f32 %v3336, 1.442695
  %v3699 = vpow.pop %v3698
  %v3700 = vmul.f32 %v3337, 1.442695
  %v3701 = vpow.pop %v3700
  %v3702 = vmul.f32 %v3338, 1.442695
  %v3703 = vpow.pop %v3702
  %v3704 = vmul.f32 %v3339, 1.442695
  %v3705 = vpow.pop %v3704
  %v3706 = vmul.f32 %v3340, 1.442695
  %v3707 = vpow.pop %v3706
  %v3708 = vmul.f32 %v3341, 1.442695
  %v3709 = vpow.pop %v3708
  %v3710 = vmul.f32 %v3342, 1.442695
  %v3711 = vpow.pop %v3710
  %v3712 = vmul.f32 %v3343, 1.442695
  %v3713 = vpow.pop %v3712
  %v3714 = vmul.f32 %v3344, 1.442695
  %v3715 = vpow.pop %v3714
  %v3716 = vmul.f32 %v3345, 1.442695
  %v3717 = vpow.pop %v3716
  %v3718 = vmul.f32 %v3346, 1.442695
  %v3719 = vpow.pop %v3718
  %v3720 = vmul.f32 %v3347, 1.442695
  %v3721 = vpow.pop %v3720
  %v3722 = vmul.f32 %v3348, 1.442695
  %v3723 = vpow.pop %v3722
  %v3724 = vmul.f32 %v3349, 1.442695
  %v3725 = vpow.pop %v3724
  %v3726 = vmul.f32 %v3350, 1.442695
  %v3727 = vpow.pop %v3726
  %v3728 = vmul.f32 %v3351, 1.442695
  %v3729 = vpow.pop %v3728
  %v3730 = vmul.f32 %v3352, 1.442695
  %v3731 = vpow.pop %v3730
  %v3732 = vmul.f32 %v3353, 1.442695
  %v3733 = vpow.pop %v3732
  %v3734 = vmul.f32 %v3354, 1.442695
  %v3735 = vpow.pop %v3734
  %v3736 = vmul.f32 %v3355, 1.442695
  %v3737 = vpow.pop %v3736
  %v3738 = vmul.f32 %v3356, 1.442695
  %v3739 = vpow.pop %v3738
  %v3740 = vmul.f32 %v3357, 1.442695
  %v3741 = vpow.pop %v3740
  %v3742 = vmul.f32 %v3358, 1.442695
  %v3743 = vpow.pop %v3742
  %v3744 = vmul.f32 %v3359, 1.442695
  %v3745 = vpow.pop %v3744
  %v3746 = vmul.f32 %v3360, 1.442695
  %v3747 = vpow.pop %v3746
  %v3748 = vmul.f32 %v3361, 1.442695
  %v3749 = vpow.pop %v3748
  %v3750 = vmul.f32 %v3362, 1.442695
  %v3751 = vpow.pop %v3750
  %v3752 = vmul.f32 %v3363, 1.442695
  %v3753 = vpow.pop %v3752
  %v3754 = vmul.f32 %v3364, 1.442695
  %v3755 = vpow.pop %v3754
  %v3756 = vmul.f32 %v3365, 1.442695
  %v3757 = vpow.pop %v3756
  %v3758 = vmul.f32 %v3366, 1.442695
  %v3759 = vpow.pop %v3758
  %v3760 = vmul.f32 %v3367, 1.442695
  %v3761 = vpow.pop %v3760
  %v3762 = vmul.f32 %v3368, 1.442695
  %v3763 = vpow.pop %v3762
  %v3764 = vmul.f32 %v3369, 1.442695
  %v3765 = vpow.pop %v3764
  %v3766 = vmul.f32 %v3370, 1.442695
  %v3767 = vpow.pop %v3766
  %v3768 = vmul.f32 %v3371, 1.442695
  %v3769 = vpow.pop %v3768
  %v3770 = vmul.f32 %v3372, 1.442695
  %v3771 = vpow.pop %v3770
  %v3772 = vmul.f32 %v3373, 1.442695
  %v3773 = vpow.pop %v3772
  %v3774 = vmul.f32 %v3374, 1.442695
  %v3775 = vpow.pop %v3774
  %v3776 = vmul.f32 %v3375, 1.442695
  %v3777 = vpow.pop %v3776
  %v3778 = vmul.f32 %v3376, 1.442695
  %v3779 = vpow.pop %v3778
  %v3780 = vmul.f32 %v3377, 1.442695
  %v3781 = vpow.pop %v3780
  %v3782 = vmul.f32 %v3378, 1.442695
  %v3783 = vpow.pop %v3782
  %v3784 = vmul.f32 %v3379, 1.442695
  %v3785 = vpow.pop %v3784
  %v3786 = vmul.f32 %v3380, 1.442695
  %v3787 = vpow.pop %v3786
  %v3788 = vmul.f32 %v3381, 1.442695
  %v3789 = vpow.pop %v3788
  %v3790 = vmul.f32 %v3382, 1.442695
  %v3791 = vpow.pop %v3790
  %v3792 = vmul.f32 %v3383, 1.442695
  %v3793 = vpow.pop %v3792
  %v3794 = vmul.f32 %v3384, 1.442695
  %v3795 = vpow.pop %v3794
  %v3796 = vmul.f32 %v3385, 1.442695
  %v3797 = vpow.pop %v3796
  %v3798 = vmul.f32 %v3386, 1.442695
  %v3799 = vpow.pop %v3798
  %v3800 = vmul.f32 %v3387, 1.442695
  %v3801 = vpow.pop %v3800
  %v3802 = vmul.f32 %v3388, 1.442695
  %v3803 = vpow.pop %v3802
  %v3804 = vmul.f32 %v3389, 1.442695
  %v3805 = vpow.pop %v3804
  %v3806 = vmul.f32 %v3390, 1.442695
  %v3807 = vpow.pop %v3806
  %v3808 = vmul.f32 %v3391, 1.442695
  %v3809 = vpow.pop %v3808
  %v3810 = vmul.f32 %v3392, 1.442695
  %v3811 = vpow.pop %v3810
  %v3812 = vmul.f32 %v3393, 1.442695
  %v3813 = vpow.pop %v3812
  %v3814 = vmul.f32 %v3394, 1.442695
  %v3815 = vpow.pop %v3814
  %v3816 = vmul.f32 %v3395, 1.442695
  %v3817 = vpow.pop %v3816
  %v3818 = vmul.f32 %v3396, 1.442695
  %v3819 = vpow.pop %v3818
  %v3820 = vmul.f32 %v3397, 1.442695
  %v3821 = vpow.pop %v3820
  %v3822 = vmul.f32 %v3398, 1.442695
  %v3823 = vpow.pop %v3822
  %v3824 = vmul.f32 %v3399, 1.442695
  %v3825 = vpow.pop %v3824
  %v3826 = vmul.f32 %v3400, 1.442695
  %v3827 = vpow.pop %v3826
  %v3828 = vmul.f32 %v3401, 1.442695
  %v3829 = vpow.pop %v3828
  %v3830 = vmul.f32 %v3402, 1.442695
  %v3831 = vpow.pop %v3830
  %v3832 = vmul.f32 %v3403, 1.442695
  %v3833 = vpow.pop %v3832
  %v3834 = vmul.f32 %v3404, 1.442695
  %v3835 = vpow.pop %v3834
  %v3836 = vmul.f32 %v3405, 1.442695
  %v3837 = vpow.pop %v3836
  %v3838 = vmul.f32 %v3406, 1.442695
  %v3839 = vpow.pop %v3838
  %v3840 = vmul.f32 %v3407, 1.442695
  %v3841 = vpow.pop %v3840
  %v3842 = vmul.f32 %v3408, 1.442695
  %v3843 = vpow.pop %v3842
  %v3844 = vmul.f32 %v3409, 1.442695
  %v3845 = vpow.pop %v3844
  %v3846 = vmul.f32 %v3410, 1.442695
  %v3847 = vpow.pop %v3846
  %v3848 = vmul.f32 %v3411, 1.442695
  %v3849 = vpow.pop %v3848
  %v3850 = vmul.f32 %v3412, 1.442695
  %v3851 = vpow.pop %v3850
  %v3852 = vmul.f32 %v3413, 1.442695
  %v3853 = vpow.pop %v3852
  %v3854 = vmul.f32 %v3414, 1.442695
  %v3855 = vpow.pop %v3854
  %v3856 = vmul.f32 %v3415, 1.442695
  %v3857 = vpow.pop %v3856
  %v3858 = vmul.f32 %v3416, 1.442695
  %v3859 = vpow.pop %v3858
  %v3860 = vmul.f32 %v3417, 1.442695
  %v3861 = vpow.pop %v3860
  %v3862 = vmul.f32 %v3418, 1.442695
  %v3863 = vpow.pop %v3862
  %v3864 = vmul.f32 %v3419, 1.442695
  %v3865 = vpow.pop %v3864
  %v3866 = vmul.f32 %v3420, 1.442695
  %v3867 = vpow.pop %v3866
  %v3868 = vmul.f32 %v3421, 1.442695
  %v3869 = vpow.pop %v3868
  %v3870 = vadd.f32 %v3423, 1.0
  %v3871 = vadd.f32 %v3425, 1.0
  %v3872 = vadd.f32 %v3427, 1.0
  %v3873 = vadd.f32 %v3429, 1.0
  %v3874 = vadd.f32 %v3431, 1.0
  %v3875 = vadd.f32 %v3433, 1.0
  %v3876 = vadd.f32 %v3435, 1.0
  %v3877 = vadd.f32 %v3437, 1.0
  %v3878 = vadd.f32 %v3439, 1.0
  %v3879 = vadd.f32 %v3441, 1.0
  %v3880 = vadd.f32 %v3443, 1.0
  %v3881 = vadd.f32 %v3445, 1.0
  %v3882 = vadd.f32 %v3447, 1.0
  %v3883 = vadd.f32 %v3449, 1.0
  %v3884 = vadd.f32 %v3451, 1.0
  %v3885 = vadd.f32 %v3453, 1.0
  %v3886 = vadd.f32 %v3455, 1.0
  %v3887 = vadd.f32 %v3457, 1.0
  %v3888 = vadd.f32 %v3459, 1.0
  %v3889 = vadd.f32 %v3461, 1.0
  %v3890 = vadd.f32 %v3463, 1.0
  %v3891 = vadd.f32 %v3465, 1.0
  %v3892 = vadd.f32 %v3467, 1.0
  %v3893 = vadd.f32 %v3469, 1.0
  %v3894 = vadd.f32 %v3471, 1.0
  %v3895 = vadd.f32 %v3473, 1.0
  %v3896 = vadd.f32 %v3475, 1.0
  %v3897 = vadd.f32 %v3477, 1.0
  %v3898 = vadd.f32 %v3479, 1.0
  %v3899 = vadd.f32 %v3481, 1.0
  %v3900 = vadd.f32 %v3483, 1.0
  %v3901 = vadd.f32 %v3485, 1.0
  %v3902 = vadd.f32 %v3487, 1.0
  %v3903 = vadd.f32 %v3489, 1.0
  %v3904 = vadd.f32 %v3491, 1.0
  %v3905 = vadd.f32 %v3493, 1.0
  %v3906 = vadd.f32 %v3495, 1.0
  %v3907 = vadd.f32 %v3497, 1.0
  %v3908 = vadd.f32 %v3499, 1.0
  %v3909 = vadd.f32 %v3501, 1.0
  %v3910 = vadd.f32 %v3503, 1.0
  %v3911 = vadd.f32 %v3505, 1.0
  %v3912 = vadd.f32 %v3507, 1.0
  %v3913 = vadd.f32 %v3509, 1.0
  %v3914 = vadd.f32 %v3511, 1.0
  %v3915 = vadd.f32 %v3513, 1.0
  %v3916 = vadd.f32 %v3515, 1.0
  %v3917 = vadd.f32 %v3517, 1.0
  %v3918 = vadd.f32 %v3519, 1.0
  %v3919 = vadd.f32 %v3521, 1.0
  %v3920 = vadd.f32 %v3523, 1.0
  %v3921 = vadd.f32 %v3525, 1.0
  %v3922 = vadd.f32 %v3527, 1.0
  %v3923 = vadd.f32 %v3529, 1.0
  %v3924 = vadd.f32 %v3531, 1.0
  %v3925 = vadd.f32 %v3533, 1.0
  %v3926 = vadd.f32 %v3535, 1.0
  %v3927 = vadd.f32 %v3537, 1.0
  %v3928 = vadd.f32 %v3539, 1.0
  %v3929 = vadd.f32 %v3541, 1.0
  %v3930 = vadd.f32 %v3543, 1.0
  %v3931 = vadd.f32 %v3545, 1.0
  %v3932 = vadd.f32 %v3547, 1.0
  %v3933 = vadd.f32 %v3549, 1.0
  %v3934 = vadd.f32 %v3551, 1.0
  %v3935 = vadd.f32 %v3553, 1.0
  %v3936 = vadd.f32 %v3555, 1.0
  %v3937 = vadd.f32 %v3557, 1.0
  %v3938 = vadd.f32 %v3559, 1.0
  %v3939 = vadd.f32 %v3561, 1.0
  %v3940 = vadd.f32 %v3563, 1.0
  %v3941 = vadd.f32 %v3565, 1.0
  %v3942 = vadd.f32 %v3567, 1.0
  %v3943 = vadd.f32 %v3569, 1.0
  %v3944 = vadd.f32 %v3571, 1.0
  %v3945 = vadd.f32 %v3573, 1.0
  %v3946 = vadd.f32 %v3575, 1.0
  %v3947 = vadd.f32 %v3577, 1.0
  %v3948 = vadd.f32 %v3579, 1.0
  %v3949 = vadd.f32 %v3581, 1.0
  %v3950 = vadd.f32 %v3583, 1.0
  %v3951 = vadd.f32 %v3585, 1.0
  %v3952 = vadd.f32 %v3587, 1.0
  %v3953 = vadd.f32 %v3589, 1.0
  %v3954 = vadd.f32 %v3591, 1.0
  %v3955 = vadd.f32 %v3593, 1.0
  %v3956 = vadd.f32 %v3595, 1.0
  %v3957 = vadd.f32 %v3597, 1.0
  %v3958 = vadd.f32 %v3599, 1.0
  %v3959 = vadd.f32 %v3601, 1.0
  %v3960 = vadd.f32 %v3603, 1.0
  %v3961 = vadd.f32 %v3605, 1.0
  %v3962 = vadd.f32 %v3607, 1.0
  %v3963 = vadd.f32 %v3609, 1.0
  %v3964 = vadd.f32 %v3611, 1.0
  %v3965 = vadd.f32 %v3613, 1.0
  %v3966 = vadd.f32 %v3615, 1.0
  %v3967 = vadd.f32 %v3617, 1.0
  %v3968 = vadd.f32 %v3619, 1.0
  %v3969 = vadd.f32 %v3621, 1.0
  %v3970 = vadd.f32 %v3623, 1.0
  %v3971 = vadd.f32 %v3625, 1.0
  %v3972 = vadd.f32 %v3627, 1.0
  %v3973 = vadd.f32 %v3629, 1.0
  %v3974 = vadd.f32 %v3631, 1.0
  %v3975 = vadd.f32 %v3633, 1.0
  %v3976 = vadd.f32 %v3635, 1.0
  %v3977 = vadd.f32 %v3637, 1.0
  %v3978 = vadd.f32 %v3639, 1.0
  %v3979 = vadd.f32 %v3641, 1.0
  %v3980 = vadd.f32 %v3643, 1.0
  %v3981 = vadd.f32 %v3645, 1.0
  %v3982 = vadd.f32 %v3647, 1.0
  %v3983 = vadd.f32 %v3649, 1.0
  %v3984 = vadd.f32 %v3651, 1.0
  %v3985 = vadd.f32 %v3653, 1.0
  %v3986 = vadd.f32 %v3655, 1.0
  %v3987 = vadd.f32 %v3657, 1.0
  %v3988 = vadd.f32 %v3659, 1.0
  %v3989 = vadd.f32 %v3661, 1.0
  %v3990 = vadd.f32 %v3663, 1.0
  %v3991 = vadd.f32 %v3665, 1.0
  %v3992 = vadd.f32 %v3667, 1.0
  %v3993 = vadd.f32 %v3669, 1.0
  %v3994 = vadd.f32 %v3671, 1.0
  %v3995 = vadd.f32 %v3673, 1.0
  %v3996 = vadd.f32 %v3675, 1.0
  %v3997 = vadd.f32 %v3677, 1.0
  %v3998 = vadd.f32 %v3679, 1.0
  %v3999 = vadd.f32 %v3681, 1.0
  %v4000 = vadd.f32 %v3683, 1.0
  %v4001 = vadd.f32 %v3685, 1.0
  %v4002 = vadd.f32 %v3687, 1.0
  %v4003 = vadd.f32 %v3689, 1.0
  %v4004 = vadd.f32 %v3691, 1.0
  %v4005 = vadd.f32 %v3693, 1.0
  %v4006 = vadd.f32 %v3695, 1.0
  %v4007 = vadd.f32 %v3697, 1.0
  %v4008 = vadd.f32 %v3699, 1.0
  %v4009 = vadd.f32 %v3701, 1.0
  %v4010 = vadd.f32 %v3703, 1.0
  %v4011 = vadd.f32 %v3705, 1.0
  %v4012 = vadd.f32 %v3707, 1.0
  %v4013 = vadd.f32 %v3709, 1.0
  %v4014 = vadd.f32 %v3711, 1.0
  %v4015 = vadd.f32 %v3713, 1.0
  %v4016 = vadd.f32 %v3715, 1.0
  %v4017 = vadd.f32 %v3717, 1.0
  %v4018 = vadd.f32 %v3719, 1.0
  %v4019 = vadd.f32 %v3721, 1.0
  %v4020 = vadd.f32 %v3723, 1.0
  %v4021 = vadd.f32 %v3725, 1.0
  %v4022 = vadd.f32 %v3727, 1.0
  %v4023 = vadd.f32 %v3729, 1.0
  %v4024 = vadd.f32 %v3731, 1.0
  %v4025 = vadd.f32 %v3733, 1.0
  %v4026 = vadd.f32 %v3735, 1.0
  %v4027 = vadd.f32 %v3737, 1.0
  %v4028 = vadd.f32 %v3739, 1.0
  %v4029 = vadd.f32 %v3741, 1.0
  %v4030 = vadd.f32 %v3743, 1.0
  %v4031 = vadd.f32 %v3745, 1.0
  %v4032 = vadd.f32 %v3747, 1.0
  %v4033 = vadd.f32 %v3749, 1.0
  %v4034 = vadd.f32 %v3751, 1.0
  %v4035 = vadd.f32 %v3753, 1.0
  %v4036 = vadd.f32 %v3755, 1.0
  %v4037 = vadd.f32 %v3757, 1.0
  %v4038 = vadd.f32 %v3759, 1.0
  %v4039 = vadd.f32 %v3761, 1.0
  %v4040 = vadd.f32 %v3763, 1.0
  %v4041 = vadd.f32 %v3765, 1.0
  %v4042 = vadd.f32 %v3767, 1.0
  %v4043 = vadd.f32 %v3769, 1.0
  %v4044 = vadd.f32 %v3771, 1.0
  %v4045 = vadd.f32 %v3773, 1.0
  %v4046 = vadd.f32 %v3775, 1.0
  %v4047 = vadd.f32 %v3777, 1.0
  %v4048 = vadd.f32 %v3779, 1.0
  %v4049 = vadd.f32 %v3781, 1.0
  %v4050 = vadd.f32 %v3783, 1.0
  %v4051 = vadd.f32 %v3785, 1.0
  %v4052 = vadd.f32 %v3787, 1.0
  %v4053 = vadd.f32 %v3789, 1.0
  %v4054 = vadd.f32 %v3791, 1.0
  %v4055 = vadd.f32 %v3793, 1.0
  %v4056 = vadd.f32 %v3795, 1.0
  %v4057 = vadd.f32 %v3797, 1.0
  %v4058 = vadd.f32 %v3799, 1.0
  %v4059 = vadd.f32 %v3801, 1.0
  %v4060 = vadd.f32 %v3803, 1.0
  %v4061 = vadd.f32 %v3805, 1.0
  %v4062 = vadd.f32 %v3807, 1.0
  %v4063 = vadd.f32 %v3809, 1.0
  %v4064 = vadd.f32 %v3811, 1.0
  %v4065 = vadd.f32 %v3813, 1.0
  %v4066 = vadd.f32 %v3815, 1.0
  %v4067 = vadd.f32 %v3817, 1.0
  %v4068 = vadd.f32 %v3819, 1.0
  %v4069 = vadd.f32 %v3821, 1.0
  %v4070 = vadd.f32 %v3823, 1.0
  %v4071 = vadd.f32 %v3825, 1.0
  %v4072 = vadd.f32 %v3827, 1.0
  %v4073 = vadd.f32 %v3829, 1.0
  %v4074 = vadd.f32 %v3831, 1.0
  %v4075 = vadd.f32 %v3833, 1.0
  %v4076 = vadd.f32 %v3835, 1.0
  %v4077 = vadd.f32 %v3837, 1.0
  %v4078 = vadd.f32 %v3839, 1.0
  %v4079 = vadd.f32 %v3841, 1.0
  %v4080 = vadd.f32 %v3843, 1.0
  %v4081 = vadd.f32 %v3845, 1.0
  %v4082 = vadd.f32 %v3847, 1.0
  %v4083 = vadd.f32 %v3849, 1.0
  %v4084 = vadd.f32 %v3851, 1.0
  %v4085 = vadd.f32 %v3853, 1.0
  %v4086 = vadd.f32 %v3855, 1.0
  %v4087 = vadd.f32 %v3857, 1.0
  %v4088 = vadd.f32 %v3859, 1.0
  %v4089 = vadd.f32 %v3861, 1.0
  %v4090 = vadd.f32 %v3863, 1.0
  %v4091 = vadd.f32 %v3865, 1.0
  %v4092 = vadd.f32 %v3867, 1.0
  %v4093 = vadd.f32 %v3869, 1.0
  %v4094 = vrcp.pop %v3870
  %v4095 = vmul.f32 1.0, %v4094
  %v4096 = vrcp.pop %v3871
  %v4097 = vmul.f32 1.0, %v4096
  %v4098 = vrcp.pop %v3872
  %v4099 = vmul.f32 1.0, %v4098
  %v4100 = vrcp.pop %v3873
  %v4101 = vmul.f32 1.0, %v4100
  %v4102 = vrcp.pop %v3874
  %v4103 = vmul.f32 1.0, %v4102
  %v4104 = vrcp.pop %v3875
  %v4105 = vmul.f32 1.0, %v4104
  %v4106 = vrcp.pop %v3876
  %v4107 = vmul.f32 1.0, %v4106
  %v4108 = vrcp.pop %v3877
  %v4109 = vmul.f32 1.0, %v4108
  %v4110 = vrcp.pop %v3878
  %v4111 = vmul.f32 1.0, %v4110
  %v4112 = vrcp.pop %v3879
  %v4113 = vmul.f32 1.0, %v4112
  %v4114 = vrcp.pop %v3880
  %v4115 = vmul.f32 1.0, %v4114
  %v4116 = vrcp.pop %v3881
  %v4117 = vmul.f32 1.0, %v4116
  %v4118 = vrcp.pop %v3882
  %v4119 = vmul.f32 1.0, %v4118
  %v4120 = vrcp.pop %v3883
  %v4121 = vmul.f32 1.0, %v4120
  %v4122 = vrcp.pop %v3884
  %v4123 = vmul.f32 1.0, %v4122
  %v4124 = vrcp.pop %v3885
  %v4125 = vmul.f32 1.0, %v4124
  %v4126 = vrcp.pop %v3886
  %v4127 = vmul.f32 1.0, %v4126
  %v4128 = vrcp.pop %v3887
  %v4129 = vmul.f32 1.0, %v4128
  %v4130 = vrcp.pop %v3888
  %v4131 = vmul.f32 1.0, %v4130
  %v4132 = vrcp.pop %v3889
  %v4133 = vmul.f32 1.0, %v4132
  %v4134 = vrcp.pop %v3890
  %v4135 = vmul.f32 1.0, %v4134
  %v4136 = vrcp.pop %v3891
  %v4137 = vmul.f32 1.0, %v4136
  %v4138 = vrcp.pop %v3892
  %v4139 = vmul.f32 1.0, %v4138
  %v4140 = vrcp.pop %v3893
  %v4141 = vmul.f32 1.0, %v4140
  %v4142 = vrcp.pop %v3894
  %v4143 = vmul.f32 1.0, %v4142
  %v4144 = vrcp.pop %v3895
  %v4145 = vmul.f32 1.0, %v4144
  %v4146 = vrcp.pop %v3896
  %v4147 = vmul.f32 1.0, %v4146
  %v4148 = vrcp.pop %v3897
  %v4149 = vmul.f32 1.0, %v4148
  %v4150 = vrcp.pop %v3898
  %v4151 = vmul.f32 1.0, %v4150
  %v4152 = vrcp.pop %v3899
  %v4153 = vmul.f32 1.0, %v4152
  %v4154 = vrcp.pop %v3900
  %v4155 = vmul.f32 1.0, %v4154
  %v4156 = vrcp.pop %v3901
  %v4157 = vmul.f32 1.0, %v4156
  %v4158 = vrcp.pop %v3902
  %v4159 = vmul.f32 1.0, %v4158
  %v4160 = vrcp.pop %v3903
  %v4161 = vmul.f32 1.0, %v4160
  %v4162 = vrcp.pop %v3904
  %v4163 = vmul.f32 1.0, %v4162
  %v4164 = vrcp.pop %v3905
  %v4165 = vmul.f32 1.0, %v4164
  %v4166 = vrcp.pop %v3906
  %v4167 = vmul.f32 1.0, %v4166
  %v4168 = vrcp.pop %v3907
  %v4169 = vmul.f32 1.0, %v4168
  %v4170 = vrcp.pop %v3908
  %v4171 = vmul.f32 1.0, %v4170
  %v4172 = vrcp.pop %v3909
  %v4173 = vmul.f32 1.0, %v4172
  %v4174 = vrcp.pop %v3910
  %v4175 = vmul.f32 1.0, %v4174
  %v4176 = vrcp.pop %v3911
  %v4177 = vmul.f32 1.0, %v4176
  %v4178 = vrcp.pop %v3912
  %v4179 = vmul.f32 1.0, %v4178
  %v4180 = vrcp.pop %v3913
  %v4181 = vmul.f32 1.0, %v4180
  %v4182 = vrcp.pop %v3914
  %v4183 = vmul.f32 1.0, %v4182
  %v4184 = vrcp.pop %v3915
  %v4185 = vmul.f32 1.0, %v4184
  %v4186 = vrcp.pop %v3916
  %v4187 = vmul.f32 1.0, %v4186
  %v4188 = vrcp.pop %v3917
  %v4189 = vmul.f32 1.0, %v4188
  %v4190 = vrcp.pop %v3918
  %v4191 = vmul.f32 1.0, %v4190
  %v4192 = vrcp.pop %v3919
  %v4193 = vmul.f32 1.0, %v4192
  %v4194 = vrcp.pop %v3920
  %v4195 = vmul.f32 1.0, %v4194
  %v4196 = vrcp.pop %v3921
  %v4197 = vmul.f32 1.0, %v4196
  %v4198 = vrcp.pop %v3922
  %v4199 = vmul.f32 1.0, %v4198
  %v4200 = vrcp.pop %v3923
  %v4201 = vmul.f32 1.0, %v4200
  %v4202 = vrcp.pop %v3924
  %v4203 = vmul.f32 1.0, %v4202
  %v4204 = vrcp.pop %v3925
  %v4205 = vmul.f32 1.0, %v4204
  %v4206 = vrcp.pop %v3926
  %v4207 = vmul.f32 1.0, %v4206
  %v4208 = vrcp.pop %v3927
  %v4209 = vmul.f32 1.0, %v4208
  %v4210 = vrcp.pop %v3928
  %v4211 = vmul.f32 1.0, %v4210
  %v4212 = vrcp.pop %v3929
  %v4213 = vmul.f32 1.0, %v4212
  %v4214 = vrcp.pop %v3930
  %v4215 = vmul.f32 1.0, %v4214
  %v4216 = vrcp.pop %v3931
  %v4217 = vmul.f32 1.0, %v4216
  %v4218 = vrcp.pop %v3932
  %v4219 = vmul.f32 1.0, %v4218
  %v4220 = vrcp.pop %v3933
  %v4221 = vmul.f32 1.0, %v4220
  %v4222 = vrcp.pop %v3934
  %v4223 = vmul.f32 1.0, %v4222
  %v4224 = vrcp.pop %v3935
  %v4225 = vmul.f32 1.0, %v4224
  %v4226 = vrcp.pop %v3936
  %v4227 = vmul.f32 1.0, %v4226
  %v4228 = vrcp.pop %v3937
  %v4229 = vmul.f32 1.0, %v4228
  %v4230 = vrcp.pop %v3938
  %v4231 = vmul.f32 1.0, %v4230
  %v4232 = vrcp.pop %v3939
  %v4233 = vmul.f32 1.0, %v4232
  %v4234 = vrcp.pop %v3940
  %v4235 = vmul.f32 1.0, %v4234
  %v4236 = vrcp.pop %v3941
  %v4237 = vmul.f32 1.0, %v4236
  %v4238 = vrcp.pop %v3942
  %v4239 = vmul.f32 1.0, %v4238
  %v4240 = vrcp.pop %v3943
  %v4241 = vmul.f32 1.0, %v4240
  %v4242 = vrcp.pop %v3944
  %v4243 = vmul.f32 1.0, %v4242
  %v4244 = vrcp.pop %v3945
  %v4245 = vmul.f32 1.0, %v4244
  %v4246 = vrcp.pop %v3946
  %v4247 = vmul.f32 1.0, %v4246
  %v4248 = vrcp.pop %v3947
  %v4249 = vmul.f32 1.0, %v4248
  %v4250 = vrcp.pop %v3948
  %v4251 = vmul.f32 1.0, %v4250
  %v4252 = vrcp.pop %v3949
  %v4253 = vmul.f32 1.0, %v4252
  %v4254 = vrcp.pop %v3950
  %v4255 = vmul.f32 1.0, %v4254
  %v4256 = vrcp.pop %v3951
  %v4257 = vmul.f32 1.0, %v4256
  %v4258 = vrcp.pop %v3952
  %v4259 = vmul.f32 1.0, %v4258
  %v4260 = vrcp.pop %v3953
  %v4261 = vmul.f32 1.0, %v4260
  %v4262 = vrcp.pop %v3954
  %v4263 = vmul.f32 1.0, %v4262
  %v4264 = vrcp.pop %v3955
  %v4265 = vmul.f32 1.0, %v4264
  %v4266 = vrcp.pop %v3956
  %v4267 = vmul.f32 1.0, %v4266
  %v4268 = vrcp.pop %v3957
  %v4269 = vmul.f32 1.0, %v4268
  %v4270 = vrcp.pop %v3958
  %v4271 = vmul.f32 1.0, %v4270
  %v4272 = vrcp.pop %v3959
  %v4273 = vmul.f32 1.0, %v4272
  %v4274 = vrcp.pop %v3960
  %v4275 = vmul.f32 1.0, %v4274
  %v4276 = vrcp.pop %v3961
  %v4277 = vmul.f32 1.0, %v4276
  %v4278 = vrcp.pop %v3962
  %v4279 = vmul.f32 1.0, %v4278
  %v4280 = vrcp.pop %v3963
  %v4281 = vmul.f32 1.0, %v4280
  %v4282 = vrcp.pop %v3964
  %v4283 = vmul.f32 1.0, %v4282
  %v4284 = vrcp.pop %v3965
  %v4285 = vmul.f32 1.0, %v4284
  %v4286 = vrcp.pop %v3966
  %v4287 = vmul.f32 1.0, %v4286
  %v4288 = vrcp.pop %v3967
  %v4289 = vmul.f32 1.0, %v4288
  %v4290 = vrcp.pop %v3968
  %v4291 = vmul.f32 1.0, %v4290
  %v4292 = vrcp.pop %v3969
  %v4293 = vmul.f32 1.0, %v4292
  %v4294 = vrcp.pop %v3970
  %v4295 = vmul.f32 1.0, %v4294
  %v4296 = vrcp.pop %v3971
  %v4297 = vmul.f32 1.0, %v4296
  %v4298 = vrcp.pop %v3972
  %v4299 = vmul.f32 1.0, %v4298
  %v4300 = vrcp.pop %v3973
  %v4301 = vmul.f32 1.0, %v4300
  %v4302 = vrcp.pop %v3974
  %v4303 = vmul.f32 1.0, %v4302
  %v4304 = vrcp.pop %v3975
  %v4305 = vmul.f32 1.0, %v4304
  %v4306 = vrcp.pop %v3976
  %v4307 = vmul.f32 1.0, %v4306
  %v4308 = vrcp.pop %v3977
  %v4309 = vmul.f32 1.0, %v4308
  %v4310 = vrcp.pop %v3978
  %v4311 = vmul.f32 1.0, %v4310
  %v4312 = vrcp.pop %v3979
  %v4313 = vmul.f32 1.0, %v4312
  %v4314 = vrcp.pop %v3980
  %v4315 = vmul.f32 1.0, %v4314
  %v4316 = vrcp.pop %v3981
  %v4317 = vmul.f32 1.0, %v4316
  %v4318 = vrcp.pop %v3982
  %v4319 = vmul.f32 1.0, %v4318
  %v4320 = vrcp.pop %v3983
  %v4321 = vmul.f32 1.0, %v4320
  %v4322 = vrcp.pop %v3984
  %v4323 = vmul.f32 1.0, %v4322
  %v4324 = vrcp.pop %v3985
  %v4325 = vmul.f32 1.0, %v4324
  %v4326 = vrcp.pop %v3986
  %v4327 = vmul.f32 1.0, %v4326
  %v4328 = vrcp.pop %v3987
  %v4329 = vmul.f32 1.0, %v4328
  %v4330 = vrcp.pop %v3988
  %v4331 = vmul.f32 1.0, %v4330
  %v4332 = vrcp.pop %v3989
  %v4333 = vmul.f32 1.0, %v4332
  %v4334 = vrcp.pop %v3990
  %v4335 = vmul.f32 1.0, %v4334
  %v4336 = vrcp.pop %v3991
  %v4337 = vmul.f32 1.0, %v4336
  %v4338 = vrcp.pop %v3992
  %v4339 = vmul.f32 1.0, %v4338
  %v4340 = vrcp.pop %v3993
  %v4341 = vmul.f32 1.0, %v4340
  %v4342 = vrcp.pop %v3994
  %v4343 = vmul.f32 1.0, %v4342
  %v4344 = vrcp.pop %v3995
  %v4345 = vmul.f32 1.0, %v4344
  %v4346 = vrcp.pop %v3996
  %v4347 = vmul.f32 1.0, %v4346
  %v4348 = vrcp.pop %v3997
  %v4349 = vmul.f32 1.0, %v4348
  %v4350 = vrcp.pop %v3998
  %v4351 = vmul.f32 1.0, %v4350
  %v4352 = vrcp.pop %v3999
  %v4353 = vmul.f32 1.0, %v4352
  %v4354 = vrcp.pop %v4000
  %v4355 = vmul.f32 1.0, %v4354
  %v4356 = vrcp.pop %v4001
  %v4357 = vmul.f32 1.0, %v4356
  %v4358 = vrcp.pop %v4002
  %v4359 = vmul.f32 1.0, %v4358
  %v4360 = vrcp.pop %v4003
  %v4361 = vmul.f32 1.0, %v4360
  %v4362 = vrcp.pop %v4004
  %v4363 = vmul.f32 1.0, %v4362
  %v4364 = vrcp.pop %v4005
  %v4365 = vmul.f32 1.0, %v4364
  %v4366 = vrcp.pop %v4006
  %v4367 = vmul.f32 1.0, %v4366
  %v4368 = vrcp.pop %v4007
  %v4369 = vmul.f32 1.0, %v4368
  %v4370 = vrcp.pop %v4008
  %v4371 = vmul.f32 1.0, %v4370
  %v4372 = vrcp.pop %v4009
  %v4373 = vmul.f32 1.0, %v4372
  %v4374 = vrcp.pop %v4010
  %v4375 = vmul.f32 1.0, %v4374
  %v4376 = vrcp.pop %v4011
  %v4377 = vmul.f32 1.0, %v4376
  %v4378 = vrcp.pop %v4012
  %v4379 = vmul.f32 1.0, %v4378
  %v4380 = vrcp.pop %v4013
  %v4381 = vmul.f32 1.0, %v4380
  %v4382 = vrcp.pop %v4014
  %v4383 = vmul.f32 1.0, %v4382
  %v4384 = vrcp.pop %v4015
  %v4385 = vmul.f32 1.0, %v4384
  %v4386 = vrcp.pop %v4016
  %v4387 = vmul.f32 1.0, %v4386
  %v4388 = vrcp.pop %v4017
  %v4389 = vmul.f32 1.0, %v4388
  %v4390 = vrcp.pop %v4018
  %v4391 = vmul.f32 1.0, %v4390
  %v4392 = vrcp.pop %v4019
  %v4393 = vmul.f32 1.0, %v4392
  %v4394 = vrcp.pop %v4020
  %v4395 = vmul.f32 1.0, %v4394
  %v4396 = vrcp.pop %v4021
  %v4397 = vmul.f32 1.0, %v4396
  %v4398 = vrcp.pop %v4022
  %v4399 = vmul.f32 1.0, %v4398
  %v4400 = vrcp.pop %v4023
  %v4401 = vmul.f32 1.0, %v4400
  %v4402 = vrcp.pop %v4024
  %v4403 = vmul.f32 1.0, %v4402
  %v4404 = vrcp.pop %v4025
  %v4405 = vmul.f32 1.0, %v4404
  %v4406 = vrcp.pop %v4026
  %v4407 = vmul.f32 1.0, %v4406
  %v4408 = vrcp.pop %v4027
  %v4409 = vmul.f32 1.0, %v4408
  %v4410 = vrcp.pop %v4028
  %v4411 = vmul.f32 1.0, %v4410
  %v4412 = vrcp.pop %v4029
  %v4413 = vmul.f32 1.0, %v4412
  %v4414 = vrcp.pop %v4030
  %v4415 = vmul.f32 1.0, %v4414
  %v4416 = vrcp.pop %v4031
  %v4417 = vmul.f32 1.0, %v4416
  %v4418 = vrcp.pop %v4032
  %v4419 = vmul.f32 1.0, %v4418
  %v4420 = vrcp.pop %v4033
  %v4421 = vmul.f32 1.0, %v4420
  %v4422 = vrcp.pop %v4034
  %v4423 = vmul.f32 1.0, %v4422
  %v4424 = vrcp.pop %v4035
  %v4425 = vmul.f32 1.0, %v4424
  %v4426 = vrcp.pop %v4036
  %v4427 = vmul.f32 1.0, %v4426
  %v4428 = vrcp.pop %v4037
  %v4429 = vmul.f32 1.0, %v4428
  %v4430 = vrcp.pop %v4038
  %v4431 = vmul.f32 1.0, %v4430
  %v4432 = vrcp.pop %v4039
  %v4433 = vmul.f32 1.0, %v4432
  %v4434 = vrcp.pop %v4040
  %v4435 = vmul.f32 1.0, %v4434
  %v4436 = vrcp.pop %v4041
  %v4437 = vmul.f32 1.0, %v4436
  %v4438 = vrcp.pop %v4042
  %v4439 = vmul.f32 1.0, %v4438
  %v4440 = vrcp.pop %v4043
  %v4441 = vmul.f32 1.0, %v4440
  %v4442 = vrcp.pop %v4044
  %v4443 = vmul.f32 1.0, %v4442
  %v4444 = vrcp.pop %v4045
  %v4445 = vmul.f32 1.0, %v4444
  %v4446 = vrcp.pop %v4046
  %v4447 = vmul.f32 1.0, %v4446
  %v4448 = vrcp.pop %v4047
  %v4449 = vmul.f32 1.0, %v4448
  %v4450 = vrcp.pop %v4048
  %v4451 = vmul.f32 1.0, %v4450
  %v4452 = vrcp.pop %v4049
  %v4453 = vmul.f32 1.0, %v4452
  %v4454 = vrcp.pop %v4050
  %v4455 = vmul.f32 1.0, %v4454
  %v4456 = vrcp.pop %v4051
  %v4457 = vmul.f32 1.0, %v4456
  %v4458 = vrcp.pop %v4052
  %v4459 = vmul.f32 1.0, %v4458
  %v4460 = vrcp.pop %v4053
  %v4461 = vmul.f32 1.0, %v4460
  %v4462 = vrcp.pop %v4054
  %v4463 = vmul.f32 1.0, %v4462
  %v4464 = vrcp.pop %v4055
  %v4465 = vmul.f32 1.0, %v4464
  %v4466 = vrcp.pop %v4056
  %v4467 = vmul.f32 1.0, %v4466
  %v4468 = vrcp.pop %v4057
  %v4469 = vmul.f32 1.0, %v4468
  %v4470 = vrcp.pop %v4058
  %v4471 = vmul.f32 1.0, %v4470
  %v4472 = vrcp.pop %v4059
  %v4473 = vmul.f32 1.0, %v4472
  %v4474 = vrcp.pop %v4060
  %v4475 = vmul.f32 1.0, %v4474
  %v4476 = vrcp.pop %v4061
  %v4477 = vmul.f32 1.0, %v4476
  %v4478 = vrcp.pop %v4062
  %v4479 = vmul.f32 1.0, %v4478
  %v4480 = vrcp.pop %v4063
  %v4481 = vmul.f32 1.0, %v4480
  %v4482 = vrcp.pop %v4064
  %v4483 = vmul.f32 1.0, %v4482
  %v4484 = vrcp.pop %v4065
  %v4485 = vmul.f32 1.0, %v4484
  %v4486 = vrcp.pop %v4066
  %v4487 = vmul.f32 1.0, %v4486
  %v4488 = vrcp.pop %v4067
  %v4489 = vmul.f32 1.0, %v4488
  %v4490 = vrcp.pop %v4068
  %v4491 = vmul.f32 1.0, %v4490
  %v4492 = vrcp.pop %v4069
  %v4493 = vmul.f32 1.0, %v4492
  %v4494 = vrcp.pop %v4070
  %v4495 = vmul.f32 1.0, %v4494
  %v4496 = vrcp.pop %v4071
  %v4497 = vmul.f32 1.0, %v4496
  %v4498 = vrcp.pop %v4072
  %v4499 = vmul.f32 1.0, %v4498
  %v4500 = vrcp.pop %v4073
  %v4501 = vmul.f32 1.0, %v4500
  %v4502 = vrcp.pop %v4074
  %v4503 = vmul.f32 1.0, %v4502
  %v4504 = vrcp.pop %v4075
  %v4505 = vmul.f32 1.0, %v4504
  %v4506 = vrcp.pop %v4076
  %v4507 = vmul.f32 1.0, %v4506
  %v4508 = vrcp.pop %v4077
  %v4509 = vmul.f32 1.0, %v4508
  %v4510 = vrcp.pop %v4078
  %v4511 = vmul.f32 1.0, %v4510
  %v4512 = vrcp.pop %v4079
  %v4513 = vmul.f32 1.0, %v4512
  %v4514 = vrcp.pop %v4080
  %v4515 = vmul.f32 1.0, %v4514
  %v4516 = vrcp.pop %v4081
  %v4517 = vmul.f32 1.0, %v4516
  %v4518 = vrcp.pop %v4082
  %v4519 = vmul.f32 1.0, %v4518
  %v4520 = vrcp.pop %v4083
  %v4521 = vmul.f32 1.0, %v4520
  %v4522 = vrcp.pop %v4084
  %v4523 = vmul.f32 1.0, %v4522
  %v4524 = vrcp.pop %v4085
  %v4525 = vmul.f32 1.0, %v4524
  %v4526 = vrcp.pop %v4086
  %v4527 = vmul.f32 1.0, %v4526
  %v4528 = vrcp.pop %v4087
  %v4529 = vmul.f32 1.0, %v4528
  %v4530 = vrcp.pop %v4088
  %v4531 = vmul.f32 1.0, %v4530
  %v4532 = vrcp.pop %v4089
  %v4533 = vmul.f32 1.0, %v4532
  %v4534 = vrcp.pop %v4090
  %v4535 = vmul.f32 1.0, %v4534
  %v4536 = vrcp.pop %v4091
  %v4537 = vmul.f32 1.0, %v4536
  %v4538 = vrcp.pop %v4092
  %v4539 = vmul.f32 1.0, %v4538
  %v4540 = vrcp.pop %v4093
  %v4541 = vmul.f32 1.0, %v4540
  %v4542 = vpack.c.bf16 %v4109, %v4095
  %v4543 = vpack.c.bf16 %v4111, %v4097
  %v4544 = vpack.c.bf16 %v4113, %v4099
  %v4545 = vpack.c.bf16 %v4115, %v4101
  %v4546 = vpack.c.bf16 %v4117, %v4103
  %v4547 = vpack.c.bf16 %v4119, %v4105
  %v4548 = vpack.c.bf16 %v4121, %v4107
  %v4549 = vpack.c.bf16 %v4137, %v4123
  %v4550 = vpack.c.bf16 %v4139, %v4125
  %v4551 = vpack.c.bf16 %v4141, %v4127
  %v4552 = vpack.c.bf16 %v4143, %v4129
  %v4553 = vpack.c.bf16 %v4145, %v4131
  %v4554 = vpack.c.bf16 %v4147, %v4133
  %v4555 = vpack.c.bf16 %v4149, %v4135
  %v4556 = vpack.c.bf16 %v4165, %v4151
  %v4557 = vpack.c.bf16 %v4167, %v4153
  %v4558 = vpack.c.bf16 %v4169, %v4155
  %v4559 = vpack.c.bf16 %v4171, %v4157
  %v4560 = vpack.c.bf16 %v4173, %v4159
  %v4561 = vpack.c.bf16 %v4175, %v4161
  %v4562 = vpack.c.bf16 %v4177, %v4163
  %v4563 = vpack.c.bf16 %v4193, %v4179
  %v4564 = vpack.c.bf16 %v4195, %v4181
  %v4565 = vpack.c.bf16 %v4197, %v4183
  %v4566 = vpack.c.bf16 %v4199, %v4185
  %v4567 = vpack.c.bf16 %v4201, %v4187
  %v4568 = vpack.c.bf16 %v4203, %v4189
  %v4569 = vpack.c.bf16 %v4205, %v4191
  %v4570 = vpack.c.bf16 %v4221, %v4207
  %v4571 = vpack.c.bf16 %v4223, %v4209
  %v4572 = vpack.c.bf16 %v4225, %v4211
  %v4573 = vpack.c.bf16 %v4227, %v4213
  %v4574 = vpack.c.bf16 %v4229, %v4215
  %v4575 = vpack.c.bf16 %v4231, %v4217
  %v4576 = vpack.c.bf16 %v4233, %v4219
  %v4577 = vpack.c.bf16 %v4249, %v4235
  %v4578 = vpack.c.bf16 %v4251, %v4237
  %v4579 = vpack.c.bf16 %v4253, %v4239
  %v4580 = vpack.c.bf16 %v4255, %v4241
  %v4581 = vpack.c.bf16 %v4257, %v4243
  %v4582 = vpack.c.bf16 %v4259, %v4245
  %v4583 = vpack.c.bf16 %v4261, %v4247
  %v4584 = vpack.c.bf16 %v4277, %v4263
  %v4585 = vpack.c.bf16 %v4279, %v4265
  %v4586 = vpack.c.bf16 %v4281, %v4267
  %v4587 = vpack.c.bf16 %v4283, %v4269
  %v4588 = vpack.c.bf16 %v4285, %v4271
  %v4589 = vpack.c.bf16 %v4287, %v4273
  %v4590 = vpack.c.bf16 %v4289, %v4275
  %v4591 = vpack.c.bf16 %v4305, %v4291
  %v4592 = vpack.c.bf16 %v4307, %v4293
  %v4593 = vpack.c.bf16 %v4309, %v4295
  %v4594 = vpack.c.bf16 %v4311, %v4297
  %v4595 = vpack.c.bf16 %v4313, %v4299
  %v4596 = vpack.c.bf16 %v4315, %v4301
  %v4597 = vpack.c.bf16 %v4317, %v4303
  %v4598 = vpack.c.bf16 %v4333, %v4319
  %v4599 = vpack.c.bf16 %v4335, %v4321
  %v4600 = vpack.c.bf16 %v4337, %v4323
  %v4601 = vpack.c.bf16 %v4339, %v4325
  %v4602 = vpack.c.bf16 %v4341, %v4327
  %v4603 = vpack.c.bf16 %v4343, %v4329
  %v4604 = vpack.c.bf16 %v4345, %v4331
  %v4605 = vpack.c.bf16 %v4361, %v4347
  %v4606 = vpack.c.bf16 %v4363, %v4349
  %v4607 = vpack.c.bf16 %v4365, %v4351
  %v4608 = vpack.c.bf16 %v4367, %v4353
  %v4609 = vpack.c.bf16 %v4369, %v4355
  %v4610 = vpack.c.bf16 %v4371, %v4357
  %v4611 = vpack.c.bf16 %v4373, %v4359
  %v4612 = vpack.c.bf16 %v4389, %v4375
  %v4613 = vpack.c.bf16 %v4391, %v4377
  %v4614 = vpack.c.bf16 %v4393, %v4379
  %v4615 = vpack.c.bf16 %v4395, %v4381
  %v4616 = vpack.c.bf16 %v4397, %v4383
  %v4617 = vpack.c.bf16 %v4399, %v4385
  %v4618 = vpack.c.bf16 %v4401, %v4387
  %v4619 = vpack.c.bf16 %v4417, %v4403
  %v4620 = vpack.c.bf16 %v4419, %v4405
  %v4621 = vpack.c.bf16 %v4421, %v4407
  %v4622 = vpack.c.bf16 %v4423, %v4409
  %v4623 = vpack.c.bf16 %v4425, %v4411
  %v4624 = vpack.c.bf16 %v4427, %v4413
  %v4625 = vpack.c.bf16 %v4429, %v4415
  %v4626 = vpack.c.bf16 %v4445, %v4431
  %v4627 = vpack.c.bf16 %v4447, %v4433
  %v4628 = vpack.c.bf16 %v4449, %v4435
  %v4629 = vpack.c.bf16 %v4451, %v4437
  %v4630 = vpack.c.bf16 %v4453, %v4439
  %v4631 = vpack.c.bf16 %v4455, %v4441
  %v4632 = vpack.c.bf16 %v4457, %v4443
  %v4633 = vpack.c.bf16 %v4473, %v4459
  %v4634 = vpack.c.bf16 %v4475, %v4461
  %v4635 = vpack.c.bf16 %v4477, %v4463
  %v4636 = vpack.c.bf16 %v4479, %v4465
  %v4637 = vpack.c.bf16 %v4481, %v4467
  %v4638 = vpack.c.bf16 %v4483, %v4469
  %v4639 = vpack.c.bf16 %v4485, %v4471
  %v4640 = vpack.c.bf16 %v4501, %v4487
  %v4641 = vpack.c.bf16 %v4503, %v4489
  %v4642 = vpack.c.bf16 %v4505, %v4491
  %v4643 = vpack.c.bf16 %v4507, %v4493
  %v4644 = vpack.c.bf16 %v4509, %v4495
  %v4645 = vpack.c.bf16 %v4511, %v4497
  %v4646 = vpack.c.bf16 %v4513, %v4499
  %v4647 = vpack.c.bf16 %v4529, %v4515
  %v4648 = vpack.c.bf16 %v4531, %v4517
  %v4649 = vpack.c.bf16 %v4533, %v4519
  %v4650 = vpack.c.bf16 %v4535, %v4521
  %v4651 = vpack.c.bf16 %v4537, %v4523
  %v4652 = vpack.c.bf16 %v4539, %v4525
  %v4653 = vpack.c.bf16 %v4541, %v4527
  %v4766 = vunpack.c.l.b16 %v4542
  %v4767 = vunpack.c.l.b16 %v4543
  %v4768 = vunpack.c.l.b16 %v4544
  %v4769 = vunpack.c.l.b16 %v4545
  %v4770 = vunpack.c.l.b16 %v4546
  %v4771 = vunpack.c.l.b16 %v4547
  %v4772 = vunpack.c.l.b16 %v4548
  %v4773 = vunpack.c.h.b16 %v4542
  %v4774 = vunpack.c.h.b16 %v4543
  %v4775 = vunpack.c.h.b16 %v4544
  %v4776 = vunpack.c.h.b16 %v4545
  %v4777 = vunpack.c.h.b16 %v4546
  %v4778 = vunpack.c.h.b16 %v4547
  %v4779 = vunpack.c.h.b16 %v4548
  %v4780 = vunpack.c.l.b16 %v4549
  %v4781 = vunpack.c.l.b16 %v4550
  %v4782 = vunpack.c.l.b16 %v4551
  %v4783 = vunpack.c.l.b16 %v4552
  %v4784 = vunpack.c.l.b16 %v4553
  %v4785 = vunpack.c.l.b16 %v4554
  %v4786 = vunpack.c.l.b16 %v4555
  %v4787 = vunpack.c.h.b16 %v4549
  %v4788 = vunpack.c.h.b16 %v4550
  %v4789 = vunpack.c.h.b16 %v4551
  %v4790 = vunpack.c.h.b16 %v4552
  %v4791 = vunpack.c.h.b16 %v4553
  %v4792 = vunpack.c.h.b16 %v4554
  %v4793 = vunpack.c.h.b16 %v4555
  %v4794 = vunpack.c.l.b16 %v4556
  %v4795 = vunpack.c.l.b16 %v4557
  %v4796 = vunpack.c.l.b16 %v4558
  %v4797 = vunpack.c.l.b16 %v4559
  %v4798 = vunpack.c.l.b16 %v4560
  %v4799 = vunpack.c.l.b16 %v4561
  %v4800 = vunpack.c.l.b16 %v4562
  %v4801 = vunpack.c.h.b16 %v4556
  %v4802 = vunpack.c.h.b16 %v4557
  %v4803 = vunpack.c.h.b16 %v4558
  %v4804 = vunpack.c.h.b16 %v4559
  %v4805 = vunpack.c.h.b16 %v4560
  %v4806 = vunpack.c.h.b16 %v4561
  %v4807 = vunpack.c.h.b16 %v4562
  %v4808 = vunpack.c.l.b16 %v4563
  %v4809 = vunpack.c.l.b16 %v4564
  %v4810 = vunpack.c.l.b16 %v4565
  %v4811 = vunpack.c.l.b16 %v4566
  %v4812 = vunpack.c.l.b16 %v4567
  %v4813 = vunpack.c.l.b16 %v4568
  %v4814 = vunpack.c.l.b16 %v4569
  %v4815 = vunpack.c.h.b16 %v4563
  %v4816 = vunpack.c.h.b16 %v4564
  %v4817 = vunpack.c.h.b16 %v4565
  %v4818 = vunpack.c.h.b16 %v4566
  %v4819 = vunpack.c.h.b16 %v4567
  %v4820 = vunpack.c.h.b16 %v4568
  %v4821 = vunpack.c.h.b16 %v4569
  %v4822 = vunpack.c.l.b16 %v4570
  %v4823 = vunpack.c.l.b16 %v4571
  %v4824 = vunpack.c.l.b16 %v4572
  %v4825 = vunpack.c.l.b16 %v4573
  %v4826 = vunpack.c.l.b16 %v4574
  %v4827 = vunpack.c.l.b16 %v4575
  %v4828 = vunpack.c.l.b16 %v4576
  %v4829 = vunpack.c.h.b16 %v4570
  %v4830 = vunpack.c.h.b16 %v4571
  %v4831 = vunpack.c.h.b16 %v4572
  %v4832 = vunpack.c.h.b16 %v4573
  %v4833 = vunpack.c.h.b16 %v4574
  %v4834 = vunpack.c.h.b16 %v4575
  %v4835 = vunpack.c.h.b16 %v4576
  %v4836 = vunpack.c.l.b16 %v4577
  %v4837 = vunpack.c.l.b16 %v4578
  %v4838 = vunpack.c.l.b16 %v4579
  %v4839 = vunpack.c.l.b16 %v4580
  %v4840 = vunpack.c.l.b16 %v4581
  %v4841 = vunpack.c.l.b16 %v4582
  %v4842 = vunpack.c.l.b16 %v4583
  %v4843 = vunpack.c.h.b16 %v4577
  %v4844 = vunpack.c.h.b16 %v4578
  %v4845 = vunpack.c.h.b16 %v4579
  %v4846 = vunpack.c.h.b16 %v4580
  %v4847 = vunpack.c.h.b16 %v4581
  %v4848 = vunpack.c.h.b16 %v4582
  %v4849 = vunpack.c.h.b16 %v4583
  %v4850 = vunpack.c.l.b16 %v4584
  %v4851 = vunpack.c.l.b16 %v4585
  %v4852 = vunpack.c.l.b16 %v4586
  %v4853 = vunpack.c.l.b16 %v4587
  %v4854 = vunpack.c.l.b16 %v4588
  %v4855 = vunpack.c.l.b16 %v4589
  %v4856 = vunpack.c.l.b16 %v4590
  %v4857 = vunpack.c.h.b16 %v4584
  %v4858 = vunpack.c.h.b16 %v4585
  %v4859 = vunpack.c.h.b16 %v4586
  %v4860 = vunpack.c.h.b16 %v4587
  %v4861 = vunpack.c.h.b16 %v4588
  %v4862 = vunpack.c.h.b16 %v4589
  %v4863 = vunpack.c.h.b16 %v4590
  %v4864 = vunpack.c.l.b16 %v4591
  %v4865 = vunpack.c.l.b16 %v4592
  %v4866 = vunpack.c.l.b16 %v4593
  %v4867 = vunpack.c.l.b16 %v4594
  %v4868 = vunpack.c.l.b16 %v4595
  %v4869 = vunpack.c.l.b16 %v4596
  %v4870 = vunpack.c.l.b16 %v4597
  %v4871 = vunpack.c.h.b16 %v4591
  %v4872 = vunpack.c.h.b16 %v4592
  %v4873 = vunpack.c.h.b16 %v4593
  %v4874 = vunpack.c.h.b16 %v4594
  %v4875 = vunpack.c.h.b16 %v4595
  %v4876 = vunpack.c.h.b16 %v4596
  %v4877 = vunpack.c.h.b16 %v4597
  %v4878 = vunpack.c.l.b16 %v4598
  %v4879 = vunpack.c.l.b16 %v4599
  %v4880 = vunpack.c.l.b16 %v4600
  %v4881 = vunpack.c.l.b16 %v4601
  %v4882 = vunpack.c.l.b16 %v4602
  %v4883 = vunpack.c.l.b16 %v4603
  %v4884 = vunpack.c.l.b16 %v4604
  %v4885 = vunpack.c.h.b16 %v4598
  %v4886 = vunpack.c.h.b16 %v4599
  %v4887 = vunpack.c.h.b16 %v4600
  %v4888 = vunpack.c.h.b16 %v4601
  %v4889 = vunpack.c.h.b16 %v4602
  %v4890 = vunpack.c.h.b16 %v4603
  %v4891 = vunpack.c.h.b16 %v4604
  %v4892 = vunpack.c.l.b16 %v4605
  %v4893 = vunpack.c.l.b16 %v4606
  %v4894 = vunpack.c.l.b16 %v4607
  %v4895 = vunpack.c.l.b16 %v4608
  %v4896 = vunpack.c.l.b16 %v4609
  %v4897 = vunpack.c.l.b16 %v4610
  %v4898 = vunpack.c.l.b16 %v4611
  %v4899 = vunpack.c.h.b16 %v4605
  %v4900 = vunpack.c.h.b16 %v4606
  %v4901 = vunpack.c.h.b16 %v4607
  %v4902 = vunpack.c.h.b16 %v4608
  %v4903 = vunpack.c.h.b16 %v4609
  %v4904 = vunpack.c.h.b16 %v4610
  %v4905 = vunpack.c.h.b16 %v4611
  %v4906 = vunpack.c.l.b16 %v4612
  %v4907 = vunpack.c.l.b16 %v4613
  %v4908 = vunpack.c.l.b16 %v4614
  %v4909 = vunpack.c.l.b16 %v4615
  %v4910 = vunpack.c.l.b16 %v4616
  %v4911 = vunpack.c.l.b16 %v4617
  %v4912 = vunpack.c.l.b16 %v4618
  %v4913 = vunpack.c.h.b16 %v4612
  %v4914 = vunpack.c.h.b16 %v4613
  %v4915 = vunpack.c.h.b16 %v4614
  %v4916 = vunpack.c.h.b16 %v4615
  %v4917 = vunpack.c.h.b16 %v4616
  %v4918 = vunpack.c.h.b16 %v4617
  %v4919 = vunpack.c.h.b16 %v4618
  %v4920 = vunpack.c.l.b16 %v4619
  %v4921 = vunpack.c.l.b16 %v4620
  %v4922 = vunpack.c.l.b16 %v4621
  %v4923 = vunpack.c.l.b16 %v4622
  %v4924 = vunpack.c.l.b16 %v4623
  %v4925 = vunpack.c.l.b16 %v4624
  %v4926 = vunpack.c.l.b16 %v4625
  %v4927 = vunpack.c.h.b16 %v4619
  %v4928 = vunpack.c.h.b16 %v4620
  %v4929 = vunpack.c.h.b16 %v4621
  %v4930 = vunpack.c.h.b16 %v4622
  %v4931 = vunpack.c.h.b16 %v4623
  %v4932 = vunpack.c.h.b16 %v4624
  %v4933 = vunpack.c.h.b16 %v4625
  %v4934 = vunpack.c.l.b16 %v4626
  %v4935 = vunpack.c.l.b16 %v4627
  %v4936 = vunpack.c.l.b16 %v4628
  %v4937 = vunpack.c.l.b16 %v4629
  %v4938 = vunpack.c.l.b16 %v4630
  %v4939 = vunpack.c.l.b16 %v4631
  %v4940 = vunpack.c.l.b16 %v4632
  %v4941 = vunpack.c.h.b16 %v4626
  %v4942 = vunpack.c.h.b16 %v4627
  %v4943 = vunpack.c.h.b16 %v4628
  %v4944 = vunpack.c.h.b16 %v4629
  %v4945 = vunpack.c.h.b16 %v4630
  %v4946 = vunpack.c.h.b16 %v4631
  %v4947 = vunpack.c.h.b16 %v4632
  %v4948 = vunpack.c.l.b16 %v4633
  %v4949 = vunpack.c.l.b16 %v4634
  %v4950 = vunpack.c.l.b16 %v4635
  %v4951 = vunpack.c.l.b16 %v4636
  %v4952 = vunpack.c.l.b16 %v4637
  %v4953 = vunpack.c.l.b16 %v4638
  %v4954 = vunpack.c.l.b16 %v4639
  %v4955 = vunpack.c.h.b16 %v4633
  %v4956 = vunpack.c.h.b16 %v4634
  %v4957 = vunpack.c.h.b16 %v4635
  %v4958 = vunpack.c.h.b16 %v4636
  %v4959 = vunpack.c.h.b16 %v4637
  %v4960 = vunpack.c.h.b16 %v4638
  %v4961 = vunpack.c.h.b16 %v4639
  %v4962 = vunpack.c.l.b16 %v4640
  %v4963 = vunpack.c.l.b16 %v4641
  %v4964 = vunpack.c.l.b16 %v4642
  %v4965 = vunpack.c.l.b16 %v4643
  %v4966 = vunpack.c.l.b16 %v4644
  %v4967 = vunpack.c.l.b16 %v4645
  %v4968 = vunpack.c.l.b16 %v4646
  %v4969 = vunpack.c.h.b16 %v4640
  %v4970 = vunpack.c.h.b16 %v4641
  %v4971 = vunpack.c.h.b16 %v4642
  %v4972 = vunpack.c.h.b16 %v4643
  %v4973 = vunpack.c.h.b16 %v4644
  %v4974 = vunpack.c.h.b16 %v4645
  %v4975 = vunpack.c.h.b16 %v4646
  %v4976 = vunpack.c.l.b16 %v4647
  %v4977 = vunpack.c.l.b16 %v4648
  %v4978 = vunpack.c.l.b16 %v4649
  %v4979 = vunpack.c.l.b16 %v4650
  %v4980 = vunpack.c.l.b16 %v4651
  %v4981 = vunpack.c.l.b16 %v4652
  %v4982 = vunpack.c.l.b16 %v4653
  %v4983 = vunpack.c.h.b16 %v4647
  %v4984 = vunpack.c.h.b16 %v4648
  %v4985 = vunpack.c.h.b16 %v4649
  %v4986 = vunpack.c.h.b16 %v4650
  %v4987 = vunpack.c.h.b16 %v4651
  %v4988 = vunpack.c.h.b16 %v4652
  %v4989 = vunpack.c.h.b16 %v4653
  %v4990 = vpack.c.b16 %v4767, %v4766
  %v4991 = vpack.c.b16 %v4769, %v4768
  %v4992 = vpack.c.b16 %v4771, %v4770
  %v4993 = vpack.c.b16 %v4772, %v4772
  %v4994 = vpack.c.b16 %v4774, %v4773
  %v4995 = vpack.c.b16 %v4776, %v4775
  %v4996 = vpack.c.b16 %v4778, %v4777
  %v4997 = vpack.c.b16 %v4779, %v4779
  %v4998 = vpack.c.b16 %v4781, %v4780
  %v4999 = vpack.c.b16 %v4783, %v4782
  %v5000 = vpack.c.b16 %v4785, %v4784
  %v5001 = vpack.c.b16 %v4786, %v4786
  %v5002 = vpack.c.b16 %v4788, %v4787
  %v5003 = vpack.c.b16 %v4790, %v4789
  %v5004 = vpack.c.b16 %v4792, %v4791
  %v5005 = vpack.c.b16 %v4793, %v4793
  %v5006 = vpack.c.b16 %v4795, %v4794
  %v5007 = vpack.c.b16 %v4797, %v4796
  %v5008 = vpack.c.b16 %v4799, %v4798
  %v5009 = vpack.c.b16 %v4800, %v4800
  %v5010 = vpack.c.b16 %v4802, %v4801
  %v5011 = vpack.c.b16 %v4804, %v4803
  %v5012 = vpack.c.b16 %v4806, %v4805
  %v5013 = vpack.c.b16 %v4807, %v4807
  %v5014 = vpack.c.b16 %v4809, %v4808
  %v5015 = vpack.c.b16 %v4811, %v4810
  %v5016 = vpack.c.b16 %v4813, %v4812
  %v5017 = vpack.c.b16 %v4814, %v4814
  %v5018 = vpack.c.b16 %v4816, %v4815
  %v5019 = vpack.c.b16 %v4818, %v4817
  %v5020 = vpack.c.b16 %v4820, %v4819
  %v5021 = vpack.c.b16 %v4821, %v4821
  %v5022 = vpack.c.b16 %v4823, %v4822
  %v5023 = vpack.c.b16 %v4825, %v4824
  %v5024 = vpack.c.b16 %v4827, %v4826
  %v5025 = vpack.c.b16 %v4828, %v4828
  %v5026 = vpack.c.b16 %v4830, %v4829
  %v5027 = vpack.c.b16 %v4832, %v4831
  %v5028 = vpack.c.b16 %v4834, %v4833
  %v5029 = vpack.c.b16 %v4835, %v4835
  %v5030 = vpack.c.b16 %v4837, %v4836
  %v5031 = vpack.c.b16 %v4839, %v4838
  %v5032 = vpack.c.b16 %v4841, %v4840
  %v5033 = vpack.c.b16 %v4842, %v4842
  %v5034 = vpack.c.b16 %v4844, %v4843
  %v5035 = vpack.c.b16 %v4846, %v4845
  %v5036 = vpack.c.b16 %v4848, %v4847
  %v5037 = vpack.c.b16 %v4849, %v4849
  %v5038 = vpack.c.b16 %v4851, %v4850
  %v5039 = vpack.c.b16 %v4853, %v4852
  %v5040 = vpack.c.b16 %v4855, %v4854
  %v5041 = vpack.c.b16 %v4856, %v4856
  %v5042 = vpack.c.b16 %v4858, %v4857
  %v5043 = vpack.c.b16 %v4860, %v4859
  %v5044 = vpack.c.b16 %v4862, %v4861
  %v5045 = vpack.c.b16 %v4863, %v4863
  %v5046 = vpack.c.b16 %v4865, %v4864
  %v5047 = vpack.c.b16 %v4867, %v4866
  %v5048 = vpack.c.b16 %v4869, %v4868
  %v5049 = vpack.c.b16 %v4870, %v4870
  %v5050 = vpack.c.b16 %v4872, %v4871
  %v5051 = vpack.c.b16 %v4874, %v4873
  %v5052 = vpack.c.b16 %v4876, %v4875
  %v5053 = vpack.c.b16 %v4877, %v4877
  %v5054 = vpack.c.b16 %v4879, %v4878
  %v5055 = vpack.c.b16 %v4881, %v4880
  %v5056 = vpack.c.b16 %v4883, %v4882
  %v5057 = vpack.c.b16 %v4884, %v4884
  %v5058 = vpack.c.b16 %v4886, %v4885
  %v5059 = vpack.c.b16 %v4888, %v4887
  %v5060 = vpack.c.b16 %v4890, %v4889
  %v5061 = vpack.c.b16 %v4891, %v4891
  %v5062 = vpack.c.b16 %v4893, %v4892
  %v5063 = vpack.c.b16 %v4895, %v4894
  %v5064 = vpack.c.b16 %v4897, %v4896
  %v5065 = vpack.c.b16 %v4898, %v4898
  %v5066 = vpack.c.b16 %v4900, %v4899
  %v5067 = vpack.c.b16 %v4902, %v4901
  %v5068 = vpack.c.b16 %v4904, %v4903
  %v5069 = vpack.c.b16 %v4905, %v4905
  %v5070 = vpack.c.b16 %v4907, %v4906
  %v5071 = vpack.c.b16 %v4909, %v4908
  %v5072 = vpack.c.b16 %v4911, %v4910
  %v5073 = vpack.c.b16 %v4912, %v4912
  %v5074 = vpack.c.b16 %v4914, %v4913
  %v5075 = vpack.c.b16 %v4916, %v4915
  %v5076 = vpack.c.b16 %v4918, %v4917
  %v5077 = vpack.c.b16 %v4919, %v4919
  %v5078 = vpack.c.b16 %v4921, %v4920
  %v5079 = vpack.c.b16 %v4923, %v4922
  %v5080 = vpack.c.b16 %v4925, %v4924
  %v5081 = vpack.c.b16 %v4926, %v4926
  %v5082 = vpack.c.b16 %v4928, %v4927
  %v5083 = vpack.c.b16 %v4930, %v4929
  %v5084 = vpack.c.b16 %v4932, %v4931
  %v5085 = vpack.c.b16 %v4933, %v4933
  %v5086 = vpack.c.b16 %v4935, %v4934
  %v5087 = vpack.c.b16 %v4937, %v4936
  %v5088 = vpack.c.b16 %v4939, %v4938
  %v5089 = vpack.c.b16 %v4940, %v4940
  %v5090 = vpack.c.b16 %v4942, %v4941
  %v5091 = vpack.c.b16 %v4944, %v4943
  %v5092 = vpack.c.b16 %v4946, %v4945
  %v5093 = vpack.c.b16 %v4947, %v4947
  %v5094 = vpack.c.b16 %v4949, %v4948
  %v5095 = vpack.c.b16 %v4951, %v4950
  %v5096 = vpack.c.b16 %v4953, %v4952
  %v5097 = vpack.c.b16 %v4954, %v4954
  %v5098 = vpack.c.b16 %v4956, %v4955
  %v5099 = vpack.c.b16 %v4958, %v4957
  %v5100 = vpack.c.b16 %v4960, %v4959
  %v5101 = vpack.c.b16 %v4961, %v4961
  %v5102 = vpack.c.b16 %v4963, %v4962
  %v5103 = vpack.c.b16 %v4965, %v4964
  %v5104 = vpack.c.b16 %v4967, %v4966
  %v5105 = vpack.c.b16 %v4968, %v4968
  %v5106 = vpack.c.b16 %v4970, %v4969
  %v5107 = vpack.c.b16 %v4972, %v4971
  %v5108 = vpack.c.b16 %v4974, %v4973
  %v5109 = vpack.c.b16 %v4975, %v4975
  %v5110 = vpack.c.b16 %v4977, %v4976
  %v5111 = vpack.c.b16 %v4979, %v4978
  %v5112 = vpack.c.b16 %v4981, %v4980
  %v5113 = vpack.c.b16 %v4982, %v4982
  %v5114 = vpack.c.b16 %v4984, %v4983
  %v5115 = vpack.c.b16 %v4986, %v4985
  %v5116 = vpack.c.b16 %v4988, %v4987
  %v5117 = vpack.c.b16 %v4989, %v4989
  %5246 = vst [vmem:[%s9] sm:$0xff] %v4990
  %5247 = vst [vmem:[%s9 + $0x8] sm:$0xff] %v4991
  %5248 = vst [vmem:[%s9 + $0x10] sm:$0xff] %v4992
  %5249 = vst [vmem:[%s9 + $0x18] sm:$0xf] %v4993
  %5250 = vst [vmem:[%s9 + $0x1c] sm:$0xff] %v4994
  %5251 = vst [vmem:[%s9 + $0x24] sm:$0xff] %v4995
  %5252 = vst [vmem:[%s9 + $0x2c] sm:$0xff] %v4996
  %5253 = vst [vmem:[%s9 + $0x34] sm:$0xf] %v4997
  %5254 = vst [vmem:[%s9 + $0x38] sm:$0xff] %v4998
  %5255 = vst [vmem:[%s9 + $0x40] sm:$0xff] %v4999
  %5256 = vst [vmem:[%s9 + $0x48] sm:$0xff] %v5000
  %5257 = vst [vmem:[%s9 + $0x50] sm:$0xf] %v5001
  %5258 = vst [vmem:[%s9 + $0x54] sm:$0xff] %v5002
  %5259 = vst [vmem:[%s9 + $0x5c] sm:$0xff] %v5003
  %5260 = vst [vmem:[%s9 + $0x64] sm:$0xff] %v5004
  %5261 = vst [vmem:[%s9 + $0x6c] sm:$0xf] %v5005
  %5262 = vst [vmem:[%s9 + $0x70] sm:$0xff] %v5006
  %5263 = vst [vmem:[%s9 + $0x78] sm:$0xff] %v5007
  %5264 = vst [vmem:[%s9 + $0x80] sm:$0xff] %v5008
  %5265 = vst [vmem:[%s9 + $0x88] sm:$0xf] %v5009
  %5266 = vst [vmem:[%s9 + $0x8c] sm:$0xff] %v5010
  %5267 = vst [vmem:[%s9 + $0x94] sm:$0xff] %v5011
  %5268 = vst [vmem:[%s9 + $0x9c] sm:$0xff] %v5012
  %5269 = vst [vmem:[%s9 + $0xa4] sm:$0xf] %v5013
  %5270 = vst [vmem:[%s9 + $0xa8] sm:$0xff] %v5014
  %5271 = vst [vmem:[%s9 + $0xb0] sm:$0xff] %v5015
  %5272 = vst [vmem:[%s9 + $0xb8] sm:$0xff] %v5016
  %5273 = vst [vmem:[%s9 + $0xc0] sm:$0xf] %v5017
  %5274 = vst [vmem:[%s9 + $0xc4] sm:$0xff] %v5018
  %5275 = vst [vmem:[%s9 + $0xcc] sm:$0xff] %v5019
  %5276 = vst [vmem:[%s9 + $0xd4] sm:$0xff] %v5020
  %5277 = vst [vmem:[%s9 + $0xdc] sm:$0xf] %v5021
  %5278 = vst [vmem:[%s9 + $0xe0] sm:$0xff] %v5022
  %5279 = vst [vmem:[%s9 + $0xe8] sm:$0xff] %v5023
  %5280 = vst [vmem:[%s9 + $0xf0] sm:$0xff] %v5024
  %5281 = vst [vmem:[%s9 + $0xf8] sm:$0xf] %v5025
  %5282 = vst [vmem:[%s9 + $0xfc] sm:$0xff] %v5026
  %5283 = vst [vmem:[%s9 + $0x104] sm:$0xff] %v5027
  %5284 = vst [vmem:[%s9 + $0x10c] sm:$0xff] %v5028
  %5285 = vst [vmem:[%s9 + $0x114] sm:$0xf] %v5029
  %5286 = vst [vmem:[%s9 + $0x118] sm:$0xff] %v5030
  %5287 = vst [vmem:[%s9 + $0x120] sm:$0xff] %v5031
  %5288 = vst [vmem:[%s9 + $0x128] sm:$0xff] %v5032
  %5289 = vst [vmem:[%s9 + $0x130] sm:$0xf] %v5033
  %5290 = vst [vmem:[%s9 + $0x134] sm:$0xff] %v5034
  %5291 = vst [vmem:[%s9 + $0x13c] sm:$0xff] %v5035
  %5292 = vst [vmem:[%s9 + $0x144] sm:$0xff] %v5036
  %5293 = vst [vmem:[%s9 + $0x14c] sm:$0xf] %v5037
  %5294 = vst [vmem:[%s9 + $0x150] sm:$0xff] %v5038
  %5295 = vst [vmem:[%s9 + $0x158] sm:$0xff] %v5039
  %5296 = vst [vmem:[%s9 + $0x160] sm:$0xff] %v5040
  %5297 = vst [vmem:[%s9 + $0x168] sm:$0xf] %v5041
  %5298 = vst [vmem:[%s9 + $0x16c] sm:$0xff] %v5042
  %5299 = vst [vmem:[%s9 + $0x174] sm:$0xff] %v5043
  %5300 = vst [vmem:[%s9 + $0x17c] sm:$0xff] %v5044
  %5301 = vst [vmem:[%s9 + $0x184] sm:$0xf] %v5045
  %5302 = vst [vmem:[%s9 + $0x188] sm:$0xff] %v5046
  %5303 = vst [vmem:[%s9 + $0x190] sm:$0xff] %v5047
  %5304 = vst [vmem:[%s9 + $0x198] sm:$0xff] %v5048
  %5305 = vst [vmem:[%s9 + $0x1a0] sm:$0xf] %v5049
  %5306 = vst [vmem:[%s9 + $0x1a4] sm:$0xff] %v5050
  %5307 = vst [vmem:[%s9 + $0x1ac] sm:$0xff] %v5051
  %5308 = vst [vmem:[%s9 + $0x1b4] sm:$0xff] %v5052
  %5309 = vst [vmem:[%s9 + $0x1bc] sm:$0xf] %v5053
  %5310 = vst [vmem:[%s9 + $0x1c0] sm:$0xff] %v5054
  %5311 = vst [vmem:[%s9 + $0x1c8] sm:$0xff] %v5055
  %5312 = vst [vmem:[%s9 + $0x1d0] sm:$0xff] %v5056
  %5313 = vst [vmem:[%s9 + $0x1d8] sm:$0xf] %v5057
  %5314 = vst [vmem:[%s9 + $0x1dc] sm:$0xff] %v5058
  %5315 = vst [vmem:[%s9 + $0x1e4] sm:$0xff] %v5059
  %5316 = vst [vmem:[%s9 + $0x1ec] sm:$0xff] %v5060
  %5317 = vst [vmem:[%s9 + $0x1f4] sm:$0xf] %v5061
  %5318 = vst [vmem:[%s9 + $0x1f8] sm:$0xff] %v5062
  %5319 = vst [vmem:[%s9 + $0x200] sm:$0xff] %v5063
  %5320 = vst [vmem:[%s9 + $0x208] sm:$0xff] %v5064
  %5321 = vst [vmem:[%s9 + $0x210] sm:$0xf] %v5065
  %5322 = vst [vmem:[%s9 + $0x214] sm:$0xff] %v5066
  %5323 = vst [vmem:[%s9 + $0x21c] sm:$0xff] %v5067
  %5324 = vst [vmem:[%s9 + $0x224] sm:$0xff] %v5068
  %5325 = vst [vmem:[%s9 + $0x22c] sm:$0xf] %v5069
  %5326 = vst [vmem:[%s9 + $0x230] sm:$0xff] %v5070
  %5327 = vst [vmem:[%s9 + $0x238] sm:$0xff] %v5071
  %5328 = vst [vmem:[%s9 + $0x240] sm:$0xff] %v5072
  %5329 = vst [vmem:[%s9 + $0x248] sm:$0xf] %v5073
  %5330 = vst [vmem:[%s9 + $0x24c] sm:$0xff] %v5074
  %5331 = vst [vmem:[%s9 + $0x254] sm:$0xff] %v5075
  %5332 = vst [vmem:[%s9 + $0x25c] sm:$0xff] %v5076
  %5333 = vst [vmem:[%s9 + $0x264] sm:$0xf] %v5077
  %5334 = vst [vmem:[%s9 + $0x268] sm:$0xff] %v5078
  %5335 = vst [vmem:[%s9 + $0x270] sm:$0xff] %v5079
  %5336 = vst [vmem:[%s9 + $0x278] sm:$0xff] %v5080
  %5337 = vst [vmem:[%s9 + $0x280] sm:$0xf] %v5081
  %5338 = vst [vmem:[%s9 + $0x284] sm:$0xff] %v5082
  %5339 = vst [vmem:[%s9 + $0x28c] sm:$0xff] %v5083
  %5340 = vst [vmem:[%s9 + $0x294] sm:$0xff] %v5084
  %5341 = vst [vmem:[%s9 + $0x29c] sm:$0xf] %v5085
  %5342 = vst [vmem:[%s9 + $0x2a0] sm:$0xff] %v5086
  %5343 = vst [vmem:[%s9 + $0x2a8] sm:$0xff] %v5087
  %5344 = vst [vmem:[%s9 + $0x2b0] sm:$0xff] %v5088
  %5345 = vst [vmem:[%s9 + $0x2b8] sm:$0xf] %v5089
  %5346 = vst [vmem:[%s9 + $0x2bc] sm:$0xff] %v5090
  %5347 = vst [vmem:[%s9 + $0x2c4] sm:$0xff] %v5091
  %5348 = vst [vmem:[%s9 + $0x2cc] sm:$0xff] %v5092
  %5349 = vst [vmem:[%s9 + $0x2d4] sm:$0xf] %v5093
  %5350 = vst [vmem:[%s9 + $0x2d8] sm:$0xff] %v5094
  %5351 = vst [vmem:[%s9 + $0x2e0] sm:$0xff] %v5095
  %5352 = vst [vmem:[%s9 + $0x2e8] sm:$0xff] %v5096
  %5353 = vst [vmem:[%s9 + $0x2f0] sm:$0xf] %v5097
  %5354 = vst [vmem:[%s9 + $0x2f4] sm:$0xff] %v5098
  %5355 = vst [vmem:[%s9 + $0x2fc] sm:$0xff] %v5099
  %5356 = vst [vmem:[%s9 + $0x304] sm:$0xff] %v5100
  %5357 = vst [vmem:[%s9 + $0x30c] sm:$0xf] %v5101
  %5358 = vst [vmem:[%s9 + $0x310] sm:$0xff] %v5102
  %5359 = vst [vmem:[%s9 + $0x318] sm:$0xff] %v5103
  %5360 = vst [vmem:[%s9 + $0x320] sm:$0xff] %v5104
  %5361 = vst [vmem:[%s9 + $0x328] sm:$0xf] %v5105
  %5362 = vst [vmem:[%s9 + $0x32c] sm:$0xff] %v5106
  %5363 = vst [vmem:[%s9 + $0x334] sm:$0xff] %v5107
  %5364 = vst [vmem:[%s9 + $0x33c] sm:$0xff] %v5108
  %5365 = vst [vmem:[%s9 + $0x344] sm:$0xf] %v5109
  %5366 = vst [vmem:[%s9 + $0x348] sm:$0xff] %v5110
  %5367 = vst [vmem:[%s9 + $0x350] sm:$0xff] %v5111
  %5368 = vst [vmem:[%s9 + $0x358] sm:$0xff] %v5112
  %5369 = vst [vmem:[%s9 + $0x360] sm:$0xf] %v5113
  %5370 = vst [vmem:[%s9 + $0x364] sm:$0xff] %v5114
  %5371 = vst [vmem:[%s9 + $0x36c] sm:$0xff] %v5115
  %5372 = vst [vmem:[%s9 + $0x374] sm:$0xff] %v5116
  %5373 = vst [vmem:[%s9 + $0x37c] sm:$0xf] %v5117
  // Predicated region
  $region38: #{mlp_autoencoder.1} parent=0 // pred_check
    _
  $region39: #{mlp_autoencoder.1} parent=0 // pred_check_branch
    %5375 = sbr.rel (0) target = $region41
  $region40: #{mlp_autoencoder.1} parent=0 // pred_region
    _
  $region41: #{mlp_autoencoder.1} parent=0 // pred_fallthru
    _
  // Predicated region
  $region42: #{mlp_autoencoder.1} parent=0 // pred_check
    _
  $region43: #{mlp_autoencoder.1} parent=0 // pred_check_branch
    %5377 = sbr.rel (0) target = $region45
  $region44: #{mlp_autoencoder.1} parent=0 // pred_region
    _
  $region45: #{mlp_autoencoder.1} parent=0 // pred_fallthru
    _

</llo_original>
